<compile_context>
chip_gen: v7x
topology: tpu7x:2x2x1
jax: 0.10.0
libtpu: 0.0.40
codegen_flags: <defaults>
</compile_context>

<pallas_src>
import math

import jax
import jax.numpy as jnp
from jax.experimental import pallas as pl
from jax.experimental.pallas import tpu as pltpu


N_PAD = 128        # lane-dense width for the final (out_features=1) layer
TM_MAX = 1024      # largest batch tile (keeps the live set well under v7x's 64 MiB/TC)


def _disc_kernel(x_ref, w1_ref, b1_ref, w2_ref, b2_ref, w3_ref, b3_ref,
                 w4_ref, b4_ref, o_ref):
    # Matmuls run in bf16 on the MXU with f32 accumulation; epilogues in f32.
    x = x_ref[...].astype(jnp.bfloat16)

    # fc1 + ReLU
    h1 = jnp.dot(x, w1_ref[...], preferred_element_type=jnp.float32) + b1_ref[...]
    h1 = jnp.maximum(h1, 0.0).astype(jnp.bfloat16)

    # fc2 + ReLU
    h2 = jnp.dot(h1, w2_ref[...], preferred_element_type=jnp.float32) + b2_ref[...]
    h2 = jnp.maximum(h2, 0.0).astype(jnp.bfloat16)

    # fc3 + ReLU
    h3 = jnp.dot(h2, w3_ref[...], preferred_element_type=jnp.float32) + b3_ref[...]
    h3 = jnp.maximum(h3, 0.0).astype(jnp.bfloat16)

    # fc4 (padded to 128 lanes) + sigmoid; exp stays on the EUP slot.
    logits = jnp.dot(h3, w4_ref[...], preferred_element_type=jnp.float32) + b4_ref[...]
    o_ref[...] = jax.nn.sigmoid(logits).astype(o_ref.dtype)


def _pick_tm(batch):
    """Batch tile selection.

    * batch <= 256: one tile whose block equals the full batch dim (legal per the
      block-shape rule; no padding, no partial blocks, minimal step overhead).
    * batch > 256: grow the tile up to TM_MAX while keeping >= 2 tiles so the
      "parallel" batch axis still shards across both v7x TensorCores.
    """
    if batch <= 256:
        return batch
    tm = 256
    while tm < TM_MAX and pl.cdiv(batch, 2 * tm) >= 2:
        tm *= 2
    return tm


def discriminator_forward(x_flat, params):
    """x_flat: (B, length*4) float32.
    params: bf16 weights stored (in_features, out_features), f32 biases stored (1, out)."""
    B, K = x_flat.shape
    tm = _pick_tm(B)
    n_tiles = pl.cdiv(B, tm)

    w1, b1 = params["w1"], params["b1"]
    w2, b2 = params["w2"], params["b2"]
    w3, b3 = params["w3"], params["b3"]
    w4, b4 = params["w4"], params["b4"]

    # Lane-dense final layer: pad (256, 1) / (1, 1) out to 128 columns with zeros.
    w4p = jnp.pad(w4, ((0, 0), (0, N_PAD - w4.shape[1])))
    b4p = jnp.pad(b4, ((0, 0), (0, N_PAD - b4.shape[1])))

    def build(single_buffer_weights):
        def resident(shape):
            # Constant index_map -> block stays VMEM-resident across all grid steps.
            if single_buffer_weights:
                return pl.BlockSpec(shape, lambda i: (0, 0),
                                    pipeline_mode=pl.Buffered(1))
            return pl.BlockSpec(shape, lambda i: (0, 0))

        return pl.pallas_call(
            _disc_kernel,
            out_shape=jax.ShapeDtypeStruct((B, N_PAD), jnp.bfloat16),
            grid=(n_tiles,),
            in_specs=[
                pl.BlockSpec((tm, K), lambda i: (i, 0)),      # activations, batch-tiled
                resident(w1.shape), resident(b1.shape),
                resident(w2.shape), resident(b2.shape),
                resident(w3.shape), resident(b3.shape),
                resident(w4p.shape), resident(b4p.shape),
            ],
            out_specs=pl.BlockSpec((tm, N_PAD), lambda i: (i, 0)),
            compiler_params=pltpu.CompilerParams(
                dimension_semantics=("parallel",),            # batch tiles shard across v7x TCs
                vmem_limit_bytes=(32 << 20) if tm >= 512 else (16 << 20),
            ),
        )

    args = (x_flat, w1, b1, w2, b2, w3, b3, w4p, b4p)
    try:
        out = build(True)(*args)
    except Exception:
        # pl.Buffered(1) single-buffering not supported by this jax/Mosaic build:
        # fall back to default double-buffered resident weights (correctness identical).
        out = build(False)(*args)

    # Drop the 127 zero-padded output columns and upcast bf16 -> f32.
    return out[:, :1].astype(jnp.float32)


def init_params(length, key):
    """Deterministic init mimicking nn.Linear's U(-1/sqrt(fan_in), 1/sqrt(fan_in)).
    Weights stored bf16 (MXU-friendly), biases f32."""
    dims = [length * 4, 1024, 512, 256, 1]
    params = {}
    keys = jax.random.split(key, 8)
    for i in range(4):
        fan_in, fan_out = dims[i], dims[i + 1]
        bound = 1.0 / math.sqrt(fan_in)
        w = jax.random.uniform(keys[2 * i], (fan_in, fan_out), jnp.float32,
                               minval=-bound, maxval=bound)
        b = jax.random.uniform(keys[2 * i + 1], (1, fan_out), jnp.float32,
                               minval=-bound, maxval=bound)
        params[f"w{i + 1}"] = w.astype(jnp.bfloat16)
        params[f"b{i + 1}"] = b
    return params


def reference_forward(x_flat, params):
    """Pure-JAX f32 reference (weights upcast back to f32)."""
    h = x_flat
    for i in range(1, 4):
        h = jnp.maximum(h @ params[f"w{i}"].astype(jnp.float32) + params[f"b{i}"], 0.0)
    logits = h @ params["w4"].astype(jnp.float32) + params["b4"]
    return jax.nn.sigmoid(logits)


if __name__ == "__main__":
    length = 8            # -> input feature dim = length * 4 = 32
    batch = 2
    key = jax.random.PRNGKey(0)
    k_x, k_p, k_x2 = jax.random.split(key, 3)

    params = init_params(length, k_p)

    # The PyTorch module does input_data.view(-1, length*4); feed an input whose
    # total size is batch * length * 4 and flatten it the same way.
    input_data = jax.random.normal(k_x, (batch, 4, length), jnp.float32)
    x_flat = input_data.reshape(-1, length * 4)

    out = discriminator_forward(x_flat, params)
    out = jax.block_until_ready(out)
    ref = reference_forward(x_flat, params)
    assert out.shape == (batch, 1), out.shape
    # bf16 matmuls with f32 accumulation + bf16 output vs f32 reference.
    assert jnp.allclose(out, ref, atol=2e-2, rtol=2e-2), (out, ref)

    # Second check: ragged multi-tile batch (exercises the partial last block
    # without any wrapper-side padding).
    B2 = 300
    x2 = jax.random.normal(k_x2, (B2, length * 4), jnp.float32)
    out2 = jax.block_until_ready(discriminator_forward(x2, params))
    ref2 = reference_forward(x2, params)
    assert out2.shape == (B2, 1), out2.shape
    assert jnp.allclose(out2, ref2, atol=2e-2, rtol=2e-2)

    print("KERNEL_OK")
</pallas_src>

<mosaic_0001>
module attributes {stable_mosaic.version = 11 : i64} {
  func.func @_disc_kernel(%arg0: i32, %arg1: memref<2x32xf32, #tpu.memory_space<vmem>>, %arg2: memref<32x1024xbf16, #tpu.memory_space<vmem>>, %arg3: memref<1x1024xf32, #tpu.memory_space<vmem>>, %arg4: memref<1024x512xbf16, #tpu.memory_space<vmem>>, %arg5: memref<1x512xf32, #tpu.memory_space<vmem>>, %arg6: memref<512x256xbf16, #tpu.memory_space<vmem>>, %arg7: memref<1x256xf32, #tpu.memory_space<vmem>>, %arg8: memref<256x128xbf16, #tpu.memory_space<vmem>>, %arg9: memref<1x128xf32, #tpu.memory_space<vmem>>, %arg10: memref<2x128xbf16, #tpu.memory_space<vmem>>) attributes {dimension_semantics = [#tpu.dimension_semantics<parallel>], iteration_bounds = array<i64: 1>, scalar_prefetch = 0 : i64, scratch_operands = 0 : i64, tpu.core_type = #tpu.core_type<tc>, window_params = [{transform_indices = @transform_0, window_bounds = array<i64: 2, 32>}, {pipeline_mode = #tpu.pipeline_mode<synchronous>, transform_indices = @transform_1, window_bounds = array<i64: 32, 1024>}, {pipeline_mode = #tpu.pipeline_mode<synchronous>, transform_indices = @transform_2, window_bounds = array<i64: 1, 1024>}, {pipeline_mode = #tpu.pipeline_mode<synchronous>, transform_indices = @transform_3, window_bounds = array<i64: 1024, 512>}, {pipeline_mode = #tpu.pipeline_mode<synchronous>, transform_indices = @transform_4, window_bounds = array<i64: 1, 512>}, {pipeline_mode = #tpu.pipeline_mode<synchronous>, transform_indices = @transform_5, window_bounds = array<i64: 512, 256>}, {pipeline_mode = #tpu.pipeline_mode<synchronous>, transform_indices = @transform_6, window_bounds = array<i64: 1, 256>}, {pipeline_mode = #tpu.pipeline_mode<synchronous>, transform_indices = @transform_7, window_bounds = array<i64: 256, 128>}, {pipeline_mode = #tpu.pipeline_mode<synchronous>, transform_indices = @transform_8, window_bounds = array<i64: 1, 128>}, {transform_indices = @transform_9, window_bounds = array<i64: 2, 128>}]} {
    %c0 = arith.constant 0 : index
    %c0_0 = arith.constant 0 : index
    %0 = vector.load %arg1[%c0, %c0_0] : memref<2x32xf32, #tpu.memory_space<vmem>>, vector<2x32xf32>
    %1 = arith.truncf %0 : vector<2x32xf32> to vector<2x32xbf16>
    %c0_1 = arith.constant 0 : index
    %c0_2 = arith.constant 0 : index
    %2 = vector.load %arg2[%c0_1, %c0_2] : memref<32x1024xbf16, #tpu.memory_space<vmem>>, vector<32x1024xbf16>
    %cst = arith.constant dense<0.000000e+00> : vector<2x1024xf32>
    %3 = tpu.matmul %1, %2, %cst {dimension_numbers = #tpu.dot_dimension_numbers<[1], [0], [0], [1], [0, 0, 1, 1], [], []>} : vector<2x32xbf16>, vector<32x1024xbf16>, vector<2x1024xf32> -> vector<2x1024xf32>
    %c0_3 = arith.constant 0 : index
    %c0_4 = arith.constant 0 : index
    %4 = vector.load %arg3[%c0_3, %c0_4] : memref<1x1024xf32, #tpu.memory_space<vmem>>, vector<1x1024xf32>
    %5 = vector.broadcast %4 : vector<1x1024xf32> to vector<2x1024xf32>
    %6 = arith.addf %3, %5 : vector<2x1024xf32>
    %cst_5 = arith.constant 0.000000e+00 : f32
    %7 = vector.broadcast %cst_5 : f32 to vector<2x1024xf32>
    %8 = arith.maximumf %6, %7 : vector<2x1024xf32>
    %9 = arith.truncf %8 : vector<2x1024xf32> to vector<2x1024xbf16>
    %c0_6 = arith.constant 0 : index
    %c0_7 = arith.constant 0 : index
    %10 = vector.load %arg4[%c0_6, %c0_7] : memref<1024x512xbf16, #tpu.memory_space<vmem>>, vector<1024x512xbf16>
    %cst_8 = arith.constant dense<0.000000e+00> : vector<2x512xf32>
    %11 = tpu.matmul %9, %10, %cst_8 {dimension_numbers = #tpu.dot_dimension_numbers<[1], [0], [0], [1], [0, 0, 1, 1], [], []>} : vector<2x1024xbf16>, vector<1024x512xbf16>, vector<2x512xf32> -> vector<2x512xf32>
    %c0_9 = arith.constant 0 : index
    %c0_10 = arith.constant 0 : index
    %12 = vector.load %arg5[%c0_9, %c0_10] : memref<1x512xf32, #tpu.memory_space<vmem>>, vector<1x512xf32>
    %13 = vector.broadcast %12 : vector<1x512xf32> to vector<2x512xf32>
    %14 = arith.addf %11, %13 : vector<2x512xf32>
    %cst_11 = arith.constant 0.000000e+00 : f32
    %15 = vector.broadcast %cst_11 : f32 to vector<2x512xf32>
    %16 = arith.maximumf %14, %15 : vector<2x512xf32>
    %17 = arith.truncf %16 : vector<2x512xf32> to vector<2x512xbf16>
    %c0_12 = arith.constant 0 : index
    %c0_13 = arith.constant 0 : index
    %18 = vector.load %arg6[%c0_12, %c0_13] : memref<512x256xbf16, #tpu.memory_space<vmem>>, vector<512x256xbf16>
    %cst_14 = arith.constant dense<0.000000e+00> : vector<2x256xf32>
    %19 = tpu.matmul %17, %18, %cst_14 {dimension_numbers = #tpu.dot_dimension_numbers<[1], [0], [0], [1], [0, 0, 1, 1], [], []>} : vector<2x512xbf16>, vector<512x256xbf16>, vector<2x256xf32> -> vector<2x256xf32>
    %c0_15 = arith.constant 0 : index
    %c0_16 = arith.constant 0 : index
    %20 = vector.load %arg7[%c0_15, %c0_16] : memref<1x256xf32, #tpu.memory_space<vmem>>, vector<1x256xf32>
    %21 = vector.broadcast %20 : vector<1x256xf32> to vector<2x256xf32>
    %22 = arith.addf %19, %21 : vector<2x256xf32>
    %cst_17 = arith.constant 0.000000e+00 : f32
    %23 = vector.broadcast %cst_17 : f32 to vector<2x256xf32>
    %24 = arith.maximumf %22, %23 : vector<2x256xf32>
    %25 = arith.truncf %24 : vector<2x256xf32> to vector<2x256xbf16>
    %c0_18 = arith.constant 0 : index
    %c0_19 = arith.constant 0 : index
    %26 = vector.load %arg8[%c0_18, %c0_19] : memref<256x128xbf16, #tpu.memory_space<vmem>>, vector<256x128xbf16>
    %cst_20 = arith.constant dense<0.000000e+00> : vector<2x128xf32>
    %27 = tpu.matmul %25, %26, %cst_20 {dimension_numbers = #tpu.dot_dimension_numbers<[1], [0], [0], [1], [0, 0, 1, 1], [], []>} : vector<2x256xbf16>, vector<256x128xbf16>, vector<2x128xf32> -> vector<2x128xf32>
    %c0_21 = arith.constant 0 : index
    %c0_22 = arith.constant 0 : index
    %28 = vector.load %arg9[%c0_21, %c0_22] : memref<1x128xf32, #tpu.memory_space<vmem>>, vector<1x128xf32>
    %29 = vector.broadcast %28 : vector<1x128xf32> to vector<2x128xf32>
    %30 = arith.addf %27, %29 : vector<2x128xf32>
    %31 = arith.negf %30 : vector<2x128xf32>
    %32 = math.exp %31 : vector<2x128xf32>
    %cst_23 = arith.constant 1.000000e+00 : f32
    %33 = vector.broadcast %cst_23 : f32 to vector<2x128xf32>
    %34 = arith.addf %33, %32 : vector<2x128xf32>
    %35 = arith.divf %33, %34 : vector<2x128xf32>
    %36 = arith.truncf %35 : vector<2x128xf32> to vector<2x128xbf16>
    %c0_24 = arith.constant 0 : index
    %c0_25 = arith.constant 0 : index
    %37 = vector.load %arg10[%c0_24, %c0_25] : memref<2x128xbf16, #tpu.memory_space<vmem>>, vector<2x128xbf16>
    tpu.vector_store %arg10[%c0_24, %c0_25], %36 {strides = array<i32>} : memref<2x128xbf16, #tpu.memory_space<vmem>>, vector<2x128xbf16>,
    return
  }
  func.func @transform_0(%arg0: i32) -> (i32, i32) {
    %c0_i32 = arith.constant 0 : i32
    %c0_i32_0 = arith.constant 0 : i32
    return %arg0, %c0_i32 : i32, i32
  }
  func.func @transform_1(%arg0: i32) -> (i32, i32) {
    %c0_i32 = arith.constant 0 : i32
    %c0_i32_0 = arith.constant 0 : i32
    %c0_i32_1 = arith.constant 0 : i32
    return %c0_i32, %c0_i32_0 : i32, i32
  }
  func.func @transform_2(%arg0: i32) -> (i32, i32) {
    %c0_i32 = arith.constant 0 : i32
    %c0_i32_0 = arith.constant 0 : i32
    %c0_i32_1 = arith.constant 0 : i32
    return %c0_i32, %c0_i32_0 : i32, i32
  }
  func.func @transform_3(%arg0: i32) -> (i32, i32) {
    %c0_i32 = arith.constant 0 : i32
    %c0_i32_0 = arith.constant 0 : i32
    %c0_i32_1 = arith.constant 0 : i32
    return %c0_i32, %c0_i32_0 : i32, i32
  }
  func.func @transform_4(%arg0: i32) -> (i32, i32) {
    %c0_i32 = arith.constant 0 : i32
    %c0_i32_0 = arith.constant 0 : i32
    %c0_i32_1 = arith.constant 0 : i32
    return %c0_i32, %c0_i32_0 : i32, i32
  }
  func.func @transform_5(%arg0: i32) -> (i32, i32) {
    %c0_i32 = arith.constant 0 : i32
    %c0_i32_0 = arith.constant 0 : i32
    %c0_i32_1 = arith.constant 0 : i32
    return %c0_i32, %c0_i32_0 : i32, i32
  }
  func.func @transform_6(%arg0: i32) -> (i32, i32) {
    %c0_i32 = arith.constant 0 : i32
    %c0_i32_0 = arith.constant 0 : i32
    %c0_i32_1 = arith.constant 0 : i32
    return %c0_i32, %c0_i32_0 : i32, i32
  }
  func.func @transform_7(%arg0: i32) -> (i32, i32) {
    %c0_i32 = arith.constant 0 : i32
    %c0_i32_0 = arith.constant 0 : i32
    %c0_i32_1 = arith.constant 0 : i32
    return %c0_i32, %c0_i32_0 : i32, i32
  }
  func.func @transform_8(%arg0: i32) -> (i32, i32) {
    %c0_i32 = arith.constant 0 : i32
    %c0_i32_0 = arith.constant 0 : i32
    %c0_i32_1 = arith.constant 0 : i32
    return %c0_i32, %c0_i32_0 : i32, i32
  }
  func.func @transform_9(%arg0: i32) -> (i32, i32) {
    %c0_i32 = arith.constant 0 : i32
    %c0_i32_0 = arith.constant 0 : i32
    return %arg0, %c0_i32 : i32, i32
  }
}

module attributes {stable_mosaic.version = 11 : i64} {
  func.func @_disc_kernel(%arg0: i32, %arg1: memref<2x32xf32, #tpu.memory_space<vmem>>, %arg2: memref<32x1024xbf16, #tpu.memory_space<vmem>>, %arg3: memref<1x1024xf32, #tpu.memory_space<vmem>>, %arg4: memref<1024x512xbf16, #tpu.memory_space<vmem>>, %arg5: memref<1x512xf32, #tpu.memory_space<vmem>>, %arg6: memref<512x256xbf16, #tpu.memory_space<vmem>>, %arg7: memref<1x256xf32, #tpu.memory_space<vmem>>, %arg8: memref<256x128xbf16, #tpu.memory_space<vmem>>, %arg9: memref<1x128xf32, #tpu.memory_space<vmem>>, %arg10: memref<2x128xbf16, #tpu.memory_space<vmem>>) attributes {dimension_semantics = [#tpu.dimension_semantics<parallel>], iteration_bounds = array<i64: 1>, scalar_prefetch = 0 : i64, scratch_operands = 0 : i64, tpu.core_type = #tpu.core_type<tc>, window_params = [{transform_indices = @transform_0, window_bounds = array<i64: 2, 32>}, {pipeline_mode = #tpu.pipeline_mode<synchronous>, transform_indices = @transform_1, window_bounds = array<i64: 32, 1024>}, {pipeline_mode = #tpu.pipeline_mode<synchronous>, transform_indices = @transform_2, window_bounds = array<i64: 1, 1024>}, {pipeline_mode = #tpu.pipeline_mode<synchronous>, transform_indices = @transform_3, window_bounds = array<i64: 1024, 512>}, {pipeline_mode = #tpu.pipeline_mode<synchronous>, transform_indices = @transform_4, window_bounds = array<i64: 1, 512>}, {pipeline_mode = #tpu.pipeline_mode<synchronous>, transform_indices = @transform_5, window_bounds = array<i64: 512, 256>}, {pipeline_mode = #tpu.pipeline_mode<synchronous>, transform_indices = @transform_6, window_bounds = array<i64: 1, 256>}, {pipeline_mode = #tpu.pipeline_mode<synchronous>, transform_indices = @transform_7, window_bounds = array<i64: 256, 128>}, {pipeline_mode = #tpu.pipeline_mode<synchronous>, transform_indices = @transform_8, window_bounds = array<i64: 1, 128>}, {transform_indices = @transform_9, window_bounds = array<i64: 2, 128>}]} {
    %c0 = arith.constant 0 : index
    %c0_0 = arith.constant 0 : index
    %0 = vector.load %arg1[%c0, %c0_0] : memref<2x32xf32, #tpu.memory_space<vmem>>, vector<2x32xf32>
    %1 = arith.truncf %0 : vector<2x32xf32> to vector<2x32xbf16>
    %c0_1 = arith.constant 0 : index
    %c0_2 = arith.constant 0 : index
    %2 = vector.load %arg2[%c0_1, %c0_2] : memref<32x1024xbf16, #tpu.memory_space<vmem>>, vector<32x1024xbf16>
    %cst = arith.constant dense<0.000000e+00> : vector<2x1024xf32>
    %3 = tpu.matmul %1, %2, %cst {dimension_numbers = #tpu.dot_dimension_numbers<[1], [0], [0], [1], [0, 0, 1, 1], [], []>} : vector<2x32xbf16>, vector<32x1024xbf16>, vector<2x1024xf32> -> vector<2x1024xf32>
    %c0_3 = arith.constant 0 : index
    %c0_4 = arith.constant 0 : index
    %4 = vector.load %arg3[%c0_3, %c0_4] : memref<1x1024xf32, #tpu.memory_space<vmem>>, vector<1x1024xf32>
    %5 = vector.broadcast %4 : vector<1x1024xf32> to vector<2x1024xf32>
    %6 = arith.addf %3, %5 : vector<2x1024xf32>
    %cst_5 = arith.constant 0.000000e+00 : f32
    %7 = vector.broadcast %cst_5 : f32 to vector<2x1024xf32>
    %8 = arith.maximumf %6, %7 : vector<2x1024xf32>
    %9 = arith.truncf %8 : vector<2x1024xf32> to vector<2x1024xbf16>
    %c0_6 = arith.constant 0 : index
    %c0_7 = arith.constant 0 : index
    %10 = vector.load %arg4[%c0_6, %c0_7] : memref<1024x512xbf16, #tpu.memory_space<vmem>>, vector<1024x512xbf16>
    %cst_8 = arith.constant dense<0.000000e+00> : vector<2x512xf32>
    %11 = tpu.matmul %9, %10, %cst_8 {dimension_numbers = #tpu.dot_dimension_numbers<[1], [0], [0], [1], [0, 0, 1, 1], [], []>} : vector<2x1024xbf16>, vector<1024x512xbf16>, vector<2x512xf32> -> vector<2x512xf32>
    %c0_9 = arith.constant 0 : index
    %c0_10 = arith.constant 0 : index
    %12 = vector.load %arg5[%c0_9, %c0_10] : memref<1x512xf32, #tpu.memory_space<vmem>>, vector<1x512xf32>
    %13 = vector.broadcast %12 : vector<1x512xf32> to vector<2x512xf32>
    %14 = arith.addf %11, %13 : vector<2x512xf32>
    %cst_11 = arith.constant 0.000000e+00 : f32
    %15 = vector.broadcast %cst_11 : f32 to vector<2x512xf32>
    %16 = arith.maximumf %14, %15 : vector<2x512xf32>
    %17 = arith.truncf %16 : vector<2x512xf32> to vector<2x512xbf16>
    %c0_12 = arith.constant 0 : index
    %c0_13 = arith.constant 0 : index
    %18 = vector.load %arg6[%c0_12, %c0_13] : memref<512x256xbf16, #tpu.memory_space<vmem>>, vector<512x256xbf16>
    %cst_14 = arith.constant dense<0.000000e+00> : vector<2x256xf32>
    %19 = tpu.matmul %17, %18, %cst_14 {dimension_numbers = #tpu.dot_dimension_numbers<[1], [0], [0], [1], [0, 0, 1, 1], [], []>} : vector<2x512xbf16>, vector<512x256xbf16>, vector<2x256xf32> -> vector<2x256xf32>
    %c0_15 = arith.constant 0 : index
    %c0_16 = arith.constant 0 : index
    %20 = vector.load %arg7[%c0_15, %c0_16] : memref<1x256xf32, #tpu.memory_space<vmem>>, vector<1x256xf32>
    %21 = vector.broadcast %20 : vector<1x256xf32> to vector<2x256xf32>
    %22 = arith.addf %19, %21 : vector<2x256xf32>
    %cst_17 = arith.constant 0.000000e+00 : f32
    %23 = vector.broadcast %cst_17 : f32 to vector<2x256xf32>
    %24 = arith.maximumf %22, %23 : vector<2x256xf32>
    %25 = arith.truncf %24 : vector<2x256xf32> to vector<2x256xbf16>
    %c0_18 = arith.constant 0 : index
    %c0_19 = arith.constant 0 : index
    %26 = vector.load %arg8[%c0_18, %c0_19] : memref<256x128xbf16, #tpu.memory_space<vmem>>, vector<256x128xbf16>
    %cst_20 = arith.constant dense<0.000000e+00> : vector<2x128xf32>
    %27 = tpu.matmul %25, %26, %cst_20 {dimension_numbers = #tpu.dot_dimension_numbers<[1], [0], [0], [1], [0, 0, 1, 1], [], []>} : vector<2x256xbf16>, vector<256x128xbf16>, vector<2x128xf32> -> vector<2x128xf32>
    %c0_21 = arith.constant 0 : index
    %c0_22 = arith.constant 0 : index
    %28 = vector.load %arg9[%c0_21, %c0_22] : memref<1x128xf32, #tpu.memory_space<vmem>>, vector<1x128xf32>
    %29 = vector.broadcast %28 : vector<1x128xf32> to vector<2x128xf32>
    %30 = arith.addf %27, %29 : vector<2x128xf32>
    %31 = arith.negf %30 : vector<2x128xf32>
    %32 = math.exp %31 : vector<2x128xf32>
    %cst_23 = arith.constant 1.000000e+00 : f32
    %33 = vector.broadcast %cst_23 : f32 to vector<2x128xf32>
    %34 = arith.addf %33, %32 : vector<2x128xf32>
    %35 = arith.divf %33, %34 : vector<2x128xf32>
    %36 = arith.truncf %35 : vector<2x128xf32> to vector<2x128xbf16>
    %c0_24 = arith.constant 0 : index
    %c0_25 = arith.constant 0 : index
    %37 = vector.load %arg10[%c0_24, %c0_25] : memref<2x128xbf16, #tpu.memory_space<vmem>>, vector<2x128xbf16>
    tpu.vector_store %arg10[%c0_24, %c0_25], %36 {strides = array<i32>} : memref<2x128xbf16, #tpu.memory_space<vmem>>, vector<2x128xbf16>,
    return
  }
  func.func @transform_0(%arg0: i32) -> (i32, i32) {
    %c0_i32 = arith.constant 0 : i32
    %c0_i32_0 = arith.constant 0 : i32
    return %arg0, %c0_i32 : i32, i32
  }
  func.func @transform_1(%arg0: i32) -> (i32, i32) {
    %c0_i32 = arith.constant 0 : i32
    %c0_i32_0 = arith.constant 0 : i32
    %c0_i32_1 = arith.constant 0 : i32
    return %c0_i32, %c0_i32_0 : i32, i32
  }
  func.func @transform_2(%arg0: i32) -> (i32, i32) {
    %c0_i32 = arith.constant 0 : i32
    %c0_i32_0 = arith.constant 0 : i32
    %c0_i32_1 = arith.constant 0 : i32
    return %c0_i32, %c0_i32_0 : i32, i32
  }
  func.func @transform_3(%arg0: i32) -> (i32, i32) {
    %c0_i32 = arith.constant 0 : i32
    %c0_i32_0 = arith.constant 0 : i32
    %c0_i32_1 = arith.constant 0 : i32
    return %c0_i32, %c0_i32_0 : i32, i32
  }
  func.func @transform_4(%arg0: i32) -> (i32, i32) {
    %c0_i32 = arith.constant 0 : i32
    %c0_i32_0 = arith.constant 0 : i32
    %c0_i32_1 = arith.constant 0 : i32
    return %c0_i32, %c0_i32_0 : i32, i32
  }
  func.func @transform_5(%arg0: i32) -> (i32, i32) {
    %c0_i32 = arith.constant 0 : i32
    %c0_i32_0 = arith.constant 0 : i32
    %c0_i32_1 = arith.constant 0 : i32
    return %c0_i32, %c0_i32_0 : i32, i32
  }
  func.func @transform_6(%arg0: i32) -> (i32, i32) {
    %c0_i32 = arith.constant 0 : i32
    %c0_i32_0 = arith.constant 0 : i32
    %c0_i32_1 = arith.constant 0 : i32
    return %c0_i32, %c0_i32_0 : i32, i32
  }
  func.func @transform_7(%arg0: i32) -> (i32, i32) {
    %c0_i32 = arith.constant 0 : i32
    %c0_i32_0 = arith.constant 0 : i32
    %c0_i32_1 = arith.constant 0 : i32
    return %c0_i32, %c0_i32_0 : i32, i32
  }
  func.func @transform_8(%arg0: i32) -> (i32, i32) {
    %c0_i32 = arith.constant 0 : i32
    %c0_i32_0 = arith.constant 0 : i32
    %c0_i32_1 = arith.constant 0 : i32
    return %c0_i32, %c0_i32_0 : i32, i32
  }
  func.func @transform_9(%arg0: i32) -> (i32, i32) {
    %c0_i32 = arith.constant 0 : i32
    %c0_i32_0 = arith.constant 0 : i32
    return %arg0, %c0_i32 : i32, i32
  }
}

</mosaic_0001>

<llo_original>
// kernel: tpu_custom_call.1
$region0: #{tpu_custom_call.1}
  #allocation0 [shape = 'u32[]', space=smem, size = 0x4, offset = 0x4, fixed_abs, tag = 'smem constant byte address 0x4 - core index']
  #allocation1 [shape = 'u32[144,128]{1,0:T(1,128)}', space=vmem, size = 0x12000, scoped, tag = 'internal scratch']
  %s0 = inlined_call_operand.hbm [shape: f32[2,32], index: 0, kind: input, shape index: {}]
  %s1 = inlined_call_operand.hbm [shape: bf16[32,1024], index: 1, kind: input, shape index: {}]
  %s2 = inlined_call_operand.hbm [shape: f32[1,1024], index: 2, kind: input, shape index: {}]
  %s3 = inlined_call_operand.hbm [shape: bf16[1024,512], index: 3, kind: input, shape index: {}]
  %s4 = inlined_call_operand.vmem [shape: f32[1,512], index: 4, kind: input, shape index: {}]
  %s5 = inlined_call_operand.hbm [shape: bf16[512,256], index: 5, kind: input, shape index: {}]
  %s6 = inlined_call_operand.vmem [shape: f32[1,256], index: 6, kind: input, shape index: {}]
  %s7 = inlined_call_operand.hbm [shape: bf16[256,128], index: 7, kind: input, shape index: {}]
  %s8 = inlined_call_operand.vmem [shape: f32[1,128], index: 8, kind: input, shape index: {}]
  %s9 = inlined_call_operand.hbm [shape: bf16[2,128], index: 9, kind: output, shape index: {}]
  %s10 = sld [smem:[#allocation0]]
  $region70: #{tpu_custom_call.1} parent=0
    _
  %s12 = ssub.s32 1, %s10
  %s13 = scalar_select 0, %s12, %s10
  $region1: #{tpu_custom_call.1} parent=0
    #allocation2 [shape = 'u8[1024]{0}', space=vmem, size = 0x400, scoped, tag = 'input window, operand 0, single buffered']
    #allocation3 [shape = 's32[1]{0}', space=sflag, size = 0x4, scoped, tag = 'scoped memory for tpu_custom_call.1']
    #allocation4 [shape = 's32[1]{0}', space=sflag, size = 0x4, scoped, tag = 'scoped memory for tpu_custom_call.1']
    #allocation5 [shape = 'u8[65536]{0}', space=vmem, size = 0x10000, scoped, tag = 'input window, operand 1, single buffered']
    #allocation6 [shape = 's32[1]{0}', space=sflag, size = 0x4, scoped, tag = 'scoped memory for tpu_custom_call.1']
    #allocation7 [shape = 'u8[4096]{0}', space=vmem, size = 0x1000, scoped, tag = 'input window, operand 2, single buffered']
    #allocation8 [shape = 'u8[1048576]{0}', space=vmem, size = 0x100000, scoped, tag = 'input window, operand 3, single buffered']
    #allocation9 [shape = 's32[1]{0}', space=sflag, size = 0x4, scoped, tag = 'scoped memory for tpu_custom_call.1']
    #allocation10 [shape = 'u8[262144]{0}', space=vmem, size = 0x40000, scoped, tag = 'input window, operand 5, single buffered']
    #allocation11 [shape = 'u8[65536]{0}', space=vmem, size = 0x10000, scoped, tag = 'input window, operand 7, single buffered']
    #allocation12 [shape = 's32[1]{0}', space=sflag, size = 0x4, scoped, tag = 'scoped memory for tpu_custom_call.1']
    #allocation13 [shape = 'u8[512]{0}', space=vmem, size = 0x400, scoped, tag = 'output window, operand 0, single buffered']
    %14 = vsyncpa [#allocation3], 0
    %15 = vsyncpa [#allocation6], 0
    %16 = vsyncpa [#allocation9], 0
    %17 = vsyncpa [#allocation12], 0
    %18 = vsyncpa [#allocation4], 0
    // Predicated region
    $region2: #{tpu_custom_call.1} parent=1 // pred_check
      _
    $region3: #{tpu_custom_call.1} parent=1 // pred_check_branch
      %20 = sbr.rel (0) target = $region5
    $region4: #{tpu_custom_call.1} parent=1 // pred_region
      %s22 = ssub.s32 32, 32
      %23 = vsyncadd [#allocation3], %s22
      %s25 = sshll.u32 [#allocation2], 4
      %s26 = int_to_ptr.vmem [resolvable:$true] %s25
      %28 = dma.hbm_to_vmem [thread:$0]  %s0, 32, %s26, [#allocation3]
    $region5: #{tpu_custom_call.1} parent=1 // pred_fallthru
      _
    // Predicated region
    $region6: #{tpu_custom_call.1} parent=1 // pred_check
      _
    $region7: #{tpu_custom_call.1} parent=1 // pred_check_branch
      %30 = sbr.rel (0) target = $region9
    $region8: #{tpu_custom_call.1} parent=1 // pred_region
      %s32 = ssub.s32 2048, 2048
      %33 = vsyncadd [#allocation6], %s32
      %s34 = sshll.u32 [#allocation5], 4
      %s35 = int_to_ptr.vmem [resolvable:$true] %s34
      %40 = dma.hbm_to_vmem [thread:$0]  %s1, 2048, %s35, [#allocation6], 512, 512, 32
    $region9: #{tpu_custom_call.1} parent=1 // pred_fallthru
      _
    // Predicated region
    $region10: #{tpu_custom_call.1} parent=1 // pred_check
      _
    $region11: #{tpu_custom_call.1} parent=1 // pred_check_branch
      %42 = sbr.rel (0) target = $region13
    $region12: #{tpu_custom_call.1} parent=1 // pred_region
      %s44 = ssub.s32 128, 128
      %45 = vsyncadd [#allocation6], %s44
      %s47 = sshll.u32 [#allocation7], 4
      %s48 = int_to_ptr.vmem [resolvable:$true] %s47
      %50 = dma.hbm_to_vmem [thread:$0]  %s2, 128, %s48, [#allocation6]
    $region13: #{tpu_custom_call.1} parent=1 // pred_fallthru
      _
    // Predicated region
    $region14: #{tpu_custom_call.1} parent=1 // pred_check
      _
    $region15: #{tpu_custom_call.1} parent=1 // pred_check_branch
      %52 = sbr.rel (0) target = $region17
    $region16: #{tpu_custom_call.1} parent=1 // pred_region
      %s54 = ssub.s32 32768, 32768
      %55 = vsyncadd [#allocation9], %s54
      %s56 = sshll.u32 [#allocation8], 4
      %s57 = int_to_ptr.vmem [resolvable:$true] %s56
      %62 = dma.hbm_to_vmem [thread:$0]  %s3, 32768, %s57, [#allocation9], 256, 256, 16
    $region17: #{tpu_custom_call.1} parent=1 // pred_fallthru
      _
    // Predicated region
    $region18: #{tpu_custom_call.1} parent=1 // pred_check
      _
    $region19: #{tpu_custom_call.1} parent=1 // pred_check_branch
      %64 = sbr.rel (0) target = $region21
    $region20: #{tpu_custom_call.1} parent=1 // pred_region
      _
    $region21: #{tpu_custom_call.1} parent=1 // pred_fallthru
      _
    // Predicated region
    $region22: #{tpu_custom_call.1} parent=1 // pred_check
      _
    $region23: #{tpu_custom_call.1} parent=1 // pred_check_branch
      %66 = sbr.rel (0) target = $region25
    $region24: #{tpu_custom_call.1} parent=1 // pred_region
      %s68 = ssub.s32 8192, 8192
      %69 = vsyncadd [#allocation9], %s68
      %s70 = sshll.u32 [#allocation10], 4
      %s71 = int_to_ptr.vmem [resolvable:$true] %s70
      %76 = dma.hbm_to_vmem [thread:$0]  %s5, 8192, %s71, [#allocation9], 128, 128, 8
    $region25: #{tpu_custom_call.1} parent=1 // pred_fallthru
      _
    // Predicated region
    $region26: #{tpu_custom_call.1} parent=1 // pred_check
      _
    $region27: #{tpu_custom_call.1} parent=1 // pred_check_branch
      %78 = sbr.rel (0) target = $region29
    $region28: #{tpu_custom_call.1} parent=1 // pred_region
      _
    $region29: #{tpu_custom_call.1} parent=1 // pred_fallthru
      _
    // Predicated region
    $region30: #{tpu_custom_call.1} parent=1 // pred_check
      _
    $region31: #{tpu_custom_call.1} parent=1 // pred_check_branch
      %80 = sbr.rel (0) target = $region33
    $region32: #{tpu_custom_call.1} parent=1 // pred_region
      %s82 = ssub.s32 2048, 2048
      %83 = vsyncadd [#allocation12], %s82
      %s84 = sshll.u32 [#allocation11], 4
      %s85 = int_to_ptr.vmem [resolvable:$true] %s84
      %90 = dma.hbm_to_vmem [thread:$0]  %s7, 2048, %s85, [#allocation12], 64, 64, 4
    $region33: #{tpu_custom_call.1} parent=1 // pred_fallthru
      _
    // Predicated region
    $region34: #{tpu_custom_call.1} parent=1 // pred_check
      _
    $region35: #{tpu_custom_call.1} parent=1 // pred_check_branch
      %92 = sbr.rel (0) target = $region37
    $region36: #{tpu_custom_call.1} parent=1 // pred_region
      _
    $region37: #{tpu_custom_call.1} parent=1 // pred_fallthru
      _
    // Predicated region
    $region38: #{tpu_custom_call.1} parent=1 // pred_check
      _
    $region39: #{tpu_custom_call.1} parent=1 // pred_check_branch
      %94 = sbr.rel (0) target = $region41
    $region40: #{tpu_custom_call.1} parent=1 // pred_region
      %95 = dma.done [#allocation3], 32
    $region41: #{tpu_custom_call.1} parent=1 // pred_fallthru
      _
    // Predicated region
    $region42: #{tpu_custom_call.1} parent=1 // pred_check
      _
    $region43: #{tpu_custom_call.1} parent=1 // pred_check_branch
      %97 = sbr.rel (0) target = $region45
    $region44: #{tpu_custom_call.1} parent=1 // pred_region
      %98 = dma.done [#allocation6], 2048
    $region45: #{tpu_custom_call.1} parent=1 // pred_fallthru
      _
    // Predicated region
    $region46: #{tpu_custom_call.1} parent=1 // pred_check
      _
    $region47: #{tpu_custom_call.1} parent=1 // pred_check_branch
      %100 = sbr.rel (0) target = $region49
    $region48: #{tpu_custom_call.1} parent=1 // pred_region
      %101 = dma.done [#allocation6], 128
    $region49: #{tpu_custom_call.1} parent=1 // pred_fallthru
      _
    // Predicated region
    $region50: #{tpu_custom_call.1} parent=1 // pred_check
      _
    $region51: #{tpu_custom_call.1} parent=1 // pred_check_branch
      %103 = sbr.rel (0) target = $region53
    $region52: #{tpu_custom_call.1} parent=1 // pred_region
      %104 = dma.done [#allocation9], 32768
    $region53: #{tpu_custom_call.1} parent=1 // pred_fallthru
      _
    // Predicated region
    $region54: #{tpu_custom_call.1} parent=1 // pred_check
      _
    $region55: #{tpu_custom_call.1} parent=1 // pred_check_branch
      %106 = sbr.rel (0) target = $region57
    $region56: #{tpu_custom_call.1} parent=1 // pred_region
      %107 = dma.done [#allocation9], 8192
    $region57: #{tpu_custom_call.1} parent=1 // pred_fallthru
      _
    // Predicated region
    $region58: #{tpu_custom_call.1} parent=1 // pred_check
      _
    $region59: #{tpu_custom_call.1} parent=1 // pred_check_branch
      %109 = sbr.rel (0) target = $region61
    $region60: #{tpu_custom_call.1} parent=1 // pred_region
      %110 = dma.done [#allocation12], 2048
    $region61: #{tpu_custom_call.1} parent=1 // pred_fallthru
      _
    %v112 = vld [vmem:[#allocation2] sm:$0x3]
    %v113 = vpack.c.bf16 %v112, %v112
    %v114 = vld [vmem:[#allocation5] sm:$0xff]
    %v115 = vld [vmem:[#allocation5 + $0x8] sm:$0xff]
    %v116 = vld [vmem:[#allocation5 + $0x10] sm:$0xff]
    %v117 = vld [vmem:[#allocation5 + $0x18] sm:$0xff]
    %v118 = vld [vmem:[#allocation5 + $0x20] sm:$0xff]
    %v119 = vld [vmem:[#allocation5 + $0x28] sm:$0xff]
    %v120 = vld [vmem:[#allocation5 + $0x30] sm:$0xff]
    %v121 = vld [vmem:[#allocation5 + $0x38] sm:$0xff]
    %v122 = vld [vmem:[#allocation5 + $0x40] sm:$0xff]
    %v123 = vld [vmem:[#allocation5 + $0x48] sm:$0xff]
    %v124 = vld [vmem:[#allocation5 + $0x50] sm:$0xff]
    %v125 = vld [vmem:[#allocation5 + $0x58] sm:$0xff]
    %v126 = vld [vmem:[#allocation5 + $0x60] sm:$0xff]
    %v127 = vld [vmem:[#allocation5 + $0x68] sm:$0xff]
    %v128 = vld [vmem:[#allocation5 + $0x70] sm:$0xff]
    %v129 = vld [vmem:[#allocation5 + $0x78] sm:$0xff]
    %v130 = vld [vmem:[#allocation7] sm:$0xff]
    %v132 = vlaneseq
    %v133 = vshrl.u32 %v132, 7
    %v134 = vsub.s32 0, %v133
    %v135 = vrot.slane %v130, %v134
    %v136 = vlaneseq
    %v137 = vshrl.u32 %v136, 7
    %v138 = vsub.s32 1, %v137
    %v139 = vrot.slane %v130, %v138
    %v140 = vlaneseq
    %v141 = vshrl.u32 %v140, 7
    %v142 = vsub.s32 2, %v141
    %v143 = vrot.slane %v130, %v142
    %v144 = vlaneseq
    %v145 = vshrl.u32 %v144, 7
    %v146 = vsub.s32 3, %v145
    %v147 = vrot.slane %v130, %v146
    %v148 = vlaneseq
    %v149 = vshrl.u32 %v148, 7
    %v150 = vsub.s32 4, %v149
    %v151 = vrot.slane %v130, %v150
    %v152 = vlaneseq
    %v153 = vshrl.u32 %v152, 7
    %v154 = vsub.s32 5, %v153
    %v155 = vrot.slane %v130, %v154
    %v156 = vlaneseq
    %v157 = vshrl.u32 %v156, 7
    %v158 = vsub.s32 6, %v157
    %v159 = vrot.slane %v130, %v158
    %v160 = vlaneseq
    %v161 = vshrl.u32 %v160, 7
    %v162 = vsub.s32 7, %v161
    %v163 = vrot.slane %v130, %v162
    %v188 = vunpack.c.l.b16 %v114
    %v189 = vunpack.c.h.b16 %v114
    %v190 = vunpack.c.l.b16 %v115
    %v191 = vunpack.c.h.b16 %v115
    %v192 = vunpack.c.l.b16 %v116
    %v193 = vunpack.c.h.b16 %v116
    %v194 = vunpack.c.l.b16 %v117
    %v195 = vunpack.c.h.b16 %v117
    %v196 = vunpack.c.l.b16 %v118
    %v197 = vunpack.c.h.b16 %v118
    %v198 = vunpack.c.l.b16 %v119
    %v199 = vunpack.c.h.b16 %v119
    %v200 = vunpack.c.l.b16 %v120
    %v201 = vunpack.c.h.b16 %v120
    %v202 = vunpack.c.l.b16 %v121
    %v203 = vunpack.c.h.b16 %v121
    %v204 = vunpack.c.l.b16 %v122
    %v205 = vunpack.c.h.b16 %v122
    %v206 = vunpack.c.l.b16 %v123
    %v207 = vunpack.c.h.b16 %v123
    %v208 = vunpack.c.l.b16 %v124
    %v209 = vunpack.c.h.b16 %v124
    %v210 = vunpack.c.l.b16 %v125
    %v211 = vunpack.c.h.b16 %v125
    %v212 = vunpack.c.l.b16 %v126
    %v213 = vunpack.c.h.b16 %v126
    %v214 = vunpack.c.l.b16 %v127
    %v215 = vunpack.c.h.b16 %v127
    %v216 = vunpack.c.l.b16 %v128
    %v217 = vunpack.c.h.b16 %v128
    %v218 = vunpack.c.l.b16 %v129
    %v219 = vunpack.c.h.b16 %v129
    %v220 = vpack.c.b16 %v196, %v188
    %v221 = vpack.c.b16 %v197, %v189
    %v222 = vpack.c.b16 %v198, %v190
    %v223 = vpack.c.b16 %v199, %v191
    %v224 = vpack.c.b16 %v200, %v192
    %v225 = vpack.c.b16 %v201, %v193
    %v226 = vpack.c.b16 %v202, %v194
    %v227 = vpack.c.b16 %v203, %v195
    %v228 = vpack.c.b16 %v212, %v204
    %v229 = vpack.c.b16 %v213, %v205
    %v230 = vpack.c.b16 %v214, %v206
    %v231 = vpack.c.b16 %v215, %v207
    %v232 = vpack.c.b16 %v216, %v208
    %v233 = vpack.c.b16 %v217, %v209
    %v234 = vpack.c.b16 %v218, %v210
    %v235 = vpack.c.b16 %v219, %v211
    %vm252 = vcmask 261120
    %v254 = vsel %vm252, %v113, 0
    %256 = vmatprep.subr.bf16.mxu0 %v221
    %257 = vmatpush1.bf16.msra.mxu0 %v220
    %258 = vmatprep.subr.bf16.mxu0 %v229
    %259 = vmatpush1.bf16.msra.mxu0 %v228
    %260 = vmatprep.subr.bf16.mxu0 0
    %261 = vmatpush1.bf16.msra.mxu0 0
    %262 = vmatprep.subr.bf16.mxu0 0
    %263 = vmatpush1.bf16.msra.mxu0 0
    %264 = vmatprep.subr.bf16.mxu0 0
    %265 = vmatpush1.bf16.msra.mxu0 0
    %266 = vmatprep.subr.bf16.mxu0 0
    %267 = vmatpush1.bf16.msra.mxu0 0
    %268 = vmatprep.subr.bf16.mxu0 0
    %269 = vmatpush1.bf16.msra.mxu0 0
    %270 = vmatprep.subr.bf16.mxu0 0
    %271 = vmatpush1.bf16.msra.mxu0 0
    %272 = vmatprep.subr.bf16.mxu0 0
    %273 = vmatpush1.bf16.msra.mxu0 0
    %274 = vmatprep.subr.bf16.mxu0 0
    %275 = vmatpush1.bf16.msra.mxu0 0
    %276 = vmatprep.subr.bf16.mxu0 0
    %277 = vmatpush1.bf16.msra.mxu0 0
    %278 = vmatprep.subr.bf16.mxu0 0
    %279 = vmatpush1.bf16.msra.mxu0 0
    %280 = vmatprep.subr.bf16.mxu0 0
    %281 = vmatpush1.bf16.msra.mxu0 0
    %282 = vmatprep.subr.bf16.mxu0 0
    %283 = vmatpush1.bf16.msra.mxu0 0
    %284 = vmatprep.subr.bf16.mxu0 0
    %285 = vmatpush1.bf16.msra.mxu0 0
    %286 = vmatprep.subr.bf16.mxu0 0
    %287 = vmatpush1.bf16.msra.mxu0 0
    %288 = vmatprep.mubr.bf16.mxu0 0
    %289 = vmatmul.mubr.bf16.gmra.mrb[0].mxu0 %v254
    %v290 = vpop.f32.mrb[0].mxu0
    %v291 = vadd.f32 %v135, %v290
    %v292 = vpop.f32.mrb[0].mxu0
    %v293 = vadd.f32 %v139, %v292
    %v294 = vpop.f32.mrb[0].mxu0
    %v295 = vpop.f32.mrb[0].mxu0
    %296 = vdwg.mxu0
    %297 = vmatprep.subr.bf16.mxu0 %v223
    %298 = vmatpush1.bf16.msra.mxu0 %v222
    %299 = vmatprep.subr.bf16.mxu0 %v231
    %300 = vmatpush1.bf16.msra.mxu0 %v230
    %301 = vmatprep.subr.bf16.mxu0 0
    %302 = vmatpush1.bf16.msra.mxu0 0
    %303 = vmatprep.subr.bf16.mxu0 0
    %304 = vmatpush1.bf16.msra.mxu0 0
    %305 = vmatprep.subr.bf16.mxu0 0
    %306 = vmatpush1.bf16.msra.mxu0 0
    %307 = vmatprep.subr.bf16.mxu0 0
    %308 = vmatpush1.bf16.msra.mxu0 0
    %309 = vmatprep.subr.bf16.mxu0 0
    %310 = vmatpush1.bf16.msra.mxu0 0
    %311 = vmatprep.subr.bf16.mxu0 0
    %312 = vmatpush1.bf16.msra.mxu0 0
    %313 = vmatprep.subr.bf16.mxu0 0
    %314 = vmatpush1.bf16.msra.mxu0 0
    %315 = vmatprep.subr.bf16.mxu0 0
    %316 = vmatpush1.bf16.msra.mxu0 0
    %317 = vmatprep.subr.bf16.mxu0 0
    %318 = vmatpush1.bf16.msra.mxu0 0
    %319 = vmatprep.subr.bf16.mxu0 0
    %320 = vmatpush1.bf16.msra.mxu0 0
    %321 = vmatprep.subr.bf16.mxu0 0
    %322 = vmatpush1.bf16.msra.mxu0 0
    %323 = vmatprep.subr.bf16.mxu0 0
    %324 = vmatpush1.bf16.msra.mxu0 0
    %325 = vmatprep.subr.bf16.mxu0 0
    %326 = vmatpush1.bf16.msra.mxu0 0
    %327 = vmatprep.subr.bf16.mxu0 0
    %328 = vmatpush1.bf16.msra.mxu0 0
    %329 = vmatprep.mubr.bf16.mxu0 0
    %330 = vmatmul.mubr.bf16.gmra.mrb[0].mxu0 %v254
    %v331 = vpop.f32.mrb[0].mxu0
    %v332 = vadd.f32 %v143, %v331
    %v333 = vpop.f32.mrb[0].mxu0
    %v334 = vadd.f32 %v147, %v333
    %v335 = vpop.f32.mrb[0].mxu0
    %v336 = vpop.f32.mrb[0].mxu0
    %337 = vdwg.mxu0
    %338 = vmatprep.subr.bf16.mxu0 %v225
    %339 = vmatpush1.bf16.msra.mxu0 %v224
    %340 = vmatprep.subr.bf16.mxu0 %v233
    %341 = vmatpush1.bf16.msra.mxu0 %v232
    %342 = vmatprep.subr.bf16.mxu0 0
    %343 = vmatpush1.bf16.msra.mxu0 0
    %344 = vmatprep.subr.bf16.mxu0 0
    %345 = vmatpush1.bf16.msra.mxu0 0
    %346 = vmatprep.subr.bf16.mxu0 0
    %347 = vmatpush1.bf16.msra.mxu0 0
    %348 = vmatprep.subr.bf16.mxu0 0
    %349 = vmatpush1.bf16.msra.mxu0 0
    %350 = vmatprep.subr.bf16.mxu0 0
    %351 = vmatpush1.bf16.msra.mxu0 0
    %352 = vmatprep.subr.bf16.mxu0 0
    %353 = vmatpush1.bf16.msra.mxu0 0
    %354 = vmatprep.subr.bf16.mxu0 0
    %355 = vmatpush1.bf16.msra.mxu0 0
    %356 = vmatprep.subr.bf16.mxu0 0
    %357 = vmatpush1.bf16.msra.mxu0 0
    %358 = vmatprep.subr.bf16.mxu0 0
    %359 = vmatpush1.bf16.msra.mxu0 0
    %360 = vmatprep.subr.bf16.mxu0 0
    %361 = vmatpush1.bf16.msra.mxu0 0
    %362 = vmatprep.subr.bf16.mxu0 0
    %363 = vmatpush1.bf16.msra.mxu0 0
    %364 = vmatprep.subr.bf16.mxu0 0
    %365 = vmatpush1.bf16.msra.mxu0 0
    %366 = vmatprep.subr.bf16.mxu0 0
    %367 = vmatpush1.bf16.msra.mxu0 0
    %368 = vmatprep.subr.bf16.mxu0 0
    %369 = vmatpush1.bf16.msra.mxu0 0
    %370 = vmatprep.mubr.bf16.mxu0 0
    %371 = vmatmul.mubr.bf16.gmra.mrb[0].mxu0 %v254
    %v372 = vpop.f32.mrb[0].mxu0
    %v373 = vadd.f32 %v151, %v372
    %v374 = vpop.f32.mrb[0].mxu0
    %v375 = vadd.f32 %v155, %v374
    %v376 = vpop.f32.mrb[0].mxu0
    %v377 = vpop.f32.mrb[0].mxu0
    %378 = vdwg.mxu0
    %379 = vmatprep.subr.bf16.mxu0 %v227
    %380 = vmatpush1.bf16.msra.mxu0 %v226
    %381 = vmatprep.subr.bf16.mxu0 %v235
    %382 = vmatpush1.bf16.msra.mxu0 %v234
    %383 = vmatprep.subr.bf16.mxu0 0
    %384 = vmatpush1.bf16.msra.mxu0 0
    %385 = vmatprep.subr.bf16.mxu0 0
    %386 = vmatpush1.bf16.msra.mxu0 0
    %387 = vmatprep.subr.bf16.mxu0 0
    %388 = vmatpush1.bf16.msra.mxu0 0
    %389 = vmatprep.subr.bf16.mxu0 0
    %390 = vmatpush1.bf16.msra.mxu0 0
    %391 = vmatprep.subr.bf16.mxu0 0
    %392 = vmatpush1.bf16.msra.mxu0 0
    %393 = vmatprep.subr.bf16.mxu0 0
    %394 = vmatpush1.bf16.msra.mxu0 0
    %395 = vmatprep.subr.bf16.mxu0 0
    %396 = vmatpush1.bf16.msra.mxu0 0
    %397 = vmatprep.subr.bf16.mxu0 0
    %398 = vmatpush1.bf16.msra.mxu0 0
    %399 = vmatprep.subr.bf16.mxu0 0
    %400 = vmatpush1.bf16.msra.mxu0 0
    %401 = vmatprep.subr.bf16.mxu0 0
    %402 = vmatpush1.bf16.msra.mxu0 0
    %403 = vmatprep.subr.bf16.mxu0 0
    %404 = vmatpush1.bf16.msra.mxu0 0
    %405 = vmatprep.subr.bf16.mxu0 0
    %406 = vmatpush1.bf16.msra.mxu0 0
    %407 = vmatprep.subr.bf16.mxu0 0
    %408 = vmatpush1.bf16.msra.mxu0 0
    %409 = vmatprep.subr.bf16.mxu0 0
    %410 = vmatpush1.bf16.msra.mxu0 0
    %411 = vmatprep.mubr.bf16.mxu0 0
    %412 = vmatmul.mubr.bf16.gmra.mrb[0].mxu0 %v254
    %v413 = vpop.f32.mrb[0].mxu0
    %v414 = vadd.f32 %v159, %v413
    %v415 = vpop.f32.mrb[0].mxu0
    %v416 = vadd.f32 %v163, %v415
    %v417 = vpop.f32.mrb[0].mxu0
    %v418 = vpop.f32.mrb[0].mxu0
    %419 = vdwg.mxu0
    %v420 = vmax.f32 %v291, 0.0
    %v421 = vmax.f32 %v293, 0.0
    %v422 = vmax.f32 %v332, 0.0
    %v423 = vmax.f32 %v334, 0.0
    %v424 = vmax.f32 %v373, 0.0
    %v425 = vmax.f32 %v375, 0.0
    %v426 = vmax.f32 %v414, 0.0
    %v427 = vmax.f32 %v416, 0.0
    %v428 = vpack.c.bf16 %v420, %v420
    %v429 = vpack.c.bf16 %v421, %v421
    %v430 = vpack.c.bf16 %v422, %v422
    %v431 = vpack.c.bf16 %v423, %v423
    %v432 = vpack.c.bf16 %v424, %v424
    %v433 = vpack.c.bf16 %v425, %v425
    %v434 = vpack.c.bf16 %v426, %v426
    %v435 = vpack.c.bf16 %v427, %v427
    %v436 = vld [vmem:[#allocation8] sm:$0xff]
    %v437 = vld [vmem:[#allocation8 + $0x8] sm:$0xff]
    %v438 = vld [vmem:[#allocation8 + $0x10] sm:$0xff]
    %v439 = vld [vmem:[#allocation8 + $0x18] sm:$0xff]
    %v440 = vld [vmem:[#allocation8 + $0x20] sm:$0xff]
    %v441 = vld [vmem:[#allocation8 + $0x28] sm:$0xff]
    %v442 = vld [vmem:[#allocation8 + $0x30] sm:$0xff]
    %v443 = vld [vmem:[#allocation8 + $0x38] sm:$0xff]
    %v444 = vld [vmem:[#allocation8 + $0x40] sm:$0xff]
    %v445 = vld [vmem:[#allocation8 + $0x48] sm:$0xff]
    %v446 = vld [vmem:[#allocation8 + $0x50] sm:$0xff]
    %v447 = vld [vmem:[#allocation8 + $0x58] sm:$0xff]
    %v448 = vld [vmem:[#allocation8 + $0x60] sm:$0xff]
    %v449 = vld [vmem:[#allocation8 + $0x68] sm:$0xff]
    %v450 = vld [vmem:[#allocation8 + $0x70] sm:$0xff]
    %v451 = vld [vmem:[#allocation8 + $0x78] sm:$0xff]
    %v452 = vld [vmem:[#allocation8 + $0x80] sm:$0xff]
    %v453 = vld [vmem:[#allocation8 + $0x88] sm:$0xff]
    %v454 = vld [vmem:[#allocation8 + $0x90] sm:$0xff]
    %v455 = vld [vmem:[#allocation8 + $0x98] sm:$0xff]
    %v456 = vld [vmem:[#allocation8 + $0xa0] sm:$0xff]
    %v457 = vld [vmem:[#allocation8 + $0xa8] sm:$0xff]
    %v458 = vld [vmem:[#allocation8 + $0xb0] sm:$0xff]
    %v459 = vld [vmem:[#allocation8 + $0xb8] sm:$0xff]
    %v460 = vld [vmem:[#allocation8 + $0xc0] sm:$0xff]
    %v461 = vld [vmem:[#allocation8 + $0xc8] sm:$0xff]
    %v462 = vld [vmem:[#allocation8 + $0xd0] sm:$0xff]
    %v463 = vld [vmem:[#allocation8 + $0xd8] sm:$0xff]
    %v464 = vld [vmem:[#allocation8 + $0xe0] sm:$0xff]
    %v465 = vld [vmem:[#allocation8 + $0xe8] sm:$0xff]
    %v466 = vld [vmem:[#allocation8 + $0xf0] sm:$0xff]
    %v467 = vld [vmem:[#allocation8 + $0xf8] sm:$0xff]
    %v468 = vld [vmem:[#allocation8 + $0x100] sm:$0xff]
    %v469 = vld [vmem:[#allocation8 + $0x108] sm:$0xff]
    %v470 = vld [vmem:[#allocation8 + $0x110] sm:$0xff]
    %v471 = vld [vmem:[#allocation8 + $0x118] sm:$0xff]
    %v472 = vld [vmem:[#allocation8 + $0x120] sm:$0xff]
    %v473 = vld [vmem:[#allocation8 + $0x128] sm:$0xff]
    %v474 = vld [vmem:[#allocation8 + $0x130] sm:$0xff]
    %v475 = vld [vmem:[#allocation8 + $0x138] sm:$0xff]
    %v476 = vld [vmem:[#allocation8 + $0x140] sm:$0xff]
    %v477 = vld [vmem:[#allocation8 + $0x148] sm:$0xff]
    %v478 = vld [vmem:[#allocation8 + $0x150] sm:$0xff]
    %v479 = vld [vmem:[#allocation8 + $0x158] sm:$0xff]
    %v480 = vld [vmem:[#allocation8 + $0x160] sm:$0xff]
    %v481 = vld [vmem:[#allocation8 + $0x168] sm:$0xff]
    %v482 = vld [vmem:[#allocation8 + $0x170] sm:$0xff]
    %v483 = vld [vmem:[#allocation8 + $0x178] sm:$0xff]
    %v484 = vld [vmem:[#allocation8 + $0x180] sm:$0xff]
    %v485 = vld [vmem:[#allocation8 + $0x188] sm:$0xff]
    %v486 = vld [vmem:[#allocation8 + $0x190] sm:$0xff]
    %v487 = vld [vmem:[#allocation8 + $0x198] sm:$0xff]
    %v488 = vld [vmem:[#allocation8 + $0x1a0] sm:$0xff]
    %v489 = vld [vmem:[#allocation8 + $0x1a8] sm:$0xff]
    %v490 = vld [vmem:[#allocation8 + $0x1b0] sm:$0xff]
    %v491 = vld [vmem:[#allocation8 + $0x1b8] sm:$0xff]
    %v492 = vld [vmem:[#allocation8 + $0x1c0] sm:$0xff]
    %v493 = vld [vmem:[#allocation8 + $0x1c8] sm:$0xff]
    %v494 = vld [vmem:[#allocation8 + $0x1d0] sm:$0xff]
    %v495 = vld [vmem:[#allocation8 + $0x1d8] sm:$0xff]
    %v496 = vld [vmem:[#allocation8 + $0x1e0] sm:$0xff]
    %v497 = vld [vmem:[#allocation8 + $0x1e8] sm:$0xff]
    %v498 = vld [vmem:[#allocation8 + $0x1f0] sm:$0xff]
    %v499 = vld [vmem:[#allocation8 + $0x1f8] sm:$0xff]
    %v500 = vld [vmem:[#allocation8 + $0x200] sm:$0xff]
    %v501 = vld [vmem:[#allocation8 + $0x208] sm:$0xff]
    %v502 = vld [vmem:[#allocation8 + $0x210] sm:$0xff]
    %v503 = vld [vmem:[#allocation8 + $0x218] sm:$0xff]
    %v504 = vld [vmem:[#allocation8 + $0x220] sm:$0xff]
    %v505 = vld [vmem:[#allocation8 + $0x228] sm:$0xff]
    %v506 = vld [vmem:[#allocation8 + $0x230] sm:$0xff]
    %v507 = vld [vmem:[#allocation8 + $0x238] sm:$0xff]
    %v508 = vld [vmem:[#allocation8 + $0x240] sm:$0xff]
    %v509 = vld [vmem:[#allocation8 + $0x248] sm:$0xff]
    %v510 = vld [vmem:[#allocation8 + $0x250] sm:$0xff]
    %v511 = vld [vmem:[#allocation8 + $0x258] sm:$0xff]
    %v512 = vld [vmem:[#allocation8 + $0x260] sm:$0xff]
    %v513 = vld [vmem:[#allocation8 + $0x268] sm:$0xff]
    %v514 = vld [vmem:[#allocation8 + $0x270] sm:$0xff]
    %v515 = vld [vmem:[#allocation8 + $0x278] sm:$0xff]
    %v516 = vld [vmem:[#allocation8 + $0x280] sm:$0xff]
    %v517 = vld [vmem:[#allocation8 + $0x288] sm:$0xff]
    %v518 = vld [vmem:[#allocation8 + $0x290] sm:$0xff]
    %v519 = vld [vmem:[#allocation8 + $0x298] sm:$0xff]
    %v520 = vld [vmem:[#allocation8 + $0x2a0] sm:$0xff]
    %v521 = vld [vmem:[#allocation8 + $0x2a8] sm:$0xff]
    %v522 = vld [vmem:[#allocation8 + $0x2b0] sm:$0xff]
    %v523 = vld [vmem:[#allocation8 + $0x2b8] sm:$0xff]
    %v524 = vld [vmem:[#allocation8 + $0x2c0] sm:$0xff]
    %v525 = vld [vmem:[#allocation8 + $0x2c8] sm:$0xff]
    %v526 = vld [vmem:[#allocation8 + $0x2d0] sm:$0xff]
    %v527 = vld [vmem:[#allocation8 + $0x2d8] sm:$0xff]
    %v528 = vld [vmem:[#allocation8 + $0x2e0] sm:$0xff]
    %v529 = vld [vmem:[#allocation8 + $0x2e8] sm:$0xff]
    %v530 = vld [vmem:[#allocation8 + $0x2f0] sm:$0xff]
    %v531 = vld [vmem:[#allocation8 + $0x2f8] sm:$0xff]
    %v532 = vld [vmem:[#allocation8 + $0x300] sm:$0xff]
    %v533 = vld [vmem:[#allocation8 + $0x308] sm:$0xff]
    %v534 = vld [vmem:[#allocation8 + $0x310] sm:$0xff]
    %v535 = vld [vmem:[#allocation8 + $0x318] sm:$0xff]
    %v536 = vld [vmem:[#allocation8 + $0x320] sm:$0xff]
    %v537 = vld [vmem:[#allocation8 + $0x328] sm:$0xff]
    %v538 = vld [vmem:[#allocation8 + $0x330] sm:$0xff]
    %v539 = vld [vmem:[#allocation8 + $0x338] sm:$0xff]
    %v540 = vld [vmem:[#allocation8 + $0x340] sm:$0xff]
    %v541 = vld [vmem:[#allocation8 + $0x348] sm:$0xff]
    %v542 = vld [vmem:[#allocation8 + $0x350] sm:$0xff]
    %v543 = vld [vmem:[#allocation8 + $0x358] sm:$0xff]
    %v544 = vld [vmem:[#allocation8 + $0x360] sm:$0xff]
    %v545 = vld [vmem:[#allocation8 + $0x368] sm:$0xff]
    %v546 = vld [vmem:[#allocation8 + $0x370] sm:$0xff]
    %v547 = vld [vmem:[#allocation8 + $0x378] sm:$0xff]
    %v548 = vld [vmem:[#allocation8 + $0x380] sm:$0xff]
    %v549 = vld [vmem:[#allocation8 + $0x388] sm:$0xff]
    %v550 = vld [vmem:[#allocation8 + $0x390] sm:$0xff]
    %v551 = vld [vmem:[#allocation8 + $0x398] sm:$0xff]
    %v552 = vld [vmem:[#allocation8 + $0x3a0] sm:$0xff]
    %v553 = vld [vmem:[#allocation8 + $0x3a8] sm:$0xff]
    %v554 = vld [vmem:[#allocation8 + $0x3b0] sm:$0xff]
    %v555 = vld [vmem:[#allocation8 + $0x3b8] sm:$0xff]
    %v556 = vld [vmem:[#allocation8 + $0x3c0] sm:$0xff]
    %v557 = vld [vmem:[#allocation8 + $0x3c8] sm:$0xff]
    %v558 = vld [vmem:[#allocation8 + $0x3d0] sm:$0xff]
    %v559 = vld [vmem:[#allocation8 + $0x3d8] sm:$0xff]
    %v560 = vld [vmem:[#allocation8 + $0x3e0] sm:$0xff]
    %v561 = vld [vmem:[#allocation8 + $0x3e8] sm:$0xff]
    %v562 = vld [vmem:[#allocation8 + $0x3f0] sm:$0xff]
    %v563 = vld [vmem:[#allocation8 + $0x3f8] sm:$0xff]
    %v564 = vld [vmem:[#allocation8 + $0x400] sm:$0xff]
    %v565 = vld [vmem:[#allocation8 + $0x408] sm:$0xff]
    %v566 = vld [vmem:[#allocation8 + $0x410] sm:$0xff]
    %v567 = vld [vmem:[#allocation8 + $0x418] sm:$0xff]
    %v568 = vld [vmem:[#allocation8 + $0x420] sm:$0xff]
    %v569 = vld [vmem:[#allocation8 + $0x428] sm:$0xff]
    %v570 = vld [vmem:[#allocation8 + $0x430] sm:$0xff]
    %v571 = vld [vmem:[#allocation8 + $0x438] sm:$0xff]
    %v572 = vld [vmem:[#allocation8 + $0x440] sm:$0xff]
    %v573 = vld [vmem:[#allocation8 + $0x448] sm:$0xff]
    %v574 = vld [vmem:[#allocation8 + $0x450] sm:$0xff]
    %v575 = vld [vmem:[#allocation8 + $0x458] sm:$0xff]
    %v576 = vld [vmem:[#allocation8 + $0x460] sm:$0xff]
    %v577 = vld [vmem:[#allocation8 + $0x468] sm:$0xff]
    %v578 = vld [vmem:[#allocation8 + $0x470] sm:$0xff]
    %v579 = vld [vmem:[#allocation8 + $0x478] sm:$0xff]
    %v580 = vld [vmem:[#allocation8 + $0x480] sm:$0xff]
    %v581 = vld [vmem:[#allocation8 + $0x488] sm:$0xff]
    %v582 = vld [vmem:[#allocation8 + $0x490] sm:$0xff]
    %v583 = vld [vmem:[#allocation8 + $0x498] sm:$0xff]
    %v584 = vld [vmem:[#allocation8 + $0x4a0] sm:$0xff]
    %v585 = vld [vmem:[#allocation8 + $0x4a8] sm:$0xff]
    %v586 = vld [vmem:[#allocation8 + $0x4b0] sm:$0xff]
    %v587 = vld [vmem:[#allocation8 + $0x4b8] sm:$0xff]
    %v588 = vld [vmem:[#allocation8 + $0x4c0] sm:$0xff]
    %v589 = vld [vmem:[#allocation8 + $0x4c8] sm:$0xff]
    %v590 = vld [vmem:[#allocation8 + $0x4d0] sm:$0xff]
    %v591 = vld [vmem:[#allocation8 + $0x4d8] sm:$0xff]
    %v592 = vld [vmem:[#allocation8 + $0x4e0] sm:$0xff]
    %v593 = vld [vmem:[#allocation8 + $0x4e8] sm:$0xff]
    %v594 = vld [vmem:[#allocation8 + $0x4f0] sm:$0xff]
    %v595 = vld [vmem:[#allocation8 + $0x4f8] sm:$0xff]
    %v596 = vld [vmem:[#allocation8 + $0x500] sm:$0xff]
    %v597 = vld [vmem:[#allocation8 + $0x508] sm:$0xff]
    %v598 = vld [vmem:[#allocation8 + $0x510] sm:$0xff]
    %v599 = vld [vmem:[#allocation8 + $0x518] sm:$0xff]
    %v600 = vld [vmem:[#allocation8 + $0x520] sm:$0xff]
    %v601 = vld [vmem:[#allocation8 + $0x528] sm:$0xff]
    %v602 = vld [vmem:[#allocation8 + $0x530] sm:$0xff]
    %v603 = vld [vmem:[#allocation8 + $0x538] sm:$0xff]
    %v604 = vld [vmem:[#allocation8 + $0x540] sm:$0xff]
    %v605 = vld [vmem:[#allocation8 + $0x548] sm:$0xff]
    %v606 = vld [vmem:[#allocation8 + $0x550] sm:$0xff]
    %v607 = vld [vmem:[#allocation8 + $0x558] sm:$0xff]
    %v608 = vld [vmem:[#allocation8 + $0x560] sm:$0xff]
    %v609 = vld [vmem:[#allocation8 + $0x568] sm:$0xff]
    %v610 = vld [vmem:[#allocation8 + $0x570] sm:$0xff]
    %v611 = vld [vmem:[#allocation8 + $0x578] sm:$0xff]
    %v612 = vld [vmem:[#allocation8 + $0x580] sm:$0xff]
    %v613 = vld [vmem:[#allocation8 + $0x588] sm:$0xff]
    %v614 = vld [vmem:[#allocation8 + $0x590] sm:$0xff]
    %v615 = vld [vmem:[#allocation8 + $0x598] sm:$0xff]
    %v616 = vld [vmem:[#allocation8 + $0x5a0] sm:$0xff]
    %v617 = vld [vmem:[#allocation8 + $0x5a8] sm:$0xff]
    %v618 = vld [vmem:[#allocation8 + $0x5b0] sm:$0xff]
    %v619 = vld [vmem:[#allocation8 + $0x5b8] sm:$0xff]
    %v620 = vld [vmem:[#allocation8 + $0x5c0] sm:$0xff]
    %v621 = vld [vmem:[#allocation8 + $0x5c8] sm:$0xff]
    %v622 = vld [vmem:[#allocation8 + $0x5d0] sm:$0xff]
    %v623 = vld [vmem:[#allocation8 + $0x5d8] sm:$0xff]
    %v624 = vld [vmem:[#allocation8 + $0x5e0] sm:$0xff]
    %v625 = vld [vmem:[#allocation8 + $0x5e8] sm:$0xff]
    %v626 = vld [vmem:[#allocation8 + $0x5f0] sm:$0xff]
    %v627 = vld [vmem:[#allocation8 + $0x5f8] sm:$0xff]
    %v628 = vld [vmem:[#allocation8 + $0x600] sm:$0xff]
    %v629 = vld [vmem:[#allocation8 + $0x608] sm:$0xff]
    %v630 = vld [vmem:[#allocation8 + $0x610] sm:$0xff]
    %v631 = vld [vmem:[#allocation8 + $0x618] sm:$0xff]
    %v632 = vld [vmem:[#allocation8 + $0x620] sm:$0xff]
    %v633 = vld [vmem:[#allocation8 + $0x628] sm:$0xff]
    %v634 = vld [vmem:[#allocation8 + $0x630] sm:$0xff]
    %v635 = vld [vmem:[#allocation8 + $0x638] sm:$0xff]
    %v636 = vld [vmem:[#allocation8 + $0x640] sm:$0xff]
    %v637 = vld [vmem:[#allocation8 + $0x648] sm:$0xff]
    %v638 = vld [vmem:[#allocation8 + $0x650] sm:$0xff]
    %v639 = vld [vmem:[#allocation8 + $0x658] sm:$0xff]
    %v640 = vld [vmem:[#allocation8 + $0x660] sm:$0xff]
    %v641 = vld [vmem:[#allocation8 + $0x668] sm:$0xff]
    %v642 = vld [vmem:[#allocation8 + $0x670] sm:$0xff]
    %v643 = vld [vmem:[#allocation8 + $0x678] sm:$0xff]
    %v644 = vld [vmem:[#allocation8 + $0x680] sm:$0xff]
    %v645 = vld [vmem:[#allocation8 + $0x688] sm:$0xff]
    %v646 = vld [vmem:[#allocation8 + $0x690] sm:$0xff]
    %v647 = vld [vmem:[#allocation8 + $0x698] sm:$0xff]
    %v648 = vld [vmem:[#allocation8 + $0x6a0] sm:$0xff]
    %v649 = vld [vmem:[#allocation8 + $0x6a8] sm:$0xff]
    %v650 = vld [vmem:[#allocation8 + $0x6b0] sm:$0xff]
    %v651 = vld [vmem:[#allocation8 + $0x6b8] sm:$0xff]
    %v652 = vld [vmem:[#allocation8 + $0x6c0] sm:$0xff]
    %v653 = vld [vmem:[#allocation8 + $0x6c8] sm:$0xff]
    %v654 = vld [vmem:[#allocation8 + $0x6d0] sm:$0xff]
    %v655 = vld [vmem:[#allocation8 + $0x6d8] sm:$0xff]
    %v656 = vld [vmem:[#allocation8 + $0x6e0] sm:$0xff]
    %v657 = vld [vmem:[#allocation8 + $0x6e8] sm:$0xff]
    %v658 = vld [vmem:[#allocation8 + $0x6f0] sm:$0xff]
    %v659 = vld [vmem:[#allocation8 + $0x6f8] sm:$0xff]
    %v660 = vld [vmem:[#allocation8 + $0x700] sm:$0xff]
    %v661 = vld [vmem:[#allocation8 + $0x708] sm:$0xff]
    %v662 = vld [vmem:[#allocation8 + $0x710] sm:$0xff]
    %v663 = vld [vmem:[#allocation8 + $0x718] sm:$0xff]
    %v664 = vld [vmem:[#allocation8 + $0x720] sm:$0xff]
    %v665 = vld [vmem:[#allocation8 + $0x728] sm:$0xff]
    %v666 = vld [vmem:[#allocation8 + $0x730] sm:$0xff]
    %v667 = vld [vmem:[#allocation8 + $0x738] sm:$0xff]
    %v668 = vld [vmem:[#allocation8 + $0x740] sm:$0xff]
    %v669 = vld [vmem:[#allocation8 + $0x748] sm:$0xff]
    %v670 = vld [vmem:[#allocation8 + $0x750] sm:$0xff]
    %v671 = vld [vmem:[#allocation8 + $0x758] sm:$0xff]
    %v672 = vld [vmem:[#allocation8 + $0x760] sm:$0xff]
    %v673 = vld [vmem:[#allocation8 + $0x768] sm:$0xff]
    %v674 = vld [vmem:[#allocation8 + $0x770] sm:$0xff]
    %v675 = vld [vmem:[#allocation8 + $0x778] sm:$0xff]
    %v676 = vld [vmem:[#allocation8 + $0x780] sm:$0xff]
    %v677 = vld [vmem:[#allocation8 + $0x788] sm:$0xff]
    %v678 = vld [vmem:[#allocation8 + $0x790] sm:$0xff]
    %v679 = vld [vmem:[#allocation8 + $0x798] sm:$0xff]
    %v680 = vld [vmem:[#allocation8 + $0x7a0] sm:$0xff]
    %v681 = vld [vmem:[#allocation8 + $0x7a8] sm:$0xff]
    %v682 = vld [vmem:[#allocation8 + $0x7b0] sm:$0xff]
    %v683 = vld [vmem:[#allocation8 + $0x7b8] sm:$0xff]
    %v684 = vld [vmem:[#allocation8 + $0x7c0] sm:$0xff]
    %v685 = vld [vmem:[#allocation8 + $0x7c8] sm:$0xff]
    %v686 = vld [vmem:[#allocation8 + $0x7d0] sm:$0xff]
    %v687 = vld [vmem:[#allocation8 + $0x7d8] sm:$0xff]
    %v688 = vld [vmem:[#allocation8 + $0x7e0] sm:$0xff]
    %v689 = vld [vmem:[#allocation8 + $0x7e8] sm:$0xff]
    %v690 = vld [vmem:[#allocation8 + $0x7f0] sm:$0xff]
    %v691 = vld [vmem:[#allocation8 + $0x7f8] sm:$0xff]
    %v692 = vld [vmem:[%s4] sm:$0xf]
    %v694 = vlaneseq
    %v695 = vshrl.u32 %v694, 7
    %v696 = vsub.s32 0, %v695
    %v697 = vrot.slane %v692, %v696
    %v698 = vlaneseq
    %v699 = vshrl.u32 %v698, 7
    %v700 = vsub.s32 1, %v699
    %v701 = vrot.slane %v692, %v700
    %v702 = vlaneseq
    %v703 = vshrl.u32 %v702, 7
    %v704 = vsub.s32 2, %v703
    %v705 = vrot.slane %v692, %v704
    %v706 = vlaneseq
    %v707 = vshrl.u32 %v706, 7
    %v708 = vsub.s32 3, %v707
    %v709 = vrot.slane %v692, %v708
    %v970 = vunpack.c.l.b16 %v436
    %v971 = vunpack.c.h.b16 %v436
    %v972 = vunpack.c.l.b16 %v437
    %v973 = vunpack.c.h.b16 %v437
    %v974 = vunpack.c.l.b16 %v438
    %v975 = vunpack.c.h.b16 %v438
    %v976 = vunpack.c.l.b16 %v439
    %v977 = vunpack.c.h.b16 %v439
    %v978 = vunpack.c.l.b16 %v440
    %v979 = vunpack.c.h.b16 %v440
    %v980 = vunpack.c.l.b16 %v441
    %v981 = vunpack.c.h.b16 %v441
    %v982 = vunpack.c.l.b16 %v442
    %v983 = vunpack.c.h.b16 %v442
    %v984 = vunpack.c.l.b16 %v443
    %v985 = vunpack.c.h.b16 %v443
    %v986 = vunpack.c.l.b16 %v444
    %v987 = vunpack.c.h.b16 %v444
    %v988 = vunpack.c.l.b16 %v445
    %v989 = vunpack.c.h.b16 %v445
    %v990 = vunpack.c.l.b16 %v446
    %v991 = vunpack.c.h.b16 %v446
    %v992 = vunpack.c.l.b16 %v447
    %v993 = vunpack.c.h.b16 %v447
    %v994 = vunpack.c.l.b16 %v448
    %v995 = vunpack.c.h.b16 %v448
    %v996 = vunpack.c.l.b16 %v449
    %v997 = vunpack.c.h.b16 %v449
    %v998 = vunpack.c.l.b16 %v450
    %v999 = vunpack.c.h.b16 %v450
    %v1000 = vunpack.c.l.b16 %v451
    %v1001 = vunpack.c.h.b16 %v451
    %v1002 = vunpack.c.l.b16 %v452
    %v1003 = vunpack.c.h.b16 %v452
    %v1004 = vunpack.c.l.b16 %v453
    %v1005 = vunpack.c.h.b16 %v453
    %v1006 = vunpack.c.l.b16 %v454
    %v1007 = vunpack.c.h.b16 %v454
    %v1008 = vunpack.c.l.b16 %v455
    %v1009 = vunpack.c.h.b16 %v455
    %v1010 = vunpack.c.l.b16 %v456
    %v1011 = vunpack.c.h.b16 %v456
    %v1012 = vunpack.c.l.b16 %v457
    %v1013 = vunpack.c.h.b16 %v457
    %v1014 = vunpack.c.l.b16 %v458
    %v1015 = vunpack.c.h.b16 %v458
    %v1016 = vunpack.c.l.b16 %v459
    %v1017 = vunpack.c.h.b16 %v459
    %v1018 = vunpack.c.l.b16 %v460
    %v1019 = vunpack.c.h.b16 %v460
    %v1020 = vunpack.c.l.b16 %v461
    %v1021 = vunpack.c.h.b16 %v461
    %v1022 = vunpack.c.l.b16 %v462
    %v1023 = vunpack.c.h.b16 %v462
    %v1024 = vunpack.c.l.b16 %v463
    %v1025 = vunpack.c.h.b16 %v463
    %v1026 = vunpack.c.l.b16 %v464
    %v1027 = vunpack.c.h.b16 %v464
    %v1028 = vunpack.c.l.b16 %v465
    %v1029 = vunpack.c.h.b16 %v465
    %v1030 = vunpack.c.l.b16 %v466
    %v1031 = vunpack.c.h.b16 %v466
    %v1032 = vunpack.c.l.b16 %v467
    %v1033 = vunpack.c.h.b16 %v467
    %v1034 = vunpack.c.l.b16 %v468
    %v1035 = vunpack.c.h.b16 %v468
    %v1036 = vunpack.c.l.b16 %v469
    %v1037 = vunpack.c.h.b16 %v469
    %v1038 = vunpack.c.l.b16 %v470
    %v1039 = vunpack.c.h.b16 %v470
    %v1040 = vunpack.c.l.b16 %v471
    %v1041 = vunpack.c.h.b16 %v471
    %v1042 = vunpack.c.l.b16 %v472
    %v1043 = vunpack.c.h.b16 %v472
    %v1044 = vunpack.c.l.b16 %v473
    %v1045 = vunpack.c.h.b16 %v473
    %v1046 = vunpack.c.l.b16 %v474
    %v1047 = vunpack.c.h.b16 %v474
    %v1048 = vunpack.c.l.b16 %v475
    %v1049 = vunpack.c.h.b16 %v475
    %v1050 = vunpack.c.l.b16 %v476
    %v1051 = vunpack.c.h.b16 %v476
    %v1052 = vunpack.c.l.b16 %v477
    %v1053 = vunpack.c.h.b16 %v477
    %v1054 = vunpack.c.l.b16 %v478
    %v1055 = vunpack.c.h.b16 %v478
    %v1056 = vunpack.c.l.b16 %v479
    %v1057 = vunpack.c.h.b16 %v479
    %v1058 = vunpack.c.l.b16 %v480
    %v1059 = vunpack.c.h.b16 %v480
    %v1060 = vunpack.c.l.b16 %v481
    %v1061 = vunpack.c.h.b16 %v481
    %v1062 = vunpack.c.l.b16 %v482
    %v1063 = vunpack.c.h.b16 %v482
    %v1064 = vunpack.c.l.b16 %v483
    %v1065 = vunpack.c.h.b16 %v483
    %v1066 = vunpack.c.l.b16 %v484
    %v1067 = vunpack.c.h.b16 %v484
    %v1068 = vunpack.c.l.b16 %v485
    %v1069 = vunpack.c.h.b16 %v485
    %v1070 = vunpack.c.l.b16 %v486
    %v1071 = vunpack.c.h.b16 %v486
    %v1072 = vunpack.c.l.b16 %v487
    %v1073 = vunpack.c.h.b16 %v487
    %v1074 = vunpack.c.l.b16 %v488
    %v1075 = vunpack.c.h.b16 %v488
    %v1076 = vunpack.c.l.b16 %v489
    %v1077 = vunpack.c.h.b16 %v489
    %v1078 = vunpack.c.l.b16 %v490
    %v1079 = vunpack.c.h.b16 %v490
    %v1080 = vunpack.c.l.b16 %v491
    %v1081 = vunpack.c.h.b16 %v491
    %v1082 = vunpack.c.l.b16 %v492
    %v1083 = vunpack.c.h.b16 %v492
    %v1084 = vunpack.c.l.b16 %v493
    %v1085 = vunpack.c.h.b16 %v493
    %v1086 = vunpack.c.l.b16 %v494
    %v1087 = vunpack.c.h.b16 %v494
    %v1088 = vunpack.c.l.b16 %v495
    %v1089 = vunpack.c.h.b16 %v495
    %v1090 = vunpack.c.l.b16 %v496
    %v1091 = vunpack.c.h.b16 %v496
    %v1092 = vunpack.c.l.b16 %v497
    %v1093 = vunpack.c.h.b16 %v497
    %v1094 = vunpack.c.l.b16 %v498
    %v1095 = vunpack.c.h.b16 %v498
    %v1096 = vunpack.c.l.b16 %v499
    %v1097 = vunpack.c.h.b16 %v499
    %v1098 = vunpack.c.l.b16 %v500
    %v1099 = vunpack.c.h.b16 %v500
    %v1100 = vunpack.c.l.b16 %v501
    %v1101 = vunpack.c.h.b16 %v501
    %v1102 = vunpack.c.l.b16 %v502
    %v1103 = vunpack.c.h.b16 %v502
    %v1104 = vunpack.c.l.b16 %v503
    %v1105 = vunpack.c.h.b16 %v503
    %v1106 = vunpack.c.l.b16 %v504
    %v1107 = vunpack.c.h.b16 %v504
    %v1108 = vunpack.c.l.b16 %v505
    %v1109 = vunpack.c.h.b16 %v505
    %v1110 = vunpack.c.l.b16 %v506
    %v1111 = vunpack.c.h.b16 %v506
    %v1112 = vunpack.c.l.b16 %v507
    %v1113 = vunpack.c.h.b16 %v507
    %v1114 = vunpack.c.l.b16 %v508
    %v1115 = vunpack.c.h.b16 %v508
    %v1116 = vunpack.c.l.b16 %v509
    %v1117 = vunpack.c.h.b16 %v509
    %v1118 = vunpack.c.l.b16 %v510
    %v1119 = vunpack.c.h.b16 %v510
    %v1120 = vunpack.c.l.b16 %v511
    %v1121 = vunpack.c.h.b16 %v511
    %v1122 = vunpack.c.l.b16 %v512
    %v1123 = vunpack.c.h.b16 %v512
    %v1124 = vunpack.c.l.b16 %v513
    %v1125 = vunpack.c.h.b16 %v513
    %v1126 = vunpack.c.l.b16 %v514
    %v1127 = vunpack.c.h.b16 %v514
    %v1128 = vunpack.c.l.b16 %v515
    %v1129 = vunpack.c.h.b16 %v515
    %v1130 = vunpack.c.l.b16 %v516
    %v1131 = vunpack.c.h.b16 %v516
    %v1132 = vunpack.c.l.b16 %v517
    %v1133 = vunpack.c.h.b16 %v517
    %v1134 = vunpack.c.l.b16 %v518
    %v1135 = vunpack.c.h.b16 %v518
    %v1136 = vunpack.c.l.b16 %v519
    %v1137 = vunpack.c.h.b16 %v519
    %v1138 = vunpack.c.l.b16 %v520
    %v1139 = vunpack.c.h.b16 %v520
    %v1140 = vunpack.c.l.b16 %v521
    %v1141 = vunpack.c.h.b16 %v521
    %v1142 = vunpack.c.l.b16 %v522
    %v1143 = vunpack.c.h.b16 %v522
    %v1144 = vunpack.c.l.b16 %v523
    %v1145 = vunpack.c.h.b16 %v523
    %v1146 = vunpack.c.l.b16 %v524
    %v1147 = vunpack.c.h.b16 %v524
    %v1148 = vunpack.c.l.b16 %v525
    %v1149 = vunpack.c.h.b16 %v525
    %v1150 = vunpack.c.l.b16 %v526
    %v1151 = vunpack.c.h.b16 %v526
    %v1152 = vunpack.c.l.b16 %v527
    %v1153 = vunpack.c.h.b16 %v527
    %v1154 = vunpack.c.l.b16 %v528
    %v1155 = vunpack.c.h.b16 %v528
    %v1156 = vunpack.c.l.b16 %v529
    %v1157 = vunpack.c.h.b16 %v529
    %v1158 = vunpack.c.l.b16 %v530
    %v1159 = vunpack.c.h.b16 %v530
    %v1160 = vunpack.c.l.b16 %v531
    %v1161 = vunpack.c.h.b16 %v531
    %v1162 = vunpack.c.l.b16 %v532
    %v1163 = vunpack.c.h.b16 %v532
    %v1164 = vunpack.c.l.b16 %v533
    %v1165 = vunpack.c.h.b16 %v533
    %v1166 = vunpack.c.l.b16 %v534
    %v1167 = vunpack.c.h.b16 %v534
    %v1168 = vunpack.c.l.b16 %v535
    %v1169 = vunpack.c.h.b16 %v535
    %v1170 = vunpack.c.l.b16 %v536
    %v1171 = vunpack.c.h.b16 %v536
    %v1172 = vunpack.c.l.b16 %v537
    %v1173 = vunpack.c.h.b16 %v537
    %v1174 = vunpack.c.l.b16 %v538
    %v1175 = vunpack.c.h.b16 %v538
    %v1176 = vunpack.c.l.b16 %v539
    %v1177 = vunpack.c.h.b16 %v539
    %v1178 = vunpack.c.l.b16 %v540
    %v1179 = vunpack.c.h.b16 %v540
    %v1180 = vunpack.c.l.b16 %v541
    %v1181 = vunpack.c.h.b16 %v541
    %v1182 = vunpack.c.l.b16 %v542
    %v1183 = vunpack.c.h.b16 %v542
    %v1184 = vunpack.c.l.b16 %v543
    %v1185 = vunpack.c.h.b16 %v543
    %v1186 = vunpack.c.l.b16 %v544
    %v1187 = vunpack.c.h.b16 %v544
    %v1188 = vunpack.c.l.b16 %v545
    %v1189 = vunpack.c.h.b16 %v545
    %v1190 = vunpack.c.l.b16 %v546
    %v1191 = vunpack.c.h.b16 %v546
    %v1192 = vunpack.c.l.b16 %v547
    %v1193 = vunpack.c.h.b16 %v547
    %v1194 = vunpack.c.l.b16 %v548
    %v1195 = vunpack.c.h.b16 %v548
    %v1196 = vunpack.c.l.b16 %v549
    %v1197 = vunpack.c.h.b16 %v549
    %v1198 = vunpack.c.l.b16 %v550
    %v1199 = vunpack.c.h.b16 %v550
    %v1200 = vunpack.c.l.b16 %v551
    %v1201 = vunpack.c.h.b16 %v551
    %v1202 = vunpack.c.l.b16 %v552
    %v1203 = vunpack.c.h.b16 %v552
    %v1204 = vunpack.c.l.b16 %v553
    %v1205 = vunpack.c.h.b16 %v553
    %v1206 = vunpack.c.l.b16 %v554
    %v1207 = vunpack.c.h.b16 %v554
    %v1208 = vunpack.c.l.b16 %v555
    %v1209 = vunpack.c.h.b16 %v555
    %v1210 = vunpack.c.l.b16 %v556
    %v1211 = vunpack.c.h.b16 %v556
    %v1212 = vunpack.c.l.b16 %v557
    %v1213 = vunpack.c.h.b16 %v557
    %v1214 = vunpack.c.l.b16 %v558
    %v1215 = vunpack.c.h.b16 %v558
    %v1216 = vunpack.c.l.b16 %v559
    %v1217 = vunpack.c.h.b16 %v559
    %v1218 = vunpack.c.l.b16 %v560
    %v1219 = vunpack.c.h.b16 %v560
    %v1220 = vunpack.c.l.b16 %v561
    %v1221 = vunpack.c.h.b16 %v561
    %v1222 = vunpack.c.l.b16 %v562
    %v1223 = vunpack.c.h.b16 %v562
    %v1224 = vunpack.c.l.b16 %v563
    %v1225 = vunpack.c.h.b16 %v563
    %v1226 = vunpack.c.l.b16 %v564
    %v1227 = vunpack.c.h.b16 %v564
    %v1228 = vunpack.c.l.b16 %v565
    %v1229 = vunpack.c.h.b16 %v565
    %v1230 = vunpack.c.l.b16 %v566
    %v1231 = vunpack.c.h.b16 %v566
    %v1232 = vunpack.c.l.b16 %v567
    %v1233 = vunpack.c.h.b16 %v567
    %v1234 = vunpack.c.l.b16 %v568
    %v1235 = vunpack.c.h.b16 %v568
    %v1236 = vunpack.c.l.b16 %v569
    %v1237 = vunpack.c.h.b16 %v569
    %v1238 = vunpack.c.l.b16 %v570
    %v1239 = vunpack.c.h.b16 %v570
    %v1240 = vunpack.c.l.b16 %v571
    %v1241 = vunpack.c.h.b16 %v571
    %v1242 = vunpack.c.l.b16 %v572
    %v1243 = vunpack.c.h.b16 %v572
    %v1244 = vunpack.c.l.b16 %v573
    %v1245 = vunpack.c.h.b16 %v573
    %v1246 = vunpack.c.l.b16 %v574
    %v1247 = vunpack.c.h.b16 %v574
    %v1248 = vunpack.c.l.b16 %v575
    %v1249 = vunpack.c.h.b16 %v575
    %v1250 = vunpack.c.l.b16 %v576
    %v1251 = vunpack.c.h.b16 %v576
    %v1252 = vunpack.c.l.b16 %v577
    %v1253 = vunpack.c.h.b16 %v577
    %v1254 = vunpack.c.l.b16 %v578
    %v1255 = vunpack.c.h.b16 %v578
    %v1256 = vunpack.c.l.b16 %v579
    %v1257 = vunpack.c.h.b16 %v579
    %v1258 = vunpack.c.l.b16 %v580
    %v1259 = vunpack.c.h.b16 %v580
    %v1260 = vunpack.c.l.b16 %v581
    %v1261 = vunpack.c.h.b16 %v581
    %v1262 = vunpack.c.l.b16 %v582
    %v1263 = vunpack.c.h.b16 %v582
    %v1264 = vunpack.c.l.b16 %v583
    %v1265 = vunpack.c.h.b16 %v583
    %v1266 = vunpack.c.l.b16 %v584
    %v1267 = vunpack.c.h.b16 %v584
    %v1268 = vunpack.c.l.b16 %v585
    %v1269 = vunpack.c.h.b16 %v585
    %v1270 = vunpack.c.l.b16 %v586
    %v1271 = vunpack.c.h.b16 %v586
    %v1272 = vunpack.c.l.b16 %v587
    %v1273 = vunpack.c.h.b16 %v587
    %v1274 = vunpack.c.l.b16 %v588
    %v1275 = vunpack.c.h.b16 %v588
    %v1276 = vunpack.c.l.b16 %v589
    %v1277 = vunpack.c.h.b16 %v589
    %v1278 = vunpack.c.l.b16 %v590
    %v1279 = vunpack.c.h.b16 %v590
    %v1280 = vunpack.c.l.b16 %v591
    %v1281 = vunpack.c.h.b16 %v591
    %v1282 = vunpack.c.l.b16 %v592
    %v1283 = vunpack.c.h.b16 %v592
    %v1284 = vunpack.c.l.b16 %v593
    %v1285 = vunpack.c.h.b16 %v593
    %v1286 = vunpack.c.l.b16 %v594
    %v1287 = vunpack.c.h.b16 %v594
    %v1288 = vunpack.c.l.b16 %v595
    %v1289 = vunpack.c.h.b16 %v595
    %v1290 = vunpack.c.l.b16 %v596
    %v1291 = vunpack.c.h.b16 %v596
    %v1292 = vunpack.c.l.b16 %v597
    %v1293 = vunpack.c.h.b16 %v597
    %v1294 = vunpack.c.l.b16 %v598
    %v1295 = vunpack.c.h.b16 %v598
    %v1296 = vunpack.c.l.b16 %v599
    %v1297 = vunpack.c.h.b16 %v599
    %v1298 = vunpack.c.l.b16 %v600
    %v1299 = vunpack.c.h.b16 %v600
    %v1300 = vunpack.c.l.b16 %v601
    %v1301 = vunpack.c.h.b16 %v601
    %v1302 = vunpack.c.l.b16 %v602
    %v1303 = vunpack.c.h.b16 %v602
    %v1304 = vunpack.c.l.b16 %v603
    %v1305 = vunpack.c.h.b16 %v603
    %v1306 = vunpack.c.l.b16 %v604
    %v1307 = vunpack.c.h.b16 %v604
    %v1308 = vunpack.c.l.b16 %v605
    %v1309 = vunpack.c.h.b16 %v605
    %v1310 = vunpack.c.l.b16 %v606
    %v1311 = vunpack.c.h.b16 %v606
    %v1312 = vunpack.c.l.b16 %v607
    %v1313 = vunpack.c.h.b16 %v607
    %v1314 = vunpack.c.l.b16 %v608
    %v1315 = vunpack.c.h.b16 %v608
    %v1316 = vunpack.c.l.b16 %v609
    %v1317 = vunpack.c.h.b16 %v609
    %v1318 = vunpack.c.l.b16 %v610
    %v1319 = vunpack.c.h.b16 %v610
    %v1320 = vunpack.c.l.b16 %v611
    %v1321 = vunpack.c.h.b16 %v611
    %v1322 = vunpack.c.l.b16 %v612
    %v1323 = vunpack.c.h.b16 %v612
    %v1324 = vunpack.c.l.b16 %v613
    %v1325 = vunpack.c.h.b16 %v613
    %v1326 = vunpack.c.l.b16 %v614
    %v1327 = vunpack.c.h.b16 %v614
    %v1328 = vunpack.c.l.b16 %v615
    %v1329 = vunpack.c.h.b16 %v615
    %v1330 = vunpack.c.l.b16 %v616
    %v1331 = vunpack.c.h.b16 %v616
    %v1332 = vunpack.c.l.b16 %v617
    %v1333 = vunpack.c.h.b16 %v617
    %v1334 = vunpack.c.l.b16 %v618
    %v1335 = vunpack.c.h.b16 %v618
    %v1336 = vunpack.c.l.b16 %v619
    %v1337 = vunpack.c.h.b16 %v619
    %v1338 = vunpack.c.l.b16 %v620
    %v1339 = vunpack.c.h.b16 %v620
    %v1340 = vunpack.c.l.b16 %v621
    %v1341 = vunpack.c.h.b16 %v621
    %v1342 = vunpack.c.l.b16 %v622
    %v1343 = vunpack.c.h.b16 %v622
    %v1344 = vunpack.c.l.b16 %v623
    %v1345 = vunpack.c.h.b16 %v623
    %v1346 = vunpack.c.l.b16 %v624
    %v1347 = vunpack.c.h.b16 %v624
    %v1348 = vunpack.c.l.b16 %v625
    %v1349 = vunpack.c.h.b16 %v625
    %v1350 = vunpack.c.l.b16 %v626
    %v1351 = vunpack.c.h.b16 %v626
    %v1352 = vunpack.c.l.b16 %v627
    %v1353 = vunpack.c.h.b16 %v627
    %v1354 = vunpack.c.l.b16 %v628
    %v1355 = vunpack.c.h.b16 %v628
    %v1356 = vunpack.c.l.b16 %v629
    %v1357 = vunpack.c.h.b16 %v629
    %v1358 = vunpack.c.l.b16 %v630
    %v1359 = vunpack.c.h.b16 %v630
    %v1360 = vunpack.c.l.b16 %v631
    %v1361 = vunpack.c.h.b16 %v631
    %v1362 = vunpack.c.l.b16 %v632
    %v1363 = vunpack.c.h.b16 %v632
    %v1364 = vunpack.c.l.b16 %v633
    %v1365 = vunpack.c.h.b16 %v633
    %v1366 = vunpack.c.l.b16 %v634
    %v1367 = vunpack.c.h.b16 %v634
    %v1368 = vunpack.c.l.b16 %v635
    %v1369 = vunpack.c.h.b16 %v635
    %v1370 = vunpack.c.l.b16 %v636
    %v1371 = vunpack.c.h.b16 %v636
    %v1372 = vunpack.c.l.b16 %v637
    %v1373 = vunpack.c.h.b16 %v637
    %v1374 = vunpack.c.l.b16 %v638
    %v1375 = vunpack.c.h.b16 %v638
    %v1376 = vunpack.c.l.b16 %v639
    %v1377 = vunpack.c.h.b16 %v639
    %v1378 = vunpack.c.l.b16 %v640
    %v1379 = vunpack.c.h.b16 %v640
    %v1380 = vunpack.c.l.b16 %v641
    %v1381 = vunpack.c.h.b16 %v641
    %v1382 = vunpack.c.l.b16 %v642
    %v1383 = vunpack.c.h.b16 %v642
    %v1384 = vunpack.c.l.b16 %v643
    %v1385 = vunpack.c.h.b16 %v643
    %v1386 = vunpack.c.l.b16 %v644
    %v1387 = vunpack.c.h.b16 %v644
    %v1388 = vunpack.c.l.b16 %v645
    %v1389 = vunpack.c.h.b16 %v645
    %v1390 = vunpack.c.l.b16 %v646
    %v1391 = vunpack.c.h.b16 %v646
    %v1392 = vunpack.c.l.b16 %v647
    %v1393 = vunpack.c.h.b16 %v647
    %v1394 = vunpack.c.l.b16 %v648
    %v1395 = vunpack.c.h.b16 %v648
    %v1396 = vunpack.c.l.b16 %v649
    %v1397 = vunpack.c.h.b16 %v649
    %v1398 = vunpack.c.l.b16 %v650
    %v1399 = vunpack.c.h.b16 %v650
    %v1400 = vunpack.c.l.b16 %v651
    %v1401 = vunpack.c.h.b16 %v651
    %v1402 = vunpack.c.l.b16 %v652
    %v1403 = vunpack.c.h.b16 %v652
    %v1404 = vunpack.c.l.b16 %v653
    %v1405 = vunpack.c.h.b16 %v653
    %v1406 = vunpack.c.l.b16 %v654
    %v1407 = vunpack.c.h.b16 %v654
    %v1408 = vunpack.c.l.b16 %v655
    %v1409 = vunpack.c.h.b16 %v655
    %v1410 = vunpack.c.l.b16 %v656
    %v1411 = vunpack.c.h.b16 %v656
    %v1412 = vunpack.c.l.b16 %v657
    %v1413 = vunpack.c.h.b16 %v657
    %v1414 = vunpack.c.l.b16 %v658
    %v1415 = vunpack.c.h.b16 %v658
    %v1416 = vunpack.c.l.b16 %v659
    %v1417 = vunpack.c.h.b16 %v659
    %v1418 = vunpack.c.l.b16 %v660
    %v1419 = vunpack.c.h.b16 %v660
    %v1420 = vunpack.c.l.b16 %v661
    %v1421 = vunpack.c.h.b16 %v661
    %v1422 = vunpack.c.l.b16 %v662
    %v1423 = vunpack.c.h.b16 %v662
    %v1424 = vunpack.c.l.b16 %v663
    %v1425 = vunpack.c.h.b16 %v663
    %v1426 = vunpack.c.l.b16 %v664
    %v1427 = vunpack.c.h.b16 %v664
    %v1428 = vunpack.c.l.b16 %v665
    %v1429 = vunpack.c.h.b16 %v665
    %v1430 = vunpack.c.l.b16 %v666
    %v1431 = vunpack.c.h.b16 %v666
    %v1432 = vunpack.c.l.b16 %v667
    %v1433 = vunpack.c.h.b16 %v667
    %v1434 = vunpack.c.l.b16 %v668
    %v1435 = vunpack.c.h.b16 %v668
    %v1436 = vunpack.c.l.b16 %v669
    %v1437 = vunpack.c.h.b16 %v669
    %v1438 = vunpack.c.l.b16 %v670
    %v1439 = vunpack.c.h.b16 %v670
    %v1440 = vunpack.c.l.b16 %v671
    %v1441 = vunpack.c.h.b16 %v671
    %v1442 = vunpack.c.l.b16 %v672
    %v1443 = vunpack.c.h.b16 %v672
    %v1444 = vunpack.c.l.b16 %v673
    %v1445 = vunpack.c.h.b16 %v673
    %v1446 = vunpack.c.l.b16 %v674
    %v1447 = vunpack.c.h.b16 %v674
    %v1448 = vunpack.c.l.b16 %v675
    %v1449 = vunpack.c.h.b16 %v675
    %v1450 = vunpack.c.l.b16 %v676
    %v1451 = vunpack.c.h.b16 %v676
    %v1452 = vunpack.c.l.b16 %v677
    %v1453 = vunpack.c.h.b16 %v677
    %v1454 = vunpack.c.l.b16 %v678
    %v1455 = vunpack.c.h.b16 %v678
    %v1456 = vunpack.c.l.b16 %v679
    %v1457 = vunpack.c.h.b16 %v679
    %v1458 = vunpack.c.l.b16 %v680
    %v1459 = vunpack.c.h.b16 %v680
    %v1460 = vunpack.c.l.b16 %v681
    %v1461 = vunpack.c.h.b16 %v681
    %v1462 = vunpack.c.l.b16 %v682
    %v1463 = vunpack.c.h.b16 %v682
    %v1464 = vunpack.c.l.b16 %v683
    %v1465 = vunpack.c.h.b16 %v683
    %v1466 = vunpack.c.l.b16 %v684
    %v1467 = vunpack.c.h.b16 %v684
    %v1468 = vunpack.c.l.b16 %v685
    %v1469 = vunpack.c.h.b16 %v685
    %v1470 = vunpack.c.l.b16 %v686
    %v1471 = vunpack.c.h.b16 %v686
    %v1472 = vunpack.c.l.b16 %v687
    %v1473 = vunpack.c.h.b16 %v687
    %v1474 = vunpack.c.l.b16 %v688
    %v1475 = vunpack.c.h.b16 %v688
    %v1476 = vunpack.c.l.b16 %v689
    %v1477 = vunpack.c.h.b16 %v689
    %v1478 = vunpack.c.l.b16 %v690
    %v1479 = vunpack.c.h.b16 %v690
    %v1480 = vunpack.c.l.b16 %v691
    %v1481 = vunpack.c.h.b16 %v691
    %v1482 = vpack.c.b16 %v974, %v970
    %v1483 = vpack.c.b16 %v975, %v971
    %v1484 = vpack.c.b16 %v976, %v972
    %v1485 = vpack.c.b16 %v977, %v973
    %v1486 = vpack.c.b16 %v982, %v978
    %v1487 = vpack.c.b16 %v983, %v979
    %v1488 = vpack.c.b16 %v984, %v980
    %v1489 = vpack.c.b16 %v985, %v981
    %v1490 = vpack.c.b16 %v990, %v986
    %v1491 = vpack.c.b16 %v991, %v987
    %v1492 = vpack.c.b16 %v992, %v988
    %v1493 = vpack.c.b16 %v993, %v989
    %v1494 = vpack.c.b16 %v998, %v994
    %v1495 = vpack.c.b16 %v999, %v995
    %v1496 = vpack.c.b16 %v1000, %v996
    %v1497 = vpack.c.b16 %v1001, %v997
    %v1498 = vpack.c.b16 %v1006, %v1002
    %v1499 = vpack.c.b16 %v1007, %v1003
    %v1500 = vpack.c.b16 %v1008, %v1004
    %v1501 = vpack.c.b16 %v1009, %v1005
    %v1502 = vpack.c.b16 %v1014, %v1010
    %v1503 = vpack.c.b16 %v1015, %v1011
    %v1504 = vpack.c.b16 %v1016, %v1012
    %v1505 = vpack.c.b16 %v1017, %v1013
    %v1506 = vpack.c.b16 %v1022, %v1018
    %v1507 = vpack.c.b16 %v1023, %v1019
    %v1508 = vpack.c.b16 %v1024, %v1020
    %v1509 = vpack.c.b16 %v1025, %v1021
    %v1510 = vpack.c.b16 %v1030, %v1026
    %v1511 = vpack.c.b16 %v1031, %v1027
    %v1512 = vpack.c.b16 %v1032, %v1028
    %v1513 = vpack.c.b16 %v1033, %v1029
    %v1514 = vpack.c.b16 %v1038, %v1034
    %v1515 = vpack.c.b16 %v1039, %v1035
    %v1516 = vpack.c.b16 %v1040, %v1036
    %v1517 = vpack.c.b16 %v1041, %v1037
    %v1518 = vpack.c.b16 %v1046, %v1042
    %v1519 = vpack.c.b16 %v1047, %v1043
    %v1520 = vpack.c.b16 %v1048, %v1044
    %v1521 = vpack.c.b16 %v1049, %v1045
    %v1522 = vpack.c.b16 %v1054, %v1050
    %v1523 = vpack.c.b16 %v1055, %v1051
    %v1524 = vpack.c.b16 %v1056, %v1052
    %v1525 = vpack.c.b16 %v1057, %v1053
    %v1526 = vpack.c.b16 %v1062, %v1058
    %v1527 = vpack.c.b16 %v1063, %v1059
    %v1528 = vpack.c.b16 %v1064, %v1060
    %v1529 = vpack.c.b16 %v1065, %v1061
    %v1530 = vpack.c.b16 %v1070, %v1066
    %v1531 = vpack.c.b16 %v1071, %v1067
    %v1532 = vpack.c.b16 %v1072, %v1068
    %v1533 = vpack.c.b16 %v1073, %v1069
    %v1534 = vpack.c.b16 %v1078, %v1074
    %v1535 = vpack.c.b16 %v1079, %v1075
    %v1536 = vpack.c.b16 %v1080, %v1076
    %v1537 = vpack.c.b16 %v1081, %v1077
    %v1538 = vpack.c.b16 %v1086, %v1082
    %v1539 = vpack.c.b16 %v1087, %v1083
    %v1540 = vpack.c.b16 %v1088, %v1084
    %v1541 = vpack.c.b16 %v1089, %v1085
    %v1542 = vpack.c.b16 %v1094, %v1090
    %v1543 = vpack.c.b16 %v1095, %v1091
    %v1544 = vpack.c.b16 %v1096, %v1092
    %v1545 = vpack.c.b16 %v1097, %v1093
    %v1546 = vpack.c.b16 %v1102, %v1098
    %v1547 = vpack.c.b16 %v1103, %v1099
    %v1548 = vpack.c.b16 %v1104, %v1100
    %v1549 = vpack.c.b16 %v1105, %v1101
    %v1550 = vpack.c.b16 %v1110, %v1106
    %v1551 = vpack.c.b16 %v1111, %v1107
    %v1552 = vpack.c.b16 %v1112, %v1108
    %v1553 = vpack.c.b16 %v1113, %v1109
    %v1554 = vpack.c.b16 %v1118, %v1114
    %v1555 = vpack.c.b16 %v1119, %v1115
    %v1556 = vpack.c.b16 %v1120, %v1116
    %v1557 = vpack.c.b16 %v1121, %v1117
    %v1558 = vpack.c.b16 %v1126, %v1122
    %v1559 = vpack.c.b16 %v1127, %v1123
    %v1560 = vpack.c.b16 %v1128, %v1124
    %v1561 = vpack.c.b16 %v1129, %v1125
    %v1562 = vpack.c.b16 %v1134, %v1130
    %v1563 = vpack.c.b16 %v1135, %v1131
    %v1564 = vpack.c.b16 %v1136, %v1132
    %v1565 = vpack.c.b16 %v1137, %v1133
    %v1566 = vpack.c.b16 %v1142, %v1138
    %v1567 = vpack.c.b16 %v1143, %v1139
    %v1568 = vpack.c.b16 %v1144, %v1140
    %v1569 = vpack.c.b16 %v1145, %v1141
    %v1570 = vpack.c.b16 %v1150, %v1146
    %v1571 = vpack.c.b16 %v1151, %v1147
    %v1572 = vpack.c.b16 %v1152, %v1148
    %v1573 = vpack.c.b16 %v1153, %v1149
    %v1574 = vpack.c.b16 %v1158, %v1154
    %v1575 = vpack.c.b16 %v1159, %v1155
    %v1576 = vpack.c.b16 %v1160, %v1156
    %v1577 = vpack.c.b16 %v1161, %v1157
    %v1578 = vpack.c.b16 %v1166, %v1162
    %v1579 = vpack.c.b16 %v1167, %v1163
    %v1580 = vpack.c.b16 %v1168, %v1164
    %v1581 = vpack.c.b16 %v1169, %v1165
    %v1582 = vpack.c.b16 %v1174, %v1170
    %v1583 = vpack.c.b16 %v1175, %v1171
    %v1584 = vpack.c.b16 %v1176, %v1172
    %v1585 = vpack.c.b16 %v1177, %v1173
    %v1586 = vpack.c.b16 %v1182, %v1178
    %v1587 = vpack.c.b16 %v1183, %v1179
    %v1588 = vpack.c.b16 %v1184, %v1180
    %v1589 = vpack.c.b16 %v1185, %v1181
    %v1590 = vpack.c.b16 %v1190, %v1186
    %v1591 = vpack.c.b16 %v1191, %v1187
    %v1592 = vpack.c.b16 %v1192, %v1188
    %v1593 = vpack.c.b16 %v1193, %v1189
    %v1594 = vpack.c.b16 %v1198, %v1194
    %v1595 = vpack.c.b16 %v1199, %v1195
    %v1596 = vpack.c.b16 %v1200, %v1196
    %v1597 = vpack.c.b16 %v1201, %v1197
    %v1598 = vpack.c.b16 %v1206, %v1202
    %v1599 = vpack.c.b16 %v1207, %v1203
    %v1600 = vpack.c.b16 %v1208, %v1204
    %v1601 = vpack.c.b16 %v1209, %v1205
    %v1602 = vpack.c.b16 %v1214, %v1210
    %v1603 = vpack.c.b16 %v1215, %v1211
    %v1604 = vpack.c.b16 %v1216, %v1212
    %v1605 = vpack.c.b16 %v1217, %v1213
    %v1606 = vpack.c.b16 %v1222, %v1218
    %v1607 = vpack.c.b16 %v1223, %v1219
    %v1608 = vpack.c.b16 %v1224, %v1220
    %v1609 = vpack.c.b16 %v1225, %v1221
    %v1610 = vpack.c.b16 %v1230, %v1226
    %v1611 = vpack.c.b16 %v1231, %v1227
    %v1612 = vpack.c.b16 %v1232, %v1228
    %v1613 = vpack.c.b16 %v1233, %v1229
    %v1614 = vpack.c.b16 %v1238, %v1234
    %v1615 = vpack.c.b16 %v1239, %v1235
    %v1616 = vpack.c.b16 %v1240, %v1236
    %v1617 = vpack.c.b16 %v1241, %v1237
    %v1618 = vpack.c.b16 %v1246, %v1242
    %v1619 = vpack.c.b16 %v1247, %v1243
    %v1620 = vpack.c.b16 %v1248, %v1244
    %v1621 = vpack.c.b16 %v1249, %v1245
    %v1622 = vpack.c.b16 %v1254, %v1250
    %v1623 = vpack.c.b16 %v1255, %v1251
    %v1624 = vpack.c.b16 %v1256, %v1252
    %v1625 = vpack.c.b16 %v1257, %v1253
    %v1626 = vpack.c.b16 %v1262, %v1258
    %v1627 = vpack.c.b16 %v1263, %v1259
    %v1628 = vpack.c.b16 %v1264, %v1260
    %v1629 = vpack.c.b16 %v1265, %v1261
    %v1630 = vpack.c.b16 %v1270, %v1266
    %v1631 = vpack.c.b16 %v1271, %v1267
    %v1632 = vpack.c.b16 %v1272, %v1268
    %v1633 = vpack.c.b16 %v1273, %v1269
    %v1634 = vpack.c.b16 %v1278, %v1274
    %v1635 = vpack.c.b16 %v1279, %v1275
    %v1636 = vpack.c.b16 %v1280, %v1276
    %v1637 = vpack.c.b16 %v1281, %v1277
    %v1638 = vpack.c.b16 %v1286, %v1282
    %v1639 = vpack.c.b16 %v1287, %v1283
    %v1640 = vpack.c.b16 %v1288, %v1284
    %v1641 = vpack.c.b16 %v1289, %v1285
    %v1642 = vpack.c.b16 %v1294, %v1290
    %v1643 = vpack.c.b16 %v1295, %v1291
    %v1644 = vpack.c.b16 %v1296, %v1292
    %v1645 = vpack.c.b16 %v1297, %v1293
    %v1646 = vpack.c.b16 %v1302, %v1298
    %v1647 = vpack.c.b16 %v1303, %v1299
    %v1648 = vpack.c.b16 %v1304, %v1300
    %v1649 = vpack.c.b16 %v1305, %v1301
    %v1650 = vpack.c.b16 %v1310, %v1306
    %v1651 = vpack.c.b16 %v1311, %v1307
    %v1652 = vpack.c.b16 %v1312, %v1308
    %v1653 = vpack.c.b16 %v1313, %v1309
    %v1654 = vpack.c.b16 %v1318, %v1314
    %v1655 = vpack.c.b16 %v1319, %v1315
    %v1656 = vpack.c.b16 %v1320, %v1316
    %v1657 = vpack.c.b16 %v1321, %v1317
    %v1658 = vpack.c.b16 %v1326, %v1322
    %v1659 = vpack.c.b16 %v1327, %v1323
    %v1660 = vpack.c.b16 %v1328, %v1324
    %v1661 = vpack.c.b16 %v1329, %v1325
    %v1662 = vpack.c.b16 %v1334, %v1330
    %v1663 = vpack.c.b16 %v1335, %v1331
    %v1664 = vpack.c.b16 %v1336, %v1332
    %v1665 = vpack.c.b16 %v1337, %v1333
    %v1666 = vpack.c.b16 %v1342, %v1338
    %v1667 = vpack.c.b16 %v1343, %v1339
    %v1668 = vpack.c.b16 %v1344, %v1340
    %v1669 = vpack.c.b16 %v1345, %v1341
    %v1670 = vpack.c.b16 %v1350, %v1346
    %v1671 = vpack.c.b16 %v1351, %v1347
    %v1672 = vpack.c.b16 %v1352, %v1348
    %v1673 = vpack.c.b16 %v1353, %v1349
    %v1674 = vpack.c.b16 %v1358, %v1354
    %v1675 = vpack.c.b16 %v1359, %v1355
    %v1676 = vpack.c.b16 %v1360, %v1356
    %v1677 = vpack.c.b16 %v1361, %v1357
    %v1678 = vpack.c.b16 %v1366, %v1362
    %v1679 = vpack.c.b16 %v1367, %v1363
    %v1680 = vpack.c.b16 %v1368, %v1364
    %v1681 = vpack.c.b16 %v1369, %v1365
    %v1682 = vpack.c.b16 %v1374, %v1370
    %v1683 = vpack.c.b16 %v1375, %v1371
    %v1684 = vpack.c.b16 %v1376, %v1372
    %v1685 = vpack.c.b16 %v1377, %v1373
    %v1686 = vpack.c.b16 %v1382, %v1378
    %v1687 = vpack.c.b16 %v1383, %v1379
    %v1688 = vpack.c.b16 %v1384, %v1380
    %v1689 = vpack.c.b16 %v1385, %v1381
    %v1690 = vpack.c.b16 %v1390, %v1386
    %v1691 = vpack.c.b16 %v1391, %v1387
    %v1692 = vpack.c.b16 %v1392, %v1388
    %v1693 = vpack.c.b16 %v1393, %v1389
    %v1694 = vpack.c.b16 %v1398, %v1394
    %v1695 = vpack.c.b16 %v1399, %v1395
    %v1696 = vpack.c.b16 %v1400, %v1396
    %v1697 = vpack.c.b16 %v1401, %v1397
    %v1698 = vpack.c.b16 %v1406, %v1402
    %v1699 = vpack.c.b16 %v1407, %v1403
    %v1700 = vpack.c.b16 %v1408, %v1404
    %v1701 = vpack.c.b16 %v1409, %v1405
    %v1702 = vpack.c.b16 %v1414, %v1410
    %v1703 = vpack.c.b16 %v1415, %v1411
    %v1704 = vpack.c.b16 %v1416, %v1412
    %v1705 = vpack.c.b16 %v1417, %v1413
    %v1706 = vpack.c.b16 %v1422, %v1418
    %v1707 = vpack.c.b16 %v1423, %v1419
    %v1708 = vpack.c.b16 %v1424, %v1420
    %v1709 = vpack.c.b16 %v1425, %v1421
    %v1710 = vpack.c.b16 %v1430, %v1426
    %v1711 = vpack.c.b16 %v1431, %v1427
    %v1712 = vpack.c.b16 %v1432, %v1428
    %v1713 = vpack.c.b16 %v1433, %v1429
    %v1714 = vpack.c.b16 %v1438, %v1434
    %v1715 = vpack.c.b16 %v1439, %v1435
    %v1716 = vpack.c.b16 %v1440, %v1436
    %v1717 = vpack.c.b16 %v1441, %v1437
    %v1718 = vpack.c.b16 %v1446, %v1442
    %v1719 = vpack.c.b16 %v1447, %v1443
    %v1720 = vpack.c.b16 %v1448, %v1444
    %v1721 = vpack.c.b16 %v1449, %v1445
    %v1722 = vpack.c.b16 %v1454, %v1450
    %v1723 = vpack.c.b16 %v1455, %v1451
    %v1724 = vpack.c.b16 %v1456, %v1452
    %v1725 = vpack.c.b16 %v1457, %v1453
    %v1726 = vpack.c.b16 %v1462, %v1458
    %v1727 = vpack.c.b16 %v1463, %v1459
    %v1728 = vpack.c.b16 %v1464, %v1460
    %v1729 = vpack.c.b16 %v1465, %v1461
    %v1730 = vpack.c.b16 %v1470, %v1466
    %v1731 = vpack.c.b16 %v1471, %v1467
    %v1732 = vpack.c.b16 %v1472, %v1468
    %v1733 = vpack.c.b16 %v1473, %v1469
    %v1734 = vpack.c.b16 %v1478, %v1474
    %v1735 = vpack.c.b16 %v1479, %v1475
    %v1736 = vpack.c.b16 %v1480, %v1476
    %v1737 = vpack.c.b16 %v1481, %v1477
    %1994 = vmatprep.subr.bf16.mxu0 %v1483
    %1995 = vmatpush1.bf16.msra.mxu0 %v1482
    %1996 = vmatprep.subr.bf16.mxu0 %v1487
    %1997 = vmatpush1.bf16.msra.mxu0 %v1486
    %1998 = vmatprep.subr.bf16.mxu0 %v1491
    %1999 = vmatpush1.bf16.msra.mxu0 %v1490
    %2000 = vmatprep.subr.bf16.mxu0 %v1495
    %2001 = vmatpush1.bf16.msra.mxu0 %v1494
    %2002 = vmatprep.subr.bf16.mxu0 %v1499
    %2003 = vmatpush1.bf16.msra.mxu0 %v1498
    %2004 = vmatprep.subr.bf16.mxu0 %v1503
    %2005 = vmatpush1.bf16.msra.mxu0 %v1502
    %2006 = vmatprep.subr.bf16.mxu0 %v1507
    %2007 = vmatpush1.bf16.msra.mxu0 %v1506
    %2008 = vmatprep.subr.bf16.mxu0 %v1511
    %2009 = vmatpush1.bf16.msra.mxu0 %v1510
    %2010 = vmatprep.subr.bf16.mxu0 %v1515
    %2011 = vmatpush1.bf16.msra.mxu0 %v1514
    %2012 = vmatprep.subr.bf16.mxu0 %v1519
    %2013 = vmatpush1.bf16.msra.mxu0 %v1518
    %2014 = vmatprep.subr.bf16.mxu0 %v1523
    %2015 = vmatpush1.bf16.msra.mxu0 %v1522
    %2016 = vmatprep.subr.bf16.mxu0 %v1527
    %2017 = vmatpush1.bf16.msra.mxu0 %v1526
    %2018 = vmatprep.subr.bf16.mxu0 %v1531
    %2019 = vmatpush1.bf16.msra.mxu0 %v1530
    %2020 = vmatprep.subr.bf16.mxu0 %v1535
    %2021 = vmatpush1.bf16.msra.mxu0 %v1534
    %2022 = vmatprep.subr.bf16.mxu0 %v1539
    %2023 = vmatpush1.bf16.msra.mxu0 %v1538
    %2024 = vmatprep.subr.bf16.mxu0 %v1543
    %2025 = vmatpush1.bf16.msra.mxu0 %v1542
    %2026 = vmatprep.mubr.bf16.mxu0 %v429
    %2027 = vmatmul.mubr.bf16.gmra.mrb[0].mxu0 %v428
    %v2028 = vpop.f32.mrb[0].mxu0
    %v2029 = vadd.f32 %v697, %v2028
    %v2030 = vpop.f32.mrb[0].mxu0
    %v2031 = vadd.f32 %v701, %v2030
    %v2032 = vpop.f32.mrb[0].mxu0
    %v2033 = vpop.f32.mrb[0].mxu0
    %2034 = vdwg.mxu0
    %2035 = vmatprep.subr.bf16.mxu0 %v1547
    %2036 = vmatpush1.bf16.msra.mxu0 %v1546
    %2037 = vmatprep.subr.bf16.mxu0 %v1551
    %2038 = vmatpush1.bf16.msra.mxu0 %v1550
    %2039 = vmatprep.subr.bf16.mxu0 %v1555
    %2040 = vmatpush1.bf16.msra.mxu0 %v1554
    %2041 = vmatprep.subr.bf16.mxu0 %v1559
    %2042 = vmatpush1.bf16.msra.mxu0 %v1558
    %2043 = vmatprep.subr.bf16.mxu0 %v1563
    %2044 = vmatpush1.bf16.msra.mxu0 %v1562
    %2045 = vmatprep.subr.bf16.mxu0 %v1567
    %2046 = vmatpush1.bf16.msra.mxu0 %v1566
    %2047 = vmatprep.subr.bf16.mxu0 %v1571
    %2048 = vmatpush1.bf16.msra.mxu0 %v1570
    %2049 = vmatprep.subr.bf16.mxu0 %v1575
    %2050 = vmatpush1.bf16.msra.mxu0 %v1574
    %2051 = vmatprep.subr.bf16.mxu0 %v1579
    %2052 = vmatpush1.bf16.msra.mxu0 %v1578
    %2053 = vmatprep.subr.bf16.mxu0 %v1583
    %2054 = vmatpush1.bf16.msra.mxu0 %v1582
    %2055 = vmatprep.subr.bf16.mxu0 %v1587
    %2056 = vmatpush1.bf16.msra.mxu0 %v1586
    %2057 = vmatprep.subr.bf16.mxu0 %v1591
    %2058 = vmatpush1.bf16.msra.mxu0 %v1590
    %2059 = vmatprep.subr.bf16.mxu0 %v1595
    %2060 = vmatpush1.bf16.msra.mxu0 %v1594
    %2061 = vmatprep.subr.bf16.mxu0 %v1599
    %2062 = vmatpush1.bf16.msra.mxu0 %v1598
    %2063 = vmatprep.subr.bf16.mxu0 %v1603
    %2064 = vmatpush1.bf16.msra.mxu0 %v1602
    %2065 = vmatprep.subr.bf16.mxu0 %v1607
    %2066 = vmatpush1.bf16.msra.mxu0 %v1606
    %2067 = vmatprep.mubr.bf16.mxu0 %v431
    %2068 = vmatmul.mubr.bf16.gmra.mrb[0].mxu0 %v430
    %v2069 = vpop.f32.mrb[0].mxu0
    %v2070 = vadd.f32 %v2029, %v2069
    %v2071 = vpop.f32.mrb[0].mxu0
    %v2072 = vadd.f32 %v2031, %v2071
    %v2073 = vpop.f32.mrb[0].mxu0
    %v2074 = vpop.f32.mrb[0].mxu0
    %2075 = vdwg.mxu0
    %2076 = vmatprep.subr.bf16.mxu0 %v1611
    %2077 = vmatpush1.bf16.msra.mxu0 %v1610
    %2078 = vmatprep.subr.bf16.mxu0 %v1615
    %2079 = vmatpush1.bf16.msra.mxu0 %v1614
    %2080 = vmatprep.subr.bf16.mxu0 %v1619
    %2081 = vmatpush1.bf16.msra.mxu0 %v1618
    %2082 = vmatprep.subr.bf16.mxu0 %v1623
    %2083 = vmatpush1.bf16.msra.mxu0 %v1622
    %2084 = vmatprep.subr.bf16.mxu0 %v1627
    %2085 = vmatpush1.bf16.msra.mxu0 %v1626
    %2086 = vmatprep.subr.bf16.mxu0 %v1631
    %2087 = vmatpush1.bf16.msra.mxu0 %v1630
    %2088 = vmatprep.subr.bf16.mxu0 %v1635
    %2089 = vmatpush1.bf16.msra.mxu0 %v1634
    %2090 = vmatprep.subr.bf16.mxu0 %v1639
    %2091 = vmatpush1.bf16.msra.mxu0 %v1638
    %2092 = vmatprep.subr.bf16.mxu0 %v1643
    %2093 = vmatpush1.bf16.msra.mxu0 %v1642
    %2094 = vmatprep.subr.bf16.mxu0 %v1647
    %2095 = vmatpush1.bf16.msra.mxu0 %v1646
    %2096 = vmatprep.subr.bf16.mxu0 %v1651
    %2097 = vmatpush1.bf16.msra.mxu0 %v1650
    %2098 = vmatprep.subr.bf16.mxu0 %v1655
    %2099 = vmatpush1.bf16.msra.mxu0 %v1654
    %2100 = vmatprep.subr.bf16.mxu0 %v1659
    %2101 = vmatpush1.bf16.msra.mxu0 %v1658
    %2102 = vmatprep.subr.bf16.mxu0 %v1663
    %2103 = vmatpush1.bf16.msra.mxu0 %v1662
    %2104 = vmatprep.subr.bf16.mxu0 %v1667
    %2105 = vmatpush1.bf16.msra.mxu0 %v1666
    %2106 = vmatprep.subr.bf16.mxu0 %v1671
    %2107 = vmatpush1.bf16.msra.mxu0 %v1670
    %2108 = vmatprep.mubr.bf16.mxu0 %v433
    %2109 = vmatmul.mubr.bf16.gmra.mrb[0].mxu0 %v432
    %v2110 = vpop.f32.mrb[0].mxu0
    %v2111 = vadd.f32 %v2070, %v2110
    %v2112 = vpop.f32.mrb[0].mxu0
    %v2113 = vadd.f32 %v2072, %v2112
    %v2114 = vpop.f32.mrb[0].mxu0
    %v2115 = vpop.f32.mrb[0].mxu0
    %2116 = vdwg.mxu0
    %2117 = vmatprep.subr.bf16.mxu0 %v1675
    %2118 = vmatpush1.bf16.msra.mxu0 %v1674
    %2119 = vmatprep.subr.bf16.mxu0 %v1679
    %2120 = vmatpush1.bf16.msra.mxu0 %v1678
    %2121 = vmatprep.subr.bf16.mxu0 %v1683
    %2122 = vmatpush1.bf16.msra.mxu0 %v1682
    %2123 = vmatprep.subr.bf16.mxu0 %v1687
    %2124 = vmatpush1.bf16.msra.mxu0 %v1686
    %2125 = vmatprep.subr.bf16.mxu0 %v1691
    %2126 = vmatpush1.bf16.msra.mxu0 %v1690
    %2127 = vmatprep.subr.bf16.mxu0 %v1695
    %2128 = vmatpush1.bf16.msra.mxu0 %v1694
    %2129 = vmatprep.subr.bf16.mxu0 %v1699
    %2130 = vmatpush1.bf16.msra.mxu0 %v1698
    %2131 = vmatprep.subr.bf16.mxu0 %v1703
    %2132 = vmatpush1.bf16.msra.mxu0 %v1702
    %2133 = vmatprep.subr.bf16.mxu0 %v1707
    %2134 = vmatpush1.bf16.msra.mxu0 %v1706
    %2135 = vmatprep.subr.bf16.mxu0 %v1711
    %2136 = vmatpush1.bf16.msra.mxu0 %v1710
    %2137 = vmatprep.subr.bf16.mxu0 %v1715
    %2138 = vmatpush1.bf16.msra.mxu0 %v1714
    %2139 = vmatprep.subr.bf16.mxu0 %v1719
    %2140 = vmatpush1.bf16.msra.mxu0 %v1718
    %2141 = vmatprep.subr.bf16.mxu0 %v1723
    %2142 = vmatpush1.bf16.msra.mxu0 %v1722
    %2143 = vmatprep.subr.bf16.mxu0 %v1727
    %2144 = vmatpush1.bf16.msra.mxu0 %v1726
    %2145 = vmatprep.subr.bf16.mxu0 %v1731
    %2146 = vmatpush1.bf16.msra.mxu0 %v1730
    %2147 = vmatprep.subr.bf16.mxu0 %v1735
    %2148 = vmatpush1.bf16.msra.mxu0 %v1734
    %2149 = vmatprep.mubr.bf16.mxu0 %v435
    %2150 = vmatmul.mubr.bf16.gmra.mrb[0].mxu0 %v434
    %v2151 = vpop.f32.mrb[0].mxu0
    %v2152 = vadd.f32 %v2111, %v2151
    %v2153 = vpop.f32.mrb[0].mxu0
    %v2154 = vadd.f32 %v2113, %v2153
    %v2155 = vpop.f32.mrb[0].mxu0
    %v2156 = vpop.f32.mrb[0].mxu0
    %2157 = vdwg.mxu0
    %2158 = vmatprep.subr.bf16.mxu0 %v1485
    %2159 = vmatpush1.bf16.msra.mxu0 %v1484
    %2160 = vmatprep.subr.bf16.mxu0 %v1489
    %2161 = vmatpush1.bf16.msra.mxu0 %v1488
    %2162 = vmatprep.subr.bf16.mxu0 %v1493
    %2163 = vmatpush1.bf16.msra.mxu0 %v1492
    %2164 = vmatprep.subr.bf16.mxu0 %v1497
    %2165 = vmatpush1.bf16.msra.mxu0 %v1496
    %2166 = vmatprep.subr.bf16.mxu0 %v1501
    %2167 = vmatpush1.bf16.msra.mxu0 %v1500
    %2168 = vmatprep.subr.bf16.mxu0 %v1505
    %2169 = vmatpush1.bf16.msra.mxu0 %v1504
    %2170 = vmatprep.subr.bf16.mxu0 %v1509
    %2171 = vmatpush1.bf16.msra.mxu0 %v1508
    %2172 = vmatprep.subr.bf16.mxu0 %v1513
    %2173 = vmatpush1.bf16.msra.mxu0 %v1512
    %2174 = vmatprep.subr.bf16.mxu0 %v1517
    %2175 = vmatpush1.bf16.msra.mxu0 %v1516
    %2176 = vmatprep.subr.bf16.mxu0 %v1521
    %2177 = vmatpush1.bf16.msra.mxu0 %v1520
    %2178 = vmatprep.subr.bf16.mxu0 %v1525
    %2179 = vmatpush1.bf16.msra.mxu0 %v1524
    %2180 = vmatprep.subr.bf16.mxu0 %v1529
    %2181 = vmatpush1.bf16.msra.mxu0 %v1528
    %2182 = vmatprep.subr.bf16.mxu0 %v1533
    %2183 = vmatpush1.bf16.msra.mxu0 %v1532
    %2184 = vmatprep.subr.bf16.mxu0 %v1537
    %2185 = vmatpush1.bf16.msra.mxu0 %v1536
    %2186 = vmatprep.subr.bf16.mxu0 %v1541
    %2187 = vmatpush1.bf16.msra.mxu0 %v1540
    %2188 = vmatprep.subr.bf16.mxu0 %v1545
    %2189 = vmatpush1.bf16.msra.mxu0 %v1544
    %2190 = vmatprep.mubr.bf16.mxu0 %v429
    %2191 = vmatmul.mubr.bf16.gmra.mrb[0].mxu0 %v428
    %v2192 = vpop.f32.mrb[0].mxu0
    %v2193 = vadd.f32 %v705, %v2192
    %v2194 = vpop.f32.mrb[0].mxu0
    %v2195 = vadd.f32 %v709, %v2194
    %v2196 = vpop.f32.mrb[0].mxu0
    %v2197 = vpop.f32.mrb[0].mxu0
    %2198 = vdwg.mxu0
    %2199 = vmatprep.subr.bf16.mxu0 %v1549
    %2200 = vmatpush1.bf16.msra.mxu0 %v1548
    %2201 = vmatprep.subr.bf16.mxu0 %v1553
    %2202 = vmatpush1.bf16.msra.mxu0 %v1552
    %2203 = vmatprep.subr.bf16.mxu0 %v1557
    %2204 = vmatpush1.bf16.msra.mxu0 %v1556
    %2205 = vmatprep.subr.bf16.mxu0 %v1561
    %2206 = vmatpush1.bf16.msra.mxu0 %v1560
    %2207 = vmatprep.subr.bf16.mxu0 %v1565
    %2208 = vmatpush1.bf16.msra.mxu0 %v1564
    %2209 = vmatprep.subr.bf16.mxu0 %v1569
    %2210 = vmatpush1.bf16.msra.mxu0 %v1568
    %2211 = vmatprep.subr.bf16.mxu0 %v1573
    %2212 = vmatpush1.bf16.msra.mxu0 %v1572
    %2213 = vmatprep.subr.bf16.mxu0 %v1577
    %2214 = vmatpush1.bf16.msra.mxu0 %v1576
    %2215 = vmatprep.subr.bf16.mxu0 %v1581
    %2216 = vmatpush1.bf16.msra.mxu0 %v1580
    %2217 = vmatprep.subr.bf16.mxu0 %v1585
    %2218 = vmatpush1.bf16.msra.mxu0 %v1584
    %2219 = vmatprep.subr.bf16.mxu0 %v1589
    %2220 = vmatpush1.bf16.msra.mxu0 %v1588
    %2221 = vmatprep.subr.bf16.mxu0 %v1593
    %2222 = vmatpush1.bf16.msra.mxu0 %v1592
    %2223 = vmatprep.subr.bf16.mxu0 %v1597
    %2224 = vmatpush1.bf16.msra.mxu0 %v1596
    %2225 = vmatprep.subr.bf16.mxu0 %v1601
    %2226 = vmatpush1.bf16.msra.mxu0 %v1600
    %2227 = vmatprep.subr.bf16.mxu0 %v1605
    %2228 = vmatpush1.bf16.msra.mxu0 %v1604
    %2229 = vmatprep.subr.bf16.mxu0 %v1609
    %2230 = vmatpush1.bf16.msra.mxu0 %v1608
    %2231 = vmatprep.mubr.bf16.mxu0 %v431
    %2232 = vmatmul.mubr.bf16.gmra.mrb[0].mxu0 %v430
    %v2233 = vpop.f32.mrb[0].mxu0
    %v2234 = vadd.f32 %v2193, %v2233
    %v2235 = vpop.f32.mrb[0].mxu0
    %v2236 = vadd.f32 %v2195, %v2235
    %v2237 = vpop.f32.mrb[0].mxu0
    %v2238 = vpop.f32.mrb[0].mxu0
    %2239 = vdwg.mxu0
    %2240 = vmatprep.subr.bf16.mxu0 %v1613
    %2241 = vmatpush1.bf16.msra.mxu0 %v1612
    %2242 = vmatprep.subr.bf16.mxu0 %v1617
    %2243 = vmatpush1.bf16.msra.mxu0 %v1616
    %2244 = vmatprep.subr.bf16.mxu0 %v1621
    %2245 = vmatpush1.bf16.msra.mxu0 %v1620
    %2246 = vmatprep.subr.bf16.mxu0 %v1625
    %2247 = vmatpush1.bf16.msra.mxu0 %v1624
    %2248 = vmatprep.subr.bf16.mxu0 %v1629
    %2249 = vmatpush1.bf16.msra.mxu0 %v1628
    %2250 = vmatprep.subr.bf16.mxu0 %v1633
    %2251 = vmatpush1.bf16.msra.mxu0 %v1632
    %2252 = vmatprep.subr.bf16.mxu0 %v1637
    %2253 = vmatpush1.bf16.msra.mxu0 %v1636
    %2254 = vmatprep.subr.bf16.mxu0 %v1641
    %2255 = vmatpush1.bf16.msra.mxu0 %v1640
    %2256 = vmatprep.subr.bf16.mxu0 %v1645
    %2257 = vmatpush1.bf16.msra.mxu0 %v1644
    %2258 = vmatprep.subr.bf16.mxu0 %v1649
    %2259 = vmatpush1.bf16.msra.mxu0 %v1648
    %2260 = vmatprep.subr.bf16.mxu0 %v1653
    %2261 = vmatpush1.bf16.msra.mxu0 %v1652
    %2262 = vmatprep.subr.bf16.mxu0 %v1657
    %2263 = vmatpush1.bf16.msra.mxu0 %v1656
    %2264 = vmatprep.subr.bf16.mxu0 %v1661
    %2265 = vmatpush1.bf16.msra.mxu0 %v1660
    %2266 = vmatprep.subr.bf16.mxu0 %v1665
    %2267 = vmatpush1.bf16.msra.mxu0 %v1664
    %2268 = vmatprep.subr.bf16.mxu0 %v1669
    %2269 = vmatpush1.bf16.msra.mxu0 %v1668
    %2270 = vmatprep.subr.bf16.mxu0 %v1673
    %2271 = vmatpush1.bf16.msra.mxu0 %v1672
    %2272 = vmatprep.mubr.bf16.mxu0 %v433
    %2273 = vmatmul.mubr.bf16.gmra.mrb[0].mxu0 %v432
    %v2274 = vpop.f32.mrb[0].mxu0
    %v2275 = vadd.f32 %v2234, %v2274
    %v2276 = vpop.f32.mrb[0].mxu0
    %v2277 = vadd.f32 %v2236, %v2276
    %v2278 = vpop.f32.mrb[0].mxu0
    %v2279 = vpop.f32.mrb[0].mxu0
    %2280 = vdwg.mxu0
    %2281 = vmatprep.subr.bf16.mxu0 %v1677
    %2282 = vmatpush1.bf16.msra.mxu0 %v1676
    %2283 = vmatprep.subr.bf16.mxu0 %v1681
    %2284 = vmatpush1.bf16.msra.mxu0 %v1680
    %2285 = vmatprep.subr.bf16.mxu0 %v1685
    %2286 = vmatpush1.bf16.msra.mxu0 %v1684
    %2287 = vmatprep.subr.bf16.mxu0 %v1689
    %2288 = vmatpush1.bf16.msra.mxu0 %v1688
    %2289 = vmatprep.subr.bf16.mxu0 %v1693
    %2290 = vmatpush1.bf16.msra.mxu0 %v1692
    %2291 = vmatprep.subr.bf16.mxu0 %v1697
    %2292 = vmatpush1.bf16.msra.mxu0 %v1696
    %2293 = vmatprep.subr.bf16.mxu0 %v1701
    %2294 = vmatpush1.bf16.msra.mxu0 %v1700
    %2295 = vmatprep.subr.bf16.mxu0 %v1705
    %2296 = vmatpush1.bf16.msra.mxu0 %v1704
    %2297 = vmatprep.subr.bf16.mxu0 %v1709
    %2298 = vmatpush1.bf16.msra.mxu0 %v1708
    %2299 = vmatprep.subr.bf16.mxu0 %v1713
    %2300 = vmatpush1.bf16.msra.mxu0 %v1712
    %2301 = vmatprep.subr.bf16.mxu0 %v1717
    %2302 = vmatpush1.bf16.msra.mxu0 %v1716
    %2303 = vmatprep.subr.bf16.mxu0 %v1721
    %2304 = vmatpush1.bf16.msra.mxu0 %v1720
    %2305 = vmatprep.subr.bf16.mxu0 %v1725
    %2306 = vmatpush1.bf16.msra.mxu0 %v1724
    %2307 = vmatprep.subr.bf16.mxu0 %v1729
    %2308 = vmatpush1.bf16.msra.mxu0 %v1728
    %2309 = vmatprep.subr.bf16.mxu0 %v1733
    %2310 = vmatpush1.bf16.msra.mxu0 %v1732
    %2311 = vmatprep.subr.bf16.mxu0 %v1737
    %2312 = vmatpush1.bf16.msra.mxu0 %v1736
    %2313 = vmatprep.mubr.bf16.mxu0 %v435
    %2314 = vmatmul.mubr.bf16.gmra.mrb[0].mxu0 %v434
    %v2315 = vpop.f32.mrb[0].mxu0
    %v2316 = vadd.f32 %v2275, %v2315
    %v2317 = vpop.f32.mrb[0].mxu0
    %v2318 = vadd.f32 %v2277, %v2317
    %v2319 = vpop.f32.mrb[0].mxu0
    %v2320 = vpop.f32.mrb[0].mxu0
    %2321 = vdwg.mxu0
    %v2322 = vmax.f32 %v2152, 0.0
    %v2323 = vmax.f32 %v2154, 0.0
    %v2324 = vmax.f32 %v2316, 0.0
    %v2325 = vmax.f32 %v2318, 0.0
    %v2326 = vpack.c.bf16 %v2322, %v2322
    %v2327 = vpack.c.bf16 %v2323, %v2323
    %v2328 = vpack.c.bf16 %v2324, %v2324
    %v2329 = vpack.c.bf16 %v2325, %v2325
    %v2330 = vld [vmem:[#allocation10] sm:$0xff]
    %v2331 = vld [vmem:[#allocation10 + $0x8] sm:$0xff]
    %v2332 = vld [vmem:[#allocation10 + $0x10] sm:$0xff]
    %v2333 = vld [vmem:[#allocation10 + $0x18] sm:$0xff]
    %v2334 = vld [vmem:[#allocation10 + $0x20] sm:$0xff]
    %v2335 = vld [vmem:[#allocation10 + $0x28] sm:$0xff]
    %v2336 = vld [vmem:[#allocation10 + $0x30] sm:$0xff]
    %v2337 = vld [vmem:[#allocation10 + $0x38] sm:$0xff]
    %v2338 = vld [vmem:[#allocation10 + $0x40] sm:$0xff]
    %v2339 = vld [vmem:[#allocation10 + $0x48] sm:$0xff]
    %v2340 = vld [vmem:[#allocation10 + $0x50] sm:$0xff]
    %v2341 = vld [vmem:[#allocation10 + $0x58] sm:$0xff]
    %v2342 = vld [vmem:[#allocation10 + $0x60] sm:$0xff]
    %v2343 = vld [vmem:[#allocation10 + $0x68] sm:$0xff]
    %v2344 = vld [vmem:[#allocation10 + $0x70] sm:$0xff]
    %v2345 = vld [vmem:[#allocation10 + $0x78] sm:$0xff]
    %v2346 = vld [vmem:[#allocation10 + $0x80] sm:$0xff]
    %v2347 = vld [vmem:[#allocation10 + $0x88] sm:$0xff]
    %v2348 = vld [vmem:[#allocation10 + $0x90] sm:$0xff]
    %v2349 = vld [vmem:[#allocation10 + $0x98] sm:$0xff]
    %v2350 = vld [vmem:[#allocation10 + $0xa0] sm:$0xff]
    %v2351 = vld [vmem:[#allocation10 + $0xa8] sm:$0xff]
    %v2352 = vld [vmem:[#allocation10 + $0xb0] sm:$0xff]
    %v2353 = vld [vmem:[#allocation10 + $0xb8] sm:$0xff]
    %v2354 = vld [vmem:[#allocation10 + $0xc0] sm:$0xff]
    %v2355 = vld [vmem:[#allocation10 + $0xc8] sm:$0xff]
    %v2356 = vld [vmem:[#allocation10 + $0xd0] sm:$0xff]
    %v2357 = vld [vmem:[#allocation10 + $0xd8] sm:$0xff]
    %v2358 = vld [vmem:[#allocation10 + $0xe0] sm:$0xff]
    %v2359 = vld [vmem:[#allocation10 + $0xe8] sm:$0xff]
    %v2360 = vld [vmem:[#allocation10 + $0xf0] sm:$0xff]
    %v2361 = vld [vmem:[#allocation10 + $0xf8] sm:$0xff]
    %v2362 = vld [vmem:[#allocation10 + $0x100] sm:$0xff]
    %v2363 = vld [vmem:[#allocation10 + $0x108] sm:$0xff]
    %v2364 = vld [vmem:[#allocation10 + $0x110] sm:$0xff]
    %v2365 = vld [vmem:[#allocation10 + $0x118] sm:$0xff]
    %v2366 = vld [vmem:[#allocation10 + $0x120] sm:$0xff]
    %v2367 = vld [vmem:[#allocation10 + $0x128] sm:$0xff]
    %v2368 = vld [vmem:[#allocation10 + $0x130] sm:$0xff]
    %v2369 = vld [vmem:[#allocation10 + $0x138] sm:$0xff]
    %v2370 = vld [vmem:[#allocation10 + $0x140] sm:$0xff]
    %v2371 = vld [vmem:[#allocation10 + $0x148] sm:$0xff]
    %v2372 = vld [vmem:[#allocation10 + $0x150] sm:$0xff]
    %v2373 = vld [vmem:[#allocation10 + $0x158] sm:$0xff]
    %v2374 = vld [vmem:[#allocation10 + $0x160] sm:$0xff]
    %v2375 = vld [vmem:[#allocation10 + $0x168] sm:$0xff]
    %v2376 = vld [vmem:[#allocation10 + $0x170] sm:$0xff]
    %v2377 = vld [vmem:[#allocation10 + $0x178] sm:$0xff]
    %v2378 = vld [vmem:[#allocation10 + $0x180] sm:$0xff]
    %v2379 = vld [vmem:[#allocation10 + $0x188] sm:$0xff]
    %v2380 = vld [vmem:[#allocation10 + $0x190] sm:$0xff]
    %v2381 = vld [vmem:[#allocation10 + $0x198] sm:$0xff]
    %v2382 = vld [vmem:[#allocation10 + $0x1a0] sm:$0xff]
    %v2383 = vld [vmem:[#allocation10 + $0x1a8] sm:$0xff]
    %v2384 = vld [vmem:[#allocation10 + $0x1b0] sm:$0xff]
    %v2385 = vld [vmem:[#allocation10 + $0x1b8] sm:$0xff]
    %v2386 = vld [vmem:[#allocation10 + $0x1c0] sm:$0xff]
    %v2387 = vld [vmem:[#allocation10 + $0x1c8] sm:$0xff]
    %v2388 = vld [vmem:[#allocation10 + $0x1d0] sm:$0xff]
    %v2389 = vld [vmem:[#allocation10 + $0x1d8] sm:$0xff]
    %v2390 = vld [vmem:[#allocation10 + $0x1e0] sm:$0xff]
    %v2391 = vld [vmem:[#allocation10 + $0x1e8] sm:$0xff]
    %v2392 = vld [vmem:[#allocation10 + $0x1f0] sm:$0xff]
    %v2393 = vld [vmem:[#allocation10 + $0x1f8] sm:$0xff]
    %v2394 = vld [vmem:[%s6] sm:$0x3]
    %v2396 = vlaneseq
    %v2397 = vshrl.u32 %v2396, 7
    %v2398 = vsub.s32 0, %v2397
    %v2399 = vrot.slane %v2394, %v2398
    %v2400 = vlaneseq
    %v2401 = vshrl.u32 %v2400, 7
    %v2402 = vsub.s32 1, %v2401
    %v2403 = vrot.slane %v2394, %v2402
    %v2470 = vunpack.c.l.b16 %v2330
    %v2471 = vunpack.c.h.b16 %v2330
    %v2472 = vunpack.c.l.b16 %v2331
    %v2473 = vunpack.c.h.b16 %v2331
    %v2474 = vunpack.c.l.b16 %v2332
    %v2475 = vunpack.c.h.b16 %v2332
    %v2476 = vunpack.c.l.b16 %v2333
    %v2477 = vunpack.c.h.b16 %v2333
    %v2478 = vunpack.c.l.b16 %v2334
    %v2479 = vunpack.c.h.b16 %v2334
    %v2480 = vunpack.c.l.b16 %v2335
    %v2481 = vunpack.c.h.b16 %v2335
    %v2482 = vunpack.c.l.b16 %v2336
    %v2483 = vunpack.c.h.b16 %v2336
    %v2484 = vunpack.c.l.b16 %v2337
    %v2485 = vunpack.c.h.b16 %v2337
    %v2486 = vunpack.c.l.b16 %v2338
    %v2487 = vunpack.c.h.b16 %v2338
    %v2488 = vunpack.c.l.b16 %v2339
    %v2489 = vunpack.c.h.b16 %v2339
    %v2490 = vunpack.c.l.b16 %v2340
    %v2491 = vunpack.c.h.b16 %v2340
    %v2492 = vunpack.c.l.b16 %v2341
    %v2493 = vunpack.c.h.b16 %v2341
    %v2494 = vunpack.c.l.b16 %v2342
    %v2495 = vunpack.c.h.b16 %v2342
    %v2496 = vunpack.c.l.b16 %v2343
    %v2497 = vunpack.c.h.b16 %v2343
    %v2498 = vunpack.c.l.b16 %v2344
    %v2499 = vunpack.c.h.b16 %v2344
    %v2500 = vunpack.c.l.b16 %v2345
    %v2501 = vunpack.c.h.b16 %v2345
    %v2502 = vunpack.c.l.b16 %v2346
    %v2503 = vunpack.c.h.b16 %v2346
    %v2504 = vunpack.c.l.b16 %v2347
    %v2505 = vunpack.c.h.b16 %v2347
    %v2506 = vunpack.c.l.b16 %v2348
    %v2507 = vunpack.c.h.b16 %v2348
    %v2508 = vunpack.c.l.b16 %v2349
    %v2509 = vunpack.c.h.b16 %v2349
    %v2510 = vunpack.c.l.b16 %v2350
    %v2511 = vunpack.c.h.b16 %v2350
    %v2512 = vunpack.c.l.b16 %v2351
    %v2513 = vunpack.c.h.b16 %v2351
    %v2514 = vunpack.c.l.b16 %v2352
    %v2515 = vunpack.c.h.b16 %v2352
    %v2516 = vunpack.c.l.b16 %v2353
    %v2517 = vunpack.c.h.b16 %v2353
    %v2518 = vunpack.c.l.b16 %v2354
    %v2519 = vunpack.c.h.b16 %v2354
    %v2520 = vunpack.c.l.b16 %v2355
    %v2521 = vunpack.c.h.b16 %v2355
    %v2522 = vunpack.c.l.b16 %v2356
    %v2523 = vunpack.c.h.b16 %v2356
    %v2524 = vunpack.c.l.b16 %v2357
    %v2525 = vunpack.c.h.b16 %v2357
    %v2526 = vunpack.c.l.b16 %v2358
    %v2527 = vunpack.c.h.b16 %v2358
    %v2528 = vunpack.c.l.b16 %v2359
    %v2529 = vunpack.c.h.b16 %v2359
    %v2530 = vunpack.c.l.b16 %v2360
    %v2531 = vunpack.c.h.b16 %v2360
    %v2532 = vunpack.c.l.b16 %v2361
    %v2533 = vunpack.c.h.b16 %v2361
    %v2534 = vunpack.c.l.b16 %v2362
    %v2535 = vunpack.c.h.b16 %v2362
    %v2536 = vunpack.c.l.b16 %v2363
    %v2537 = vunpack.c.h.b16 %v2363
    %v2538 = vunpack.c.l.b16 %v2364
    %v2539 = vunpack.c.h.b16 %v2364
    %v2540 = vunpack.c.l.b16 %v2365
    %v2541 = vunpack.c.h.b16 %v2365
    %v2542 = vunpack.c.l.b16 %v2366
    %v2543 = vunpack.c.h.b16 %v2366
    %v2544 = vunpack.c.l.b16 %v2367
    %v2545 = vunpack.c.h.b16 %v2367
    %v2546 = vunpack.c.l.b16 %v2368
    %v2547 = vunpack.c.h.b16 %v2368
    %v2548 = vunpack.c.l.b16 %v2369
    %v2549 = vunpack.c.h.b16 %v2369
    %v2550 = vunpack.c.l.b16 %v2370
    %v2551 = vunpack.c.h.b16 %v2370
    %v2552 = vunpack.c.l.b16 %v2371
    %v2553 = vunpack.c.h.b16 %v2371
    %v2554 = vunpack.c.l.b16 %v2372
    %v2555 = vunpack.c.h.b16 %v2372
    %v2556 = vunpack.c.l.b16 %v2373
    %v2557 = vunpack.c.h.b16 %v2373
    %v2558 = vunpack.c.l.b16 %v2374
    %v2559 = vunpack.c.h.b16 %v2374
    %v2560 = vunpack.c.l.b16 %v2375
    %v2561 = vunpack.c.h.b16 %v2375
    %v2562 = vunpack.c.l.b16 %v2376
    %v2563 = vunpack.c.h.b16 %v2376
    %v2564 = vunpack.c.l.b16 %v2377
    %v2565 = vunpack.c.h.b16 %v2377
    %v2566 = vunpack.c.l.b16 %v2378
    %v2567 = vunpack.c.h.b16 %v2378
    %v2568 = vunpack.c.l.b16 %v2379
    %v2569 = vunpack.c.h.b16 %v2379
    %v2570 = vunpack.c.l.b16 %v2380
    %v2571 = vunpack.c.h.b16 %v2380
    %v2572 = vunpack.c.l.b16 %v2381
    %v2573 = vunpack.c.h.b16 %v2381
    %v2574 = vunpack.c.l.b16 %v2382
    %v2575 = vunpack.c.h.b16 %v2382
    %v2576 = vunpack.c.l.b16 %v2383
    %v2577 = vunpack.c.h.b16 %v2383
    %v2578 = vunpack.c.l.b16 %v2384
    %v2579 = vunpack.c.h.b16 %v2384
    %v2580 = vunpack.c.l.b16 %v2385
    %v2581 = vunpack.c.h.b16 %v2385
    %v2582 = vunpack.c.l.b16 %v2386
    %v2583 = vunpack.c.h.b16 %v2386
    %v2584 = vunpack.c.l.b16 %v2387
    %v2585 = vunpack.c.h.b16 %v2387
    %v2586 = vunpack.c.l.b16 %v2388
    %v2587 = vunpack.c.h.b16 %v2388
    %v2588 = vunpack.c.l.b16 %v2389
    %v2589 = vunpack.c.h.b16 %v2389
    %v2590 = vunpack.c.l.b16 %v2390
    %v2591 = vunpack.c.h.b16 %v2390
    %v2592 = vunpack.c.l.b16 %v2391
    %v2593 = vunpack.c.h.b16 %v2391
    %v2594 = vunpack.c.l.b16 %v2392
    %v2595 = vunpack.c.h.b16 %v2392
    %v2596 = vunpack.c.l.b16 %v2393
    %v2597 = vunpack.c.h.b16 %v2393
    %v2598 = vpack.c.b16 %v2472, %v2470
    %v2599 = vpack.c.b16 %v2473, %v2471
    %v2600 = vpack.c.b16 %v2476, %v2474
    %v2601 = vpack.c.b16 %v2477, %v2475
    %v2602 = vpack.c.b16 %v2480, %v2478
    %v2603 = vpack.c.b16 %v2481, %v2479
    %v2604 = vpack.c.b16 %v2484, %v2482
    %v2605 = vpack.c.b16 %v2485, %v2483
    %v2606 = vpack.c.b16 %v2488, %v2486
    %v2607 = vpack.c.b16 %v2489, %v2487
    %v2608 = vpack.c.b16 %v2492, %v2490
    %v2609 = vpack.c.b16 %v2493, %v2491
    %v2610 = vpack.c.b16 %v2496, %v2494
    %v2611 = vpack.c.b16 %v2497, %v2495
    %v2612 = vpack.c.b16 %v2500, %v2498
    %v2613 = vpack.c.b16 %v2501, %v2499
    %v2614 = vpack.c.b16 %v2504, %v2502
    %v2615 = vpack.c.b16 %v2505, %v2503
    %v2616 = vpack.c.b16 %v2508, %v2506
    %v2617 = vpack.c.b16 %v2509, %v2507
    %v2618 = vpack.c.b16 %v2512, %v2510
    %v2619 = vpack.c.b16 %v2513, %v2511
    %v2620 = vpack.c.b16 %v2516, %v2514
    %v2621 = vpack.c.b16 %v2517, %v2515
    %v2622 = vpack.c.b16 %v2520, %v2518
    %v2623 = vpack.c.b16 %v2521, %v2519
    %v2624 = vpack.c.b16 %v2524, %v2522
    %v2625 = vpack.c.b16 %v2525, %v2523
    %v2626 = vpack.c.b16 %v2528, %v2526
    %v2627 = vpack.c.b16 %v2529, %v2527
    %v2628 = vpack.c.b16 %v2532, %v2530
    %v2629 = vpack.c.b16 %v2533, %v2531
    %v2630 = vpack.c.b16 %v2536, %v2534
    %v2631 = vpack.c.b16 %v2537, %v2535
    %v2632 = vpack.c.b16 %v2540, %v2538
    %v2633 = vpack.c.b16 %v2541, %v2539
    %v2634 = vpack.c.b16 %v2544, %v2542
    %v2635 = vpack.c.b16 %v2545, %v2543
    %v2636 = vpack.c.b16 %v2548, %v2546
    %v2637 = vpack.c.b16 %v2549, %v2547
    %v2638 = vpack.c.b16 %v2552, %v2550
    %v2639 = vpack.c.b16 %v2553, %v2551
    %v2640 = vpack.c.b16 %v2556, %v2554
    %v2641 = vpack.c.b16 %v2557, %v2555
    %v2642 = vpack.c.b16 %v2560, %v2558
    %v2643 = vpack.c.b16 %v2561, %v2559
    %v2644 = vpack.c.b16 %v2564, %v2562
    %v2645 = vpack.c.b16 %v2565, %v2563
    %v2646 = vpack.c.b16 %v2568, %v2566
    %v2647 = vpack.c.b16 %v2569, %v2567
    %v2648 = vpack.c.b16 %v2572, %v2570
    %v2649 = vpack.c.b16 %v2573, %v2571
    %v2650 = vpack.c.b16 %v2576, %v2574
    %v2651 = vpack.c.b16 %v2577, %v2575
    %v2652 = vpack.c.b16 %v2580, %v2578
    %v2653 = vpack.c.b16 %v2581, %v2579
    %v2654 = vpack.c.b16 %v2584, %v2582
    %v2655 = vpack.c.b16 %v2585, %v2583
    %v2656 = vpack.c.b16 %v2588, %v2586
    %v2657 = vpack.c.b16 %v2589, %v2587
    %v2658 = vpack.c.b16 %v2592, %v2590
    %v2659 = vpack.c.b16 %v2593, %v2591
    %v2660 = vpack.c.b16 %v2596, %v2594
    %v2661 = vpack.c.b16 %v2597, %v2595
    %2726 = vmatprep.subr.bf16.mxu0 %v2599
    %2727 = vmatpush1.bf16.msra.mxu0 %v2598
    %2728 = vmatprep.subr.bf16.mxu0 %v2601
    %2729 = vmatpush1.bf16.msra.mxu0 %v2600
    %2730 = vmatprep.subr.bf16.mxu0 %v2603
    %2731 = vmatpush1.bf16.msra.mxu0 %v2602
    %2732 = vmatprep.subr.bf16.mxu0 %v2605
    %2733 = vmatpush1.bf16.msra.mxu0 %v2604
    %2734 = vmatprep.subr.bf16.mxu0 %v2607
    %2735 = vmatpush1.bf16.msra.mxu0 %v2606
    %2736 = vmatprep.subr.bf16.mxu0 %v2609
    %2737 = vmatpush1.bf16.msra.mxu0 %v2608
    %2738 = vmatprep.subr.bf16.mxu0 %v2611
    %2739 = vmatpush1.bf16.msra.mxu0 %v2610
    %2740 = vmatprep.subr.bf16.mxu0 %v2613
    %2741 = vmatpush1.bf16.msra.mxu0 %v2612
    %2742 = vmatprep.subr.bf16.mxu0 %v2615
    %2743 = vmatpush1.bf16.msra.mxu0 %v2614
    %2744 = vmatprep.subr.bf16.mxu0 %v2617
    %2745 = vmatpush1.bf16.msra.mxu0 %v2616
    %2746 = vmatprep.subr.bf16.mxu0 %v2619
    %2747 = vmatpush1.bf16.msra.mxu0 %v2618
    %2748 = vmatprep.subr.bf16.mxu0 %v2621
    %2749 = vmatpush1.bf16.msra.mxu0 %v2620
    %2750 = vmatprep.subr.bf16.mxu0 %v2623
    %2751 = vmatpush1.bf16.msra.mxu0 %v2622
    %2752 = vmatprep.subr.bf16.mxu0 %v2625
    %2753 = vmatpush1.bf16.msra.mxu0 %v2624
    %2754 = vmatprep.subr.bf16.mxu0 %v2627
    %2755 = vmatpush1.bf16.msra.mxu0 %v2626
    %2756 = vmatprep.subr.bf16.mxu0 %v2629
    %2757 = vmatpush1.bf16.msra.mxu0 %v2628
    %2758 = vmatprep.mubr.bf16.mxu0 %v2327
    %2759 = vmatmul.mubr.bf16.gmra.mrb[0].mxu0 %v2326
    %v2760 = vpop.f32.mrb[0].mxu0
    %v2761 = vadd.f32 %v2399, %v2760
    %v2762 = vpop.f32.mrb[0].mxu0
    %v2763 = vadd.f32 %v2403, %v2762
    %v2764 = vpop.f32.mrb[0].mxu0
    %v2765 = vpop.f32.mrb[0].mxu0
    %2766 = vdwg.mxu0
    %2767 = vmatprep.subr.bf16.mxu0 %v2631
    %2768 = vmatpush1.bf16.msra.mxu0 %v2630
    %2769 = vmatprep.subr.bf16.mxu0 %v2633
    %2770 = vmatpush1.bf16.msra.mxu0 %v2632
    %2771 = vmatprep.subr.bf16.mxu0 %v2635
    %2772 = vmatpush1.bf16.msra.mxu0 %v2634
    %2773 = vmatprep.subr.bf16.mxu0 %v2637
    %2774 = vmatpush1.bf16.msra.mxu0 %v2636
    %2775 = vmatprep.subr.bf16.mxu0 %v2639
    %2776 = vmatpush1.bf16.msra.mxu0 %v2638
    %2777 = vmatprep.subr.bf16.mxu0 %v2641
    %2778 = vmatpush1.bf16.msra.mxu0 %v2640
    %2779 = vmatprep.subr.bf16.mxu0 %v2643
    %2780 = vmatpush1.bf16.msra.mxu0 %v2642
    %2781 = vmatprep.subr.bf16.mxu0 %v2645
    %2782 = vmatpush1.bf16.msra.mxu0 %v2644
    %2783 = vmatprep.subr.bf16.mxu0 %v2647
    %2784 = vmatpush1.bf16.msra.mxu0 %v2646
    %2785 = vmatprep.subr.bf16.mxu0 %v2649
    %2786 = vmatpush1.bf16.msra.mxu0 %v2648
    %2787 = vmatprep.subr.bf16.mxu0 %v2651
    %2788 = vmatpush1.bf16.msra.mxu0 %v2650
    %2789 = vmatprep.subr.bf16.mxu0 %v2653
    %2790 = vmatpush1.bf16.msra.mxu0 %v2652
    %2791 = vmatprep.subr.bf16.mxu0 %v2655
    %2792 = vmatpush1.bf16.msra.mxu0 %v2654
    %2793 = vmatprep.subr.bf16.mxu0 %v2657
    %2794 = vmatpush1.bf16.msra.mxu0 %v2656
    %2795 = vmatprep.subr.bf16.mxu0 %v2659
    %2796 = vmatpush1.bf16.msra.mxu0 %v2658
    %2797 = vmatprep.subr.bf16.mxu0 %v2661
    %2798 = vmatpush1.bf16.msra.mxu0 %v2660
    %2799 = vmatprep.mubr.bf16.mxu0 %v2329
    %2800 = vmatmul.mubr.bf16.gmra.mrb[0].mxu0 %v2328
    %v2801 = vpop.f32.mrb[0].mxu0
    %v2802 = vadd.f32 %v2761, %v2801
    %v2803 = vpop.f32.mrb[0].mxu0
    %v2804 = vadd.f32 %v2763, %v2803
    %v2805 = vpop.f32.mrb[0].mxu0
    %v2806 = vpop.f32.mrb[0].mxu0
    %2807 = vdwg.mxu0
    %v2808 = vmax.f32 %v2802, 0.0
    %v2809 = vmax.f32 %v2804, 0.0
    %v2810 = vpack.c.bf16 %v2808, %v2808
    %v2811 = vpack.c.bf16 %v2809, %v2809
    %v2812 = vld [vmem:[#allocation11] sm:$0xf]
    %v2813 = vld [vmem:[#allocation11 + $0x4] sm:$0xf]
    %v2814 = vld [vmem:[#allocation11 + $0x8] sm:$0xf]
    %v2815 = vld [vmem:[#allocation11 + $0xc] sm:$0xf]
    %v2816 = vld [vmem:[#allocation11 + $0x10] sm:$0xf]
    %v2817 = vld [vmem:[#allocation11 + $0x14] sm:$0xf]
    %v2818 = vld [vmem:[#allocation11 + $0x18] sm:$0xf]
    %v2819 = vld [vmem:[#allocation11 + $0x1c] sm:$0xf]
    %v2820 = vld [vmem:[#allocation11 + $0x20] sm:$0xf]
    %v2821 = vld [vmem:[#allocation11 + $0x24] sm:$0xf]
    %v2822 = vld [vmem:[#allocation11 + $0x28] sm:$0xf]
    %v2823 = vld [vmem:[#allocation11 + $0x2c] sm:$0xf]
    %v2824 = vld [vmem:[#allocation11 + $0x30] sm:$0xf]
    %v2825 = vld [vmem:[#allocation11 + $0x34] sm:$0xf]
    %v2826 = vld [vmem:[#allocation11 + $0x38] sm:$0xf]
    %v2827 = vld [vmem:[#allocation11 + $0x3c] sm:$0xf]
    %v2828 = vld [vmem:[#allocation11 + $0x40] sm:$0xf]
    %v2829 = vld [vmem:[#allocation11 + $0x44] sm:$0xf]
    %v2830 = vld [vmem:[#allocation11 + $0x48] sm:$0xf]
    %v2831 = vld [vmem:[#allocation11 + $0x4c] sm:$0xf]
    %v2832 = vld [vmem:[#allocation11 + $0x50] sm:$0xf]
    %v2833 = vld [vmem:[#allocation11 + $0x54] sm:$0xf]
    %v2834 = vld [vmem:[#allocation11 + $0x58] sm:$0xf]
    %v2835 = vld [vmem:[#allocation11 + $0x5c] sm:$0xf]
    %v2836 = vld [vmem:[#allocation11 + $0x60] sm:$0xf]
    %v2837 = vld [vmem:[#allocation11 + $0x64] sm:$0xf]
    %v2838 = vld [vmem:[#allocation11 + $0x68] sm:$0xf]
    %v2839 = vld [vmem:[#allocation11 + $0x6c] sm:$0xf]
    %v2840 = vld [vmem:[#allocation11 + $0x70] sm:$0xf]
    %v2841 = vld [vmem:[#allocation11 + $0x74] sm:$0xf]
    %v2842 = vld [vmem:[#allocation11 + $0x78] sm:$0xf]
    %v2843 = vld [vmem:[#allocation11 + $0x7c] sm:$0xf]
    %v2844 = vld [vmem:[%s8] sm:$0x1]
    %v2846 = vlaneseq
    %v2847 = vshrl.u32 %v2846, 7
    %v2848 = vsub.s32 0, %v2847
    %v2849 = vrot.slane %v2844, %v2848
    %v2883 = vunpack.c.l.b16 %v2812
    %v2884 = vunpack.c.l.b16 %v2813
    %v2885 = vunpack.c.l.b16 %v2814
    %v2886 = vunpack.c.l.b16 %v2815
    %v2887 = vunpack.c.l.b16 %v2816
    %v2888 = vunpack.c.l.b16 %v2817
    %v2889 = vunpack.c.l.b16 %v2818
    %v2890 = vunpack.c.l.b16 %v2819
    %v2891 = vunpack.c.l.b16 %v2820
    %v2892 = vunpack.c.l.b16 %v2821
    %v2893 = vunpack.c.l.b16 %v2822
    %v2894 = vunpack.c.l.b16 %v2823
    %v2895 = vunpack.c.l.b16 %v2824
    %v2896 = vunpack.c.l.b16 %v2825
    %v2897 = vunpack.c.l.b16 %v2826
    %v2898 = vunpack.c.l.b16 %v2827
    %v2899 = vunpack.c.l.b16 %v2828
    %v2900 = vunpack.c.l.b16 %v2829
    %v2901 = vunpack.c.l.b16 %v2830
    %v2902 = vunpack.c.l.b16 %v2831
    %v2903 = vunpack.c.l.b16 %v2832
    %v2904 = vunpack.c.l.b16 %v2833
    %v2905 = vunpack.c.l.b16 %v2834
    %v2906 = vunpack.c.l.b16 %v2835
    %v2907 = vunpack.c.l.b16 %v2836
    %v2908 = vunpack.c.l.b16 %v2837
    %v2909 = vunpack.c.l.b16 %v2838
    %v2910 = vunpack.c.l.b16 %v2839
    %v2911 = vunpack.c.l.b16 %v2840
    %v2912 = vunpack.c.l.b16 %v2841
    %v2913 = vunpack.c.l.b16 %v2842
    %v2914 = vunpack.c.l.b16 %v2843
    %v2915 = vpack.c.b16 %v2884, %v2883
    %v2916 = vpack.c.b16 %v2886, %v2885
    %v2917 = vpack.c.b16 %v2888, %v2887
    %v2918 = vpack.c.b16 %v2890, %v2889
    %v2919 = vpack.c.b16 %v2892, %v2891
    %v2920 = vpack.c.b16 %v2894, %v2893
    %v2921 = vpack.c.b16 %v2896, %v2895
    %v2922 = vpack.c.b16 %v2898, %v2897
    %v2923 = vpack.c.b16 %v2900, %v2899
    %v2924 = vpack.c.b16 %v2902, %v2901
    %v2925 = vpack.c.b16 %v2904, %v2903
    %v2926 = vpack.c.b16 %v2906, %v2905
    %v2927 = vpack.c.b16 %v2908, %v2907
    %v2928 = vpack.c.b16 %v2910, %v2909
    %v2929 = vpack.c.b16 %v2912, %v2911
    %v2930 = vpack.c.b16 %v2914, %v2913
    %2947 = vmatprep.subr.bf16.mxu0 0
    %2948 = vmatpush1.bf16.msra.mxu0 %v2915
    %2949 = vmatprep.subr.bf16.mxu0 0
    %2950 = vmatpush1.bf16.msra.mxu0 %v2916
    %2951 = vmatprep.subr.bf16.mxu0 0
    %2952 = vmatpush1.bf16.msra.mxu0 %v2917
    %2953 = vmatprep.subr.bf16.mxu0 0
    %2954 = vmatpush1.bf16.msra.mxu0 %v2918
    %2955 = vmatprep.subr.bf16.mxu0 0
    %2956 = vmatpush1.bf16.msra.mxu0 %v2919
    %2957 = vmatprep.subr.bf16.mxu0 0
    %2958 = vmatpush1.bf16.msra.mxu0 %v2920
    %2959 = vmatprep.subr.bf16.mxu0 0
    %2960 = vmatpush1.bf16.msra.mxu0 %v2921
    %2961 = vmatprep.subr.bf16.mxu0 0
    %2962 = vmatpush1.bf16.msra.mxu0 %v2922
    %2963 = vmatprep.subr.bf16.mxu0 0
    %2964 = vmatpush1.bf16.msra.mxu0 %v2923
    %2965 = vmatprep.subr.bf16.mxu0 0
    %2966 = vmatpush1.bf16.msra.mxu0 %v2924
    %2967 = vmatprep.subr.bf16.mxu0 0
    %2968 = vmatpush1.bf16.msra.mxu0 %v2925
    %2969 = vmatprep.subr.bf16.mxu0 0
    %2970 = vmatpush1.bf16.msra.mxu0 %v2926
    %2971 = vmatprep.subr.bf16.mxu0 0
    %2972 = vmatpush1.bf16.msra.mxu0 %v2927
    %2973 = vmatprep.subr.bf16.mxu0 0
    %2974 = vmatpush1.bf16.msra.mxu0 %v2928
    %2975 = vmatprep.subr.bf16.mxu0 0
    %2976 = vmatpush1.bf16.msra.mxu0 %v2929
    %2977 = vmatprep.subr.bf16.mxu0 0
    %2978 = vmatpush1.bf16.msra.mxu0 %v2930
    %2979 = vmatprep.mubr.bf16.mxu0 %v2811
    %2980 = vmatmul.mubr.bf16.gmra.mrb[0].mxu0 %v2810
    %v2981 = vpop.f32.mrb[0].mxu0
    %v2982 = vadd.f32 %v2849, %v2981
    %v2983 = vpop.f32.mrb[0].mxu0
    %v2984 = vpop.f32.mrb[0].mxu0
    %v2985 = vpop.f32.mrb[0].mxu0
    %2986 = vdwg.mxu0
    %v2987 = vxor.u32 %v2982, 2147483648
    %v2988 = vmul.f32 %v2987, 1.442695
    %v2989 = vpow.pop %v2988
    %v2990 = vadd.f32 %v2989, 1.0
    %v2991 = vrcp.pop %v2990
    %v2992 = vmul.f32 1.0, %v2991
    %v2993 = vpack.c.bf16 %v2992, %v2992
    %2994 = vst [vmem:[#allocation13] sm:$0x1] %v2993
    // Predicated region
    $region62: #{tpu_custom_call.1} parent=1 // pred_check
      _
    $region63: #{tpu_custom_call.1} parent=1 // pred_check_branch
      %2996 = sbr.rel (0) target = $region65
    $region64: #{tpu_custom_call.1} parent=1 // pred_region
      %s2998 = ssub.s32 16, 16
      %2999 = vsyncadd [#allocation4], %s2998
      %s3001 = sshll.u32 [#allocation13], 4
      %s3002 = int_to_ptr.vmem [resolvable:$true] %s3001
      %3004 = dma.vmem_to_hbm [thread:$0]  %s3002, 16, %s9, [#allocation4]
    $region65: #{tpu_custom_call.1} parent=1 // pred_fallthru
      _
    // Predicated region
    $region66: #{tpu_custom_call.1} parent=1 // pred_check
      _
    $region67: #{tpu_custom_call.1} parent=1 // pred_check_branch
      %3006 = sbr.rel (0) target = $region69
    $region68: #{tpu_custom_call.1} parent=1 // pred_region
      %3007 = dma.done [#allocation4], 16
    $region69: #{tpu_custom_call.1} parent=1 // pred_fallthru
      _
    %3008 = vsyncpa [#allocation3], 1
    %3009 = vsyncpa [#allocation6], 1
    %3010 = vsyncpa [#allocation9], 1
    %3011 = vsyncpa [#allocation12], 1
    %3012 = vsyncpa [#allocation4], 1

// kernel: tpu_custom_call.1
$region0: #{tpu_custom_call.1}
  #allocation0 [shape = 'u32[]', space=smem, size = 0x4, offset = 0x4, fixed_abs, tag = 'smem constant byte address 0x4 - core index']
  #allocation1 [shape = 'u32[144,128]{1,0:T(1,128)}', space=vmem, size = 0x12000, scoped, tag = 'internal scratch']
  %s0 = inlined_call_operand.hbm [shape: f32[2,32], index: 0, kind: input, shape index: {}]
  %s1 = inlined_call_operand.hbm [shape: bf16[32,1024], index: 1, kind: input, shape index: {}]
  %s2 = inlined_call_operand.hbm [shape: f32[1,1024], index: 2, kind: input, shape index: {}]
  %s3 = inlined_call_operand.hbm [shape: bf16[1024,512], index: 3, kind: input, shape index: {}]
  %s4 = inlined_call_operand.vmem [shape: f32[1,512], index: 4, kind: input, shape index: {}]
  %s5 = inlined_call_operand.hbm [shape: bf16[512,256], index: 5, kind: input, shape index: {}]
  %s6 = inlined_call_operand.vmem [shape: f32[1,256], index: 6, kind: input, shape index: {}]
  %s7 = inlined_call_operand.hbm [shape: bf16[256,128], index: 7, kind: input, shape index: {}]
  %s8 = inlined_call_operand.vmem [shape: f32[1,128], index: 8, kind: input, shape index: {}]
  %s9 = inlined_call_operand.hbm [shape: bf16[2,128], index: 9, kind: output, shape index: {}]
  %s10 = sld [smem:[#allocation0]]
  $region70: #{tpu_custom_call.1} parent=0
    _
  %s12 = ssub.s32 1, %s10
  %s13 = scalar_select 0, %s12, %s10
  $region1: #{tpu_custom_call.1} parent=0
    #allocation2 [shape = 'u8[1024]{0}', space=vmem, size = 0x400, scoped, tag = 'input window, operand 0, single buffered']
    #allocation3 [shape = 's32[1]{0}', space=sflag, size = 0x4, scoped, tag = 'scoped memory for tpu_custom_call.1']
    #allocation4 [shape = 's32[1]{0}', space=sflag, size = 0x4, scoped, tag = 'scoped memory for tpu_custom_call.1']
    #allocation5 [shape = 'u8[65536]{0}', space=vmem, size = 0x10000, scoped, tag = 'input window, operand 1, single buffered']
    #allocation6 [shape = 's32[1]{0}', space=sflag, size = 0x4, scoped, tag = 'scoped memory for tpu_custom_call.1']
    #allocation7 [shape = 'u8[4096]{0}', space=vmem, size = 0x1000, scoped, tag = 'input window, operand 2, single buffered']
    #allocation8 [shape = 'u8[1048576]{0}', space=vmem, size = 0x100000, scoped, tag = 'input window, operand 3, single buffered']
    #allocation9 [shape = 's32[1]{0}', space=sflag, size = 0x4, scoped, tag = 'scoped memory for tpu_custom_call.1']
    #allocation10 [shape = 'u8[262144]{0}', space=vmem, size = 0x40000, scoped, tag = 'input window, operand 5, single buffered']
    #allocation11 [shape = 'u8[65536]{0}', space=vmem, size = 0x10000, scoped, tag = 'input window, operand 7, single buffered']
    #allocation12 [shape = 's32[1]{0}', space=sflag, size = 0x4, scoped, tag = 'scoped memory for tpu_custom_call.1']
    #allocation13 [shape = 'u8[512]{0}', space=vmem, size = 0x400, scoped, tag = 'output window, operand 0, single buffered']
    %14 = vsyncpa [#allocation3], 0
    %15 = vsyncpa [#allocation6], 0
    %16 = vsyncpa [#allocation9], 0
    %17 = vsyncpa [#allocation12], 0
    %18 = vsyncpa [#allocation4], 0
    // Predicated region
    $region2: #{tpu_custom_call.1} parent=1 // pred_check
      _
    $region3: #{tpu_custom_call.1} parent=1 // pred_check_branch
      %20 = sbr.rel (0) target = $region5
    $region4: #{tpu_custom_call.1} parent=1 // pred_region
      %s22 = ssub.s32 32, 32
      %23 = vsyncadd [#allocation3], %s22
      %s25 = sshll.u32 [#allocation2], 4
      %s26 = int_to_ptr.vmem [resolvable:$true] %s25
      %28 = dma.hbm_to_vmem [thread:$0]  %s0, 32, %s26, [#allocation3]
    $region5: #{tpu_custom_call.1} parent=1 // pred_fallthru
      _
    // Predicated region
    $region6: #{tpu_custom_call.1} parent=1 // pred_check
      _
    $region7: #{tpu_custom_call.1} parent=1 // pred_check_branch
      %30 = sbr.rel (0) target = $region9
    $region8: #{tpu_custom_call.1} parent=1 // pred_region
      %s32 = ssub.s32 2048, 2048
      %33 = vsyncadd [#allocation6], %s32
      %s34 = sshll.u32 [#allocation5], 4
      %s35 = int_to_ptr.vmem [resolvable:$true] %s34
      %40 = dma.hbm_to_vmem [thread:$0]  %s1, 2048, %s35, [#allocation6], 512, 512, 32
    $region9: #{tpu_custom_call.1} parent=1 // pred_fallthru
      _
    // Predicated region
    $region10: #{tpu_custom_call.1} parent=1 // pred_check
      _
    $region11: #{tpu_custom_call.1} parent=1 // pred_check_branch
      %42 = sbr.rel (0) target = $region13
    $region12: #{tpu_custom_call.1} parent=1 // pred_region
      %s44 = ssub.s32 128, 128
      %45 = vsyncadd [#allocation6], %s44
      %s47 = sshll.u32 [#allocation7], 4
      %s48 = int_to_ptr.vmem [resolvable:$true] %s47
      %50 = dma.hbm_to_vmem [thread:$0]  %s2, 128, %s48, [#allocation6]
    $region13: #{tpu_custom_call.1} parent=1 // pred_fallthru
      _
    // Predicated region
    $region14: #{tpu_custom_call.1} parent=1 // pred_check
      _
    $region15: #{tpu_custom_call.1} parent=1 // pred_check_branch
      %52 = sbr.rel (0) target = $region17
    $region16: #{tpu_custom_call.1} parent=1 // pred_region
      %s54 = ssub.s32 32768, 32768
      %55 = vsyncadd [#allocation9], %s54
      %s56 = sshll.u32 [#allocation8], 4
      %s57 = int_to_ptr.vmem [resolvable:$true] %s56
      %62 = dma.hbm_to_vmem [thread:$0]  %s3, 32768, %s57, [#allocation9], 256, 256, 16
    $region17: #{tpu_custom_call.1} parent=1 // pred_fallthru
      _
    // Predicated region
    $region18: #{tpu_custom_call.1} parent=1 // pred_check
      _
    $region19: #{tpu_custom_call.1} parent=1 // pred_check_branch
      %64 = sbr.rel (0) target = $region21
    $region20: #{tpu_custom_call.1} parent=1 // pred_region
      _
    $region21: #{tpu_custom_call.1} parent=1 // pred_fallthru
      _
    // Predicated region
    $region22: #{tpu_custom_call.1} parent=1 // pred_check
      _
    $region23: #{tpu_custom_call.1} parent=1 // pred_check_branch
      %66 = sbr.rel (0) target = $region25
    $region24: #{tpu_custom_call.1} parent=1 // pred_region
      %s68 = ssub.s32 8192, 8192
      %69 = vsyncadd [#allocation9], %s68
      %s70 = sshll.u32 [#allocation10], 4
      %s71 = int_to_ptr.vmem [resolvable:$true] %s70
      %76 = dma.hbm_to_vmem [thread:$0]  %s5, 8192, %s71, [#allocation9], 128, 128, 8
    $region25: #{tpu_custom_call.1} parent=1 // pred_fallthru
      _
    // Predicated region
    $region26: #{tpu_custom_call.1} parent=1 // pred_check
      _
    $region27: #{tpu_custom_call.1} parent=1 // pred_check_branch
      %78 = sbr.rel (0) target = $region29
    $region28: #{tpu_custom_call.1} parent=1 // pred_region
      _
    $region29: #{tpu_custom_call.1} parent=1 // pred_fallthru
      _
    // Predicated region
    $region30: #{tpu_custom_call.1} parent=1 // pred_check
      _
    $region31: #{tpu_custom_call.1} parent=1 // pred_check_branch
      %80 = sbr.rel (0) target = $region33
    $region32: #{tpu_custom_call.1} parent=1 // pred_region
      %s82 = ssub.s32 2048, 2048
      %83 = vsyncadd [#allocation12], %s82
      %s84 = sshll.u32 [#allocation11], 4
      %s85 = int_to_ptr.vmem [resolvable:$true] %s84
      %90 = dma.hbm_to_vmem [thread:$0]  %s7, 2048, %s85, [#allocation12], 64, 64, 4
    $region33: #{tpu_custom_call.1} parent=1 // pred_fallthru
      _
    // Predicated region
    $region34: #{tpu_custom_call.1} parent=1 // pred_check
      _
    $region35: #{tpu_custom_call.1} parent=1 // pred_check_branch
      %92 = sbr.rel (0) target = $region37
    $region36: #{tpu_custom_call.1} parent=1 // pred_region
      _
    $region37: #{tpu_custom_call.1} parent=1 // pred_fallthru
      _
    // Predicated region
    $region38: #{tpu_custom_call.1} parent=1 // pred_check
      _
    $region39: #{tpu_custom_call.1} parent=1 // pred_check_branch
      %94 = sbr.rel (0) target = $region41
    $region40: #{tpu_custom_call.1} parent=1 // pred_region
      %95 = dma.done [#allocation3], 32
    $region41: #{tpu_custom_call.1} parent=1 // pred_fallthru
      _
    // Predicated region
    $region42: #{tpu_custom_call.1} parent=1 // pred_check
      _
    $region43: #{tpu_custom_call.1} parent=1 // pred_check_branch
      %97 = sbr.rel (0) target = $region45
    $region44: #{tpu_custom_call.1} parent=1 // pred_region
      %98 = dma.done [#allocation6], 2048
    $region45: #{tpu_custom_call.1} parent=1 // pred_fallthru
      _
    // Predicated region
    $region46: #{tpu_custom_call.1} parent=1 // pred_check
      _
    $region47: #{tpu_custom_call.1} parent=1 // pred_check_branch
      %100 = sbr.rel (0) target = $region49
    $region48: #{tpu_custom_call.1} parent=1 // pred_region
      %101 = dma.done [#allocation6], 128
    $region49: #{tpu_custom_call.1} parent=1 // pred_fallthru
      _
    // Predicated region
    $region50: #{tpu_custom_call.1} parent=1 // pred_check
      _
    $region51: #{tpu_custom_call.1} parent=1 // pred_check_branch
      %103 = sbr.rel (0) target = $region53
    $region52: #{tpu_custom_call.1} parent=1 // pred_region
      %104 = dma.done [#allocation9], 32768
    $region53: #{tpu_custom_call.1} parent=1 // pred_fallthru
      _
    // Predicated region
    $region54: #{tpu_custom_call.1} parent=1 // pred_check
      _
    $region55: #{tpu_custom_call.1} parent=1 // pred_check_branch
      %106 = sbr.rel (0) target = $region57
    $region56: #{tpu_custom_call.1} parent=1 // pred_region
      %107 = dma.done [#allocation9], 8192
    $region57: #{tpu_custom_call.1} parent=1 // pred_fallthru
      _
    // Predicated region
    $region58: #{tpu_custom_call.1} parent=1 // pred_check
      _
    $region59: #{tpu_custom_call.1} parent=1 // pred_check_branch
      %109 = sbr.rel (0) target = $region61
    $region60: #{tpu_custom_call.1} parent=1 // pred_region
      %110 = dma.done [#allocation12], 2048
    $region61: #{tpu_custom_call.1} parent=1 // pred_fallthru
      _
    %v112 = vld [vmem:[#allocation2] sm:$0x3]
    %v113 = vpack.c.bf16 %v112, %v112
    %v114 = vld [vmem:[#allocation5] sm:$0xff]
    %v115 = vld [vmem:[#allocation5 + $0x8] sm:$0xff]
    %v116 = vld [vmem:[#allocation5 + $0x10] sm:$0xff]
    %v117 = vld [vmem:[#allocation5 + $0x18] sm:$0xff]
    %v118 = vld [vmem:[#allocation5 + $0x20] sm:$0xff]
    %v119 = vld [vmem:[#allocation5 + $0x28] sm:$0xff]
    %v120 = vld [vmem:[#allocation5 + $0x30] sm:$0xff]
    %v121 = vld [vmem:[#allocation5 + $0x38] sm:$0xff]
    %v122 = vld [vmem:[#allocation5 + $0x40] sm:$0xff]
    %v123 = vld [vmem:[#allocation5 + $0x48] sm:$0xff]
    %v124 = vld [vmem:[#allocation5 + $0x50] sm:$0xff]
    %v125 = vld [vmem:[#allocation5 + $0x58] sm:$0xff]
    %v126 = vld [vmem:[#allocation5 + $0x60] sm:$0xff]
    %v127 = vld [vmem:[#allocation5 + $0x68] sm:$0xff]
    %v128 = vld [vmem:[#allocation5 + $0x70] sm:$0xff]
    %v129 = vld [vmem:[#allocation5 + $0x78] sm:$0xff]
    %v130 = vld [vmem:[#allocation7] sm:$0xff]
    %v132 = vlaneseq
    %v133 = vshrl.u32 %v132, 7
    %v134 = vsub.s32 0, %v133
    %v135 = vrot.slane %v130, %v134
    %v136 = vlaneseq
    %v137 = vshrl.u32 %v136, 7
    %v138 = vsub.s32 1, %v137
    %v139 = vrot.slane %v130, %v138
    %v140 = vlaneseq
    %v141 = vshrl.u32 %v140, 7
    %v142 = vsub.s32 2, %v141
    %v143 = vrot.slane %v130, %v142
    %v144 = vlaneseq
    %v145 = vshrl.u32 %v144, 7
    %v146 = vsub.s32 3, %v145
    %v147 = vrot.slane %v130, %v146
    %v148 = vlaneseq
    %v149 = vshrl.u32 %v148, 7
    %v150 = vsub.s32 4, %v149
    %v151 = vrot.slane %v130, %v150
    %v152 = vlaneseq
    %v153 = vshrl.u32 %v152, 7
    %v154 = vsub.s32 5, %v153
    %v155 = vrot.slane %v130, %v154
    %v156 = vlaneseq
    %v157 = vshrl.u32 %v156, 7
    %v158 = vsub.s32 6, %v157
    %v159 = vrot.slane %v130, %v158
    %v160 = vlaneseq
    %v161 = vshrl.u32 %v160, 7
    %v162 = vsub.s32 7, %v161
    %v163 = vrot.slane %v130, %v162
    %v188 = vunpack.c.l.b16 %v114
    %v189 = vunpack.c.h.b16 %v114
    %v190 = vunpack.c.l.b16 %v115
    %v191 = vunpack.c.h.b16 %v115
    %v192 = vunpack.c.l.b16 %v116
    %v193 = vunpack.c.h.b16 %v116
    %v194 = vunpack.c.l.b16 %v117
    %v195 = vunpack.c.h.b16 %v117
    %v196 = vunpack.c.l.b16 %v118
    %v197 = vunpack.c.h.b16 %v118
    %v198 = vunpack.c.l.b16 %v119
    %v199 = vunpack.c.h.b16 %v119
    %v200 = vunpack.c.l.b16 %v120
    %v201 = vunpack.c.h.b16 %v120
    %v202 = vunpack.c.l.b16 %v121
    %v203 = vunpack.c.h.b16 %v121
    %v204 = vunpack.c.l.b16 %v122
    %v205 = vunpack.c.h.b16 %v122
    %v206 = vunpack.c.l.b16 %v123
    %v207 = vunpack.c.h.b16 %v123
    %v208 = vunpack.c.l.b16 %v124
    %v209 = vunpack.c.h.b16 %v124
    %v210 = vunpack.c.l.b16 %v125
    %v211 = vunpack.c.h.b16 %v125
    %v212 = vunpack.c.l.b16 %v126
    %v213 = vunpack.c.h.b16 %v126
    %v214 = vunpack.c.l.b16 %v127
    %v215 = vunpack.c.h.b16 %v127
    %v216 = vunpack.c.l.b16 %v128
    %v217 = vunpack.c.h.b16 %v128
    %v218 = vunpack.c.l.b16 %v129
    %v219 = vunpack.c.h.b16 %v129
    %v220 = vpack.c.b16 %v196, %v188
    %v221 = vpack.c.b16 %v197, %v189
    %v222 = vpack.c.b16 %v198, %v190
    %v223 = vpack.c.b16 %v199, %v191
    %v224 = vpack.c.b16 %v200, %v192
    %v225 = vpack.c.b16 %v201, %v193
    %v226 = vpack.c.b16 %v202, %v194
    %v227 = vpack.c.b16 %v203, %v195
    %v228 = vpack.c.b16 %v212, %v204
    %v229 = vpack.c.b16 %v213, %v205
    %v230 = vpack.c.b16 %v214, %v206
    %v231 = vpack.c.b16 %v215, %v207
    %v232 = vpack.c.b16 %v216, %v208
    %v233 = vpack.c.b16 %v217, %v209
    %v234 = vpack.c.b16 %v218, %v210
    %v235 = vpack.c.b16 %v219, %v211
    %vm252 = vcmask 261120
    %v254 = vsel %vm252, %v113, 0
    %256 = vmatprep.subr.bf16.mxu0 %v221
    %257 = vmatpush1.bf16.msra.mxu0 %v220
    %258 = vmatprep.subr.bf16.mxu0 %v229
    %259 = vmatpush1.bf16.msra.mxu0 %v228
    %260 = vmatprep.subr.bf16.mxu0 0
    %261 = vmatpush1.bf16.msra.mxu0 0
    %262 = vmatprep.subr.bf16.mxu0 0
    %263 = vmatpush1.bf16.msra.mxu0 0
    %264 = vmatprep.subr.bf16.mxu0 0
    %265 = vmatpush1.bf16.msra.mxu0 0
    %266 = vmatprep.subr.bf16.mxu0 0
    %267 = vmatpush1.bf16.msra.mxu0 0
    %268 = vmatprep.subr.bf16.mxu0 0
    %269 = vmatpush1.bf16.msra.mxu0 0
    %270 = vmatprep.subr.bf16.mxu0 0
    %271 = vmatpush1.bf16.msra.mxu0 0
    %272 = vmatprep.subr.bf16.mxu0 0
    %273 = vmatpush1.bf16.msra.mxu0 0
    %274 = vmatprep.subr.bf16.mxu0 0
    %275 = vmatpush1.bf16.msra.mxu0 0
    %276 = vmatprep.subr.bf16.mxu0 0
    %277 = vmatpush1.bf16.msra.mxu0 0
    %278 = vmatprep.subr.bf16.mxu0 0
    %279 = vmatpush1.bf16.msra.mxu0 0
    %280 = vmatprep.subr.bf16.mxu0 0
    %281 = vmatpush1.bf16.msra.mxu0 0
    %282 = vmatprep.subr.bf16.mxu0 0
    %283 = vmatpush1.bf16.msra.mxu0 0
    %284 = vmatprep.subr.bf16.mxu0 0
    %285 = vmatpush1.bf16.msra.mxu0 0
    %286 = vmatprep.subr.bf16.mxu0 0
    %287 = vmatpush1.bf16.msra.mxu0 0
    %288 = vmatprep.mubr.bf16.mxu0 0
    %289 = vmatmul.mubr.bf16.gmra.mrb[0].mxu0 %v254
    %v290 = vpop.f32.mrb[0].mxu0
    %v291 = vadd.f32 %v135, %v290
    %v292 = vpop.f32.mrb[0].mxu0
    %v293 = vadd.f32 %v139, %v292
    %v294 = vpop.f32.mrb[0].mxu0
    %v295 = vpop.f32.mrb[0].mxu0
    %296 = vdwg.mxu0
    %297 = vmatprep.subr.bf16.mxu0 %v223
    %298 = vmatpush1.bf16.msra.mxu0 %v222
    %299 = vmatprep.subr.bf16.mxu0 %v231
    %300 = vmatpush1.bf16.msra.mxu0 %v230
    %301 = vmatprep.subr.bf16.mxu0 0
    %302 = vmatpush1.bf16.msra.mxu0 0
    %303 = vmatprep.subr.bf16.mxu0 0
    %304 = vmatpush1.bf16.msra.mxu0 0
    %305 = vmatprep.subr.bf16.mxu0 0
    %306 = vmatpush1.bf16.msra.mxu0 0
    %307 = vmatprep.subr.bf16.mxu0 0
    %308 = vmatpush1.bf16.msra.mxu0 0
    %309 = vmatprep.subr.bf16.mxu0 0
    %310 = vmatpush1.bf16.msra.mxu0 0
    %311 = vmatprep.subr.bf16.mxu0 0
    %312 = vmatpush1.bf16.msra.mxu0 0
    %313 = vmatprep.subr.bf16.mxu0 0
    %314 = vmatpush1.bf16.msra.mxu0 0
    %315 = vmatprep.subr.bf16.mxu0 0
    %316 = vmatpush1.bf16.msra.mxu0 0
    %317 = vmatprep.subr.bf16.mxu0 0
    %318 = vmatpush1.bf16.msra.mxu0 0
    %319 = vmatprep.subr.bf16.mxu0 0
    %320 = vmatpush1.bf16.msra.mxu0 0
    %321 = vmatprep.subr.bf16.mxu0 0
    %322 = vmatpush1.bf16.msra.mxu0 0
    %323 = vmatprep.subr.bf16.mxu0 0
    %324 = vmatpush1.bf16.msra.mxu0 0
    %325 = vmatprep.subr.bf16.mxu0 0
    %326 = vmatpush1.bf16.msra.mxu0 0
    %327 = vmatprep.subr.bf16.mxu0 0
    %328 = vmatpush1.bf16.msra.mxu0 0
    %329 = vmatprep.mubr.bf16.mxu0 0
    %330 = vmatmul.mubr.bf16.gmra.mrb[0].mxu0 %v254
    %v331 = vpop.f32.mrb[0].mxu0
    %v332 = vadd.f32 %v143, %v331
    %v333 = vpop.f32.mrb[0].mxu0
    %v334 = vadd.f32 %v147, %v333
    %v335 = vpop.f32.mrb[0].mxu0
    %v336 = vpop.f32.mrb[0].mxu0
    %337 = vdwg.mxu0
    %338 = vmatprep.subr.bf16.mxu0 %v225
    %339 = vmatpush1.bf16.msra.mxu0 %v224
    %340 = vmatprep.subr.bf16.mxu0 %v233
    %341 = vmatpush1.bf16.msra.mxu0 %v232
    %342 = vmatprep.subr.bf16.mxu0 0
    %343 = vmatpush1.bf16.msra.mxu0 0
    %344 = vmatprep.subr.bf16.mxu0 0
    %345 = vmatpush1.bf16.msra.mxu0 0
    %346 = vmatprep.subr.bf16.mxu0 0
    %347 = vmatpush1.bf16.msra.mxu0 0
    %348 = vmatprep.subr.bf16.mxu0 0
    %349 = vmatpush1.bf16.msra.mxu0 0
    %350 = vmatprep.subr.bf16.mxu0 0
    %351 = vmatpush1.bf16.msra.mxu0 0
    %352 = vmatprep.subr.bf16.mxu0 0
    %353 = vmatpush1.bf16.msra.mxu0 0
    %354 = vmatprep.subr.bf16.mxu0 0
    %355 = vmatpush1.bf16.msra.mxu0 0
    %356 = vmatprep.subr.bf16.mxu0 0
    %357 = vmatpush1.bf16.msra.mxu0 0
    %358 = vmatprep.subr.bf16.mxu0 0
    %359 = vmatpush1.bf16.msra.mxu0 0
    %360 = vmatprep.subr.bf16.mxu0 0
    %361 = vmatpush1.bf16.msra.mxu0 0
    %362 = vmatprep.subr.bf16.mxu0 0
    %363 = vmatpush1.bf16.msra.mxu0 0
    %364 = vmatprep.subr.bf16.mxu0 0
    %365 = vmatpush1.bf16.msra.mxu0 0
    %366 = vmatprep.subr.bf16.mxu0 0
    %367 = vmatpush1.bf16.msra.mxu0 0
    %368 = vmatprep.subr.bf16.mxu0 0
    %369 = vmatpush1.bf16.msra.mxu0 0
    %370 = vmatprep.mubr.bf16.mxu0 0
    %371 = vmatmul.mubr.bf16.gmra.mrb[0].mxu0 %v254
    %v372 = vpop.f32.mrb[0].mxu0
    %v373 = vadd.f32 %v151, %v372
    %v374 = vpop.f32.mrb[0].mxu0
    %v375 = vadd.f32 %v155, %v374
    %v376 = vpop.f32.mrb[0].mxu0
    %v377 = vpop.f32.mrb[0].mxu0
    %378 = vdwg.mxu0
    %379 = vmatprep.subr.bf16.mxu0 %v227
    %380 = vmatpush1.bf16.msra.mxu0 %v226
    %381 = vmatprep.subr.bf16.mxu0 %v235
    %382 = vmatpush1.bf16.msra.mxu0 %v234
    %383 = vmatprep.subr.bf16.mxu0 0
    %384 = vmatpush1.bf16.msra.mxu0 0
    %385 = vmatprep.subr.bf16.mxu0 0
    %386 = vmatpush1.bf16.msra.mxu0 0
    %387 = vmatprep.subr.bf16.mxu0 0
    %388 = vmatpush1.bf16.msra.mxu0 0
    %389 = vmatprep.subr.bf16.mxu0 0
    %390 = vmatpush1.bf16.msra.mxu0 0
    %391 = vmatprep.subr.bf16.mxu0 0
    %392 = vmatpush1.bf16.msra.mxu0 0
    %393 = vmatprep.subr.bf16.mxu0 0
    %394 = vmatpush1.bf16.msra.mxu0 0
    %395 = vmatprep.subr.bf16.mxu0 0
    %396 = vmatpush1.bf16.msra.mxu0 0
    %397 = vmatprep.subr.bf16.mxu0 0
    %398 = vmatpush1.bf16.msra.mxu0 0
    %399 = vmatprep.subr.bf16.mxu0 0
    %400 = vmatpush1.bf16.msra.mxu0 0
    %401 = vmatprep.subr.bf16.mxu0 0
    %402 = vmatpush1.bf16.msra.mxu0 0
    %403 = vmatprep.subr.bf16.mxu0 0
    %404 = vmatpush1.bf16.msra.mxu0 0
    %405 = vmatprep.subr.bf16.mxu0 0
    %406 = vmatpush1.bf16.msra.mxu0 0
    %407 = vmatprep.subr.bf16.mxu0 0
    %408 = vmatpush1.bf16.msra.mxu0 0
    %409 = vmatprep.subr.bf16.mxu0 0
    %410 = vmatpush1.bf16.msra.mxu0 0
    %411 = vmatprep.mubr.bf16.mxu0 0
    %412 = vmatmul.mubr.bf16.gmra.mrb[0].mxu0 %v254
    %v413 = vpop.f32.mrb[0].mxu0
    %v414 = vadd.f32 %v159, %v413
    %v415 = vpop.f32.mrb[0].mxu0
    %v416 = vadd.f32 %v163, %v415
    %v417 = vpop.f32.mrb[0].mxu0
    %v418 = vpop.f32.mrb[0].mxu0
    %419 = vdwg.mxu0
    %v420 = vmax.f32 %v291, 0.0
    %v421 = vmax.f32 %v293, 0.0
    %v422 = vmax.f32 %v332, 0.0
    %v423 = vmax.f32 %v334, 0.0
    %v424 = vmax.f32 %v373, 0.0
    %v425 = vmax.f32 %v375, 0.0
    %v426 = vmax.f32 %v414, 0.0
    %v427 = vmax.f32 %v416, 0.0
    %v428 = vpack.c.bf16 %v420, %v420
    %v429 = vpack.c.bf16 %v421, %v421
    %v430 = vpack.c.bf16 %v422, %v422
    %v431 = vpack.c.bf16 %v423, %v423
    %v432 = vpack.c.bf16 %v424, %v424
    %v433 = vpack.c.bf16 %v425, %v425
    %v434 = vpack.c.bf16 %v426, %v426
    %v435 = vpack.c.bf16 %v427, %v427
    %v436 = vld [vmem:[#allocation8] sm:$0xff]
    %v437 = vld [vmem:[#allocation8 + $0x8] sm:$0xff]
    %v438 = vld [vmem:[#allocation8 + $0x10] sm:$0xff]
    %v439 = vld [vmem:[#allocation8 + $0x18] sm:$0xff]
    %v440 = vld [vmem:[#allocation8 + $0x20] sm:$0xff]
    %v441 = vld [vmem:[#allocation8 + $0x28] sm:$0xff]
    %v442 = vld [vmem:[#allocation8 + $0x30] sm:$0xff]
    %v443 = vld [vmem:[#allocation8 + $0x38] sm:$0xff]
    %v444 = vld [vmem:[#allocation8 + $0x40] sm:$0xff]
    %v445 = vld [vmem:[#allocation8 + $0x48] sm:$0xff]
    %v446 = vld [vmem:[#allocation8 + $0x50] sm:$0xff]
    %v447 = vld [vmem:[#allocation8 + $0x58] sm:$0xff]
    %v448 = vld [vmem:[#allocation8 + $0x60] sm:$0xff]
    %v449 = vld [vmem:[#allocation8 + $0x68] sm:$0xff]
    %v450 = vld [vmem:[#allocation8 + $0x70] sm:$0xff]
    %v451 = vld [vmem:[#allocation8 + $0x78] sm:$0xff]
    %v452 = vld [vmem:[#allocation8 + $0x80] sm:$0xff]
    %v453 = vld [vmem:[#allocation8 + $0x88] sm:$0xff]
    %v454 = vld [vmem:[#allocation8 + $0x90] sm:$0xff]
    %v455 = vld [vmem:[#allocation8 + $0x98] sm:$0xff]
    %v456 = vld [vmem:[#allocation8 + $0xa0] sm:$0xff]
    %v457 = vld [vmem:[#allocation8 + $0xa8] sm:$0xff]
    %v458 = vld [vmem:[#allocation8 + $0xb0] sm:$0xff]
    %v459 = vld [vmem:[#allocation8 + $0xb8] sm:$0xff]
    %v460 = vld [vmem:[#allocation8 + $0xc0] sm:$0xff]
    %v461 = vld [vmem:[#allocation8 + $0xc8] sm:$0xff]
    %v462 = vld [vmem:[#allocation8 + $0xd0] sm:$0xff]
    %v463 = vld [vmem:[#allocation8 + $0xd8] sm:$0xff]
    %v464 = vld [vmem:[#allocation8 + $0xe0] sm:$0xff]
    %v465 = vld [vmem:[#allocation8 + $0xe8] sm:$0xff]
    %v466 = vld [vmem:[#allocation8 + $0xf0] sm:$0xff]
    %v467 = vld [vmem:[#allocation8 + $0xf8] sm:$0xff]
    %v468 = vld [vmem:[#allocation8 + $0x100] sm:$0xff]
    %v469 = vld [vmem:[#allocation8 + $0x108] sm:$0xff]
    %v470 = vld [vmem:[#allocation8 + $0x110] sm:$0xff]
    %v471 = vld [vmem:[#allocation8 + $0x118] sm:$0xff]
    %v472 = vld [vmem:[#allocation8 + $0x120] sm:$0xff]
    %v473 = vld [vmem:[#allocation8 + $0x128] sm:$0xff]
    %v474 = vld [vmem:[#allocation8 + $0x130] sm:$0xff]
    %v475 = vld [vmem:[#allocation8 + $0x138] sm:$0xff]
    %v476 = vld [vmem:[#allocation8 + $0x140] sm:$0xff]
    %v477 = vld [vmem:[#allocation8 + $0x148] sm:$0xff]
    %v478 = vld [vmem:[#allocation8 + $0x150] sm:$0xff]
    %v479 = vld [vmem:[#allocation8 + $0x158] sm:$0xff]
    %v480 = vld [vmem:[#allocation8 + $0x160] sm:$0xff]
    %v481 = vld [vmem:[#allocation8 + $0x168] sm:$0xff]
    %v482 = vld [vmem:[#allocation8 + $0x170] sm:$0xff]
    %v483 = vld [vmem:[#allocation8 + $0x178] sm:$0xff]
    %v484 = vld [vmem:[#allocation8 + $0x180] sm:$0xff]
    %v485 = vld [vmem:[#allocation8 + $0x188] sm:$0xff]
    %v486 = vld [vmem:[#allocation8 + $0x190] sm:$0xff]
    %v487 = vld [vmem:[#allocation8 + $0x198] sm:$0xff]
    %v488 = vld [vmem:[#allocation8 + $0x1a0] sm:$0xff]
    %v489 = vld [vmem:[#allocation8 + $0x1a8] sm:$0xff]
    %v490 = vld [vmem:[#allocation8 + $0x1b0] sm:$0xff]
    %v491 = vld [vmem:[#allocation8 + $0x1b8] sm:$0xff]
    %v492 = vld [vmem:[#allocation8 + $0x1c0] sm:$0xff]
    %v493 = vld [vmem:[#allocation8 + $0x1c8] sm:$0xff]
    %v494 = vld [vmem:[#allocation8 + $0x1d0] sm:$0xff]
    %v495 = vld [vmem:[#allocation8 + $0x1d8] sm:$0xff]
    %v496 = vld [vmem:[#allocation8 + $0x1e0] sm:$0xff]
    %v497 = vld [vmem:[#allocation8 + $0x1e8] sm:$0xff]
    %v498 = vld [vmem:[#allocation8 + $0x1f0] sm:$0xff]
    %v499 = vld [vmem:[#allocation8 + $0x1f8] sm:$0xff]
    %v500 = vld [vmem:[#allocation8 + $0x200] sm:$0xff]
    %v501 = vld [vmem:[#allocation8 + $0x208] sm:$0xff]
    %v502 = vld [vmem:[#allocation8 + $0x210] sm:$0xff]
    %v503 = vld [vmem:[#allocation8 + $0x218] sm:$0xff]
    %v504 = vld [vmem:[#allocation8 + $0x220] sm:$0xff]
    %v505 = vld [vmem:[#allocation8 + $0x228] sm:$0xff]
    %v506 = vld [vmem:[#allocation8 + $0x230] sm:$0xff]
    %v507 = vld [vmem:[#allocation8 + $0x238] sm:$0xff]
    %v508 = vld [vmem:[#allocation8 + $0x240] sm:$0xff]
    %v509 = vld [vmem:[#allocation8 + $0x248] sm:$0xff]
    %v510 = vld [vmem:[#allocation8 + $0x250] sm:$0xff]
    %v511 = vld [vmem:[#allocation8 + $0x258] sm:$0xff]
    %v512 = vld [vmem:[#allocation8 + $0x260] sm:$0xff]
    %v513 = vld [vmem:[#allocation8 + $0x268] sm:$0xff]
    %v514 = vld [vmem:[#allocation8 + $0x270] sm:$0xff]
    %v515 = vld [vmem:[#allocation8 + $0x278] sm:$0xff]
    %v516 = vld [vmem:[#allocation8 + $0x280] sm:$0xff]
    %v517 = vld [vmem:[#allocation8 + $0x288] sm:$0xff]
    %v518 = vld [vmem:[#allocation8 + $0x290] sm:$0xff]
    %v519 = vld [vmem:[#allocation8 + $0x298] sm:$0xff]
    %v520 = vld [vmem:[#allocation8 + $0x2a0] sm:$0xff]
    %v521 = vld [vmem:[#allocation8 + $0x2a8] sm:$0xff]
    %v522 = vld [vmem:[#allocation8 + $0x2b0] sm:$0xff]
    %v523 = vld [vmem:[#allocation8 + $0x2b8] sm:$0xff]
    %v524 = vld [vmem:[#allocation8 + $0x2c0] sm:$0xff]
    %v525 = vld [vmem:[#allocation8 + $0x2c8] sm:$0xff]
    %v526 = vld [vmem:[#allocation8 + $0x2d0] sm:$0xff]
    %v527 = vld [vmem:[#allocation8 + $0x2d8] sm:$0xff]
    %v528 = vld [vmem:[#allocation8 + $0x2e0] sm:$0xff]
    %v529 = vld [vmem:[#allocation8 + $0x2e8] sm:$0xff]
    %v530 = vld [vmem:[#allocation8 + $0x2f0] sm:$0xff]
    %v531 = vld [vmem:[#allocation8 + $0x2f8] sm:$0xff]
    %v532 = vld [vmem:[#allocation8 + $0x300] sm:$0xff]
    %v533 = vld [vmem:[#allocation8 + $0x308] sm:$0xff]
    %v534 = vld [vmem:[#allocation8 + $0x310] sm:$0xff]
    %v535 = vld [vmem:[#allocation8 + $0x318] sm:$0xff]
    %v536 = vld [vmem:[#allocation8 + $0x320] sm:$0xff]
    %v537 = vld [vmem:[#allocation8 + $0x328] sm:$0xff]
    %v538 = vld [vmem:[#allocation8 + $0x330] sm:$0xff]
    %v539 = vld [vmem:[#allocation8 + $0x338] sm:$0xff]
    %v540 = vld [vmem:[#allocation8 + $0x340] sm:$0xff]
    %v541 = vld [vmem:[#allocation8 + $0x348] sm:$0xff]
    %v542 = vld [vmem:[#allocation8 + $0x350] sm:$0xff]
    %v543 = vld [vmem:[#allocation8 + $0x358] sm:$0xff]
    %v544 = vld [vmem:[#allocation8 + $0x360] sm:$0xff]
    %v545 = vld [vmem:[#allocation8 + $0x368] sm:$0xff]
    %v546 = vld [vmem:[#allocation8 + $0x370] sm:$0xff]
    %v547 = vld [vmem:[#allocation8 + $0x378] sm:$0xff]
    %v548 = vld [vmem:[#allocation8 + $0x380] sm:$0xff]
    %v549 = vld [vmem:[#allocation8 + $0x388] sm:$0xff]
    %v550 = vld [vmem:[#allocation8 + $0x390] sm:$0xff]
    %v551 = vld [vmem:[#allocation8 + $0x398] sm:$0xff]
    %v552 = vld [vmem:[#allocation8 + $0x3a0] sm:$0xff]
    %v553 = vld [vmem:[#allocation8 + $0x3a8] sm:$0xff]
    %v554 = vld [vmem:[#allocation8 + $0x3b0] sm:$0xff]
    %v555 = vld [vmem:[#allocation8 + $0x3b8] sm:$0xff]
    %v556 = vld [vmem:[#allocation8 + $0x3c0] sm:$0xff]
    %v557 = vld [vmem:[#allocation8 + $0x3c8] sm:$0xff]
    %v558 = vld [vmem:[#allocation8 + $0x3d0] sm:$0xff]
    %v559 = vld [vmem:[#allocation8 + $0x3d8] sm:$0xff]
    %v560 = vld [vmem:[#allocation8 + $0x3e0] sm:$0xff]
    %v561 = vld [vmem:[#allocation8 + $0x3e8] sm:$0xff]
    %v562 = vld [vmem:[#allocation8 + $0x3f0] sm:$0xff]
    %v563 = vld [vmem:[#allocation8 + $0x3f8] sm:$0xff]
    %v564 = vld [vmem:[#allocation8 + $0x400] sm:$0xff]
    %v565 = vld [vmem:[#allocation8 + $0x408] sm:$0xff]
    %v566 = vld [vmem:[#allocation8 + $0x410] sm:$0xff]
    %v567 = vld [vmem:[#allocation8 + $0x418] sm:$0xff]
    %v568 = vld [vmem:[#allocation8 + $0x420] sm:$0xff]
    %v569 = vld [vmem:[#allocation8 + $0x428] sm:$0xff]
    %v570 = vld [vmem:[#allocation8 + $0x430] sm:$0xff]
    %v571 = vld [vmem:[#allocation8 + $0x438] sm:$0xff]
    %v572 = vld [vmem:[#allocation8 + $0x440] sm:$0xff]
    %v573 = vld [vmem:[#allocation8 + $0x448] sm:$0xff]
    %v574 = vld [vmem:[#allocation8 + $0x450] sm:$0xff]
    %v575 = vld [vmem:[#allocation8 + $0x458] sm:$0xff]
    %v576 = vld [vmem:[#allocation8 + $0x460] sm:$0xff]
    %v577 = vld [vmem:[#allocation8 + $0x468] sm:$0xff]
    %v578 = vld [vmem:[#allocation8 + $0x470] sm:$0xff]
    %v579 = vld [vmem:[#allocation8 + $0x478] sm:$0xff]
    %v580 = vld [vmem:[#allocation8 + $0x480] sm:$0xff]
    %v581 = vld [vmem:[#allocation8 + $0x488] sm:$0xff]
    %v582 = vld [vmem:[#allocation8 + $0x490] sm:$0xff]
    %v583 = vld [vmem:[#allocation8 + $0x498] sm:$0xff]
    %v584 = vld [vmem:[#allocation8 + $0x4a0] sm:$0xff]
    %v585 = vld [vmem:[#allocation8 + $0x4a8] sm:$0xff]
    %v586 = vld [vmem:[#allocation8 + $0x4b0] sm:$0xff]
    %v587 = vld [vmem:[#allocation8 + $0x4b8] sm:$0xff]
    %v588 = vld [vmem:[#allocation8 + $0x4c0] sm:$0xff]
    %v589 = vld [vmem:[#allocation8 + $0x4c8] sm:$0xff]
    %v590 = vld [vmem:[#allocation8 + $0x4d0] sm:$0xff]
    %v591 = vld [vmem:[#allocation8 + $0x4d8] sm:$0xff]
    %v592 = vld [vmem:[#allocation8 + $0x4e0] sm:$0xff]
    %v593 = vld [vmem:[#allocation8 + $0x4e8] sm:$0xff]
    %v594 = vld [vmem:[#allocation8 + $0x4f0] sm:$0xff]
    %v595 = vld [vmem:[#allocation8 + $0x4f8] sm:$0xff]
    %v596 = vld [vmem:[#allocation8 + $0x500] sm:$0xff]
    %v597 = vld [vmem:[#allocation8 + $0x508] sm:$0xff]
    %v598 = vld [vmem:[#allocation8 + $0x510] sm:$0xff]
    %v599 = vld [vmem:[#allocation8 + $0x518] sm:$0xff]
    %v600 = vld [vmem:[#allocation8 + $0x520] sm:$0xff]
    %v601 = vld [vmem:[#allocation8 + $0x528] sm:$0xff]
    %v602 = vld [vmem:[#allocation8 + $0x530] sm:$0xff]
    %v603 = vld [vmem:[#allocation8 + $0x538] sm:$0xff]
    %v604 = vld [vmem:[#allocation8 + $0x540] sm:$0xff]
    %v605 = vld [vmem:[#allocation8 + $0x548] sm:$0xff]
    %v606 = vld [vmem:[#allocation8 + $0x550] sm:$0xff]
    %v607 = vld [vmem:[#allocation8 + $0x558] sm:$0xff]
    %v608 = vld [vmem:[#allocation8 + $0x560] sm:$0xff]
    %v609 = vld [vmem:[#allocation8 + $0x568] sm:$0xff]
    %v610 = vld [vmem:[#allocation8 + $0x570] sm:$0xff]
    %v611 = vld [vmem:[#allocation8 + $0x578] sm:$0xff]
    %v612 = vld [vmem:[#allocation8 + $0x580] sm:$0xff]
    %v613 = vld [vmem:[#allocation8 + $0x588] sm:$0xff]
    %v614 = vld [vmem:[#allocation8 + $0x590] sm:$0xff]
    %v615 = vld [vmem:[#allocation8 + $0x598] sm:$0xff]
    %v616 = vld [vmem:[#allocation8 + $0x5a0] sm:$0xff]
    %v617 = vld [vmem:[#allocation8 + $0x5a8] sm:$0xff]
    %v618 = vld [vmem:[#allocation8 + $0x5b0] sm:$0xff]
    %v619 = vld [vmem:[#allocation8 + $0x5b8] sm:$0xff]
    %v620 = vld [vmem:[#allocation8 + $0x5c0] sm:$0xff]
    %v621 = vld [vmem:[#allocation8 + $0x5c8] sm:$0xff]
    %v622 = vld [vmem:[#allocation8 + $0x5d0] sm:$0xff]
    %v623 = vld [vmem:[#allocation8 + $0x5d8] sm:$0xff]
    %v624 = vld [vmem:[#allocation8 + $0x5e0] sm:$0xff]
    %v625 = vld [vmem:[#allocation8 + $0x5e8] sm:$0xff]
    %v626 = vld [vmem:[#allocation8 + $0x5f0] sm:$0xff]
    %v627 = vld [vmem:[#allocation8 + $0x5f8] sm:$0xff]
    %v628 = vld [vmem:[#allocation8 + $0x600] sm:$0xff]
    %v629 = vld [vmem:[#allocation8 + $0x608] sm:$0xff]
    %v630 = vld [vmem:[#allocation8 + $0x610] sm:$0xff]
    %v631 = vld [vmem:[#allocation8 + $0x618] sm:$0xff]
    %v632 = vld [vmem:[#allocation8 + $0x620] sm:$0xff]
    %v633 = vld [vmem:[#allocation8 + $0x628] sm:$0xff]
    %v634 = vld [vmem:[#allocation8 + $0x630] sm:$0xff]
    %v635 = vld [vmem:[#allocation8 + $0x638] sm:$0xff]
    %v636 = vld [vmem:[#allocation8 + $0x640] sm:$0xff]
    %v637 = vld [vmem:[#allocation8 + $0x648] sm:$0xff]
    %v638 = vld [vmem:[#allocation8 + $0x650] sm:$0xff]
    %v639 = vld [vmem:[#allocation8 + $0x658] sm:$0xff]
    %v640 = vld [vmem:[#allocation8 + $0x660] sm:$0xff]
    %v641 = vld [vmem:[#allocation8 + $0x668] sm:$0xff]
    %v642 = vld [vmem:[#allocation8 + $0x670] sm:$0xff]
    %v643 = vld [vmem:[#allocation8 + $0x678] sm:$0xff]
    %v644 = vld [vmem:[#allocation8 + $0x680] sm:$0xff]
    %v645 = vld [vmem:[#allocation8 + $0x688] sm:$0xff]
    %v646 = vld [vmem:[#allocation8 + $0x690] sm:$0xff]
    %v647 = vld [vmem:[#allocation8 + $0x698] sm:$0xff]
    %v648 = vld [vmem:[#allocation8 + $0x6a0] sm:$0xff]
    %v649 = vld [vmem:[#allocation8 + $0x6a8] sm:$0xff]
    %v650 = vld [vmem:[#allocation8 + $0x6b0] sm:$0xff]
    %v651 = vld [vmem:[#allocation8 + $0x6b8] sm:$0xff]
    %v652 = vld [vmem:[#allocation8 + $0x6c0] sm:$0xff]
    %v653 = vld [vmem:[#allocation8 + $0x6c8] sm:$0xff]
    %v654 = vld [vmem:[#allocation8 + $0x6d0] sm:$0xff]
    %v655 = vld [vmem:[#allocation8 + $0x6d8] sm:$0xff]
    %v656 = vld [vmem:[#allocation8 + $0x6e0] sm:$0xff]
    %v657 = vld [vmem:[#allocation8 + $0x6e8] sm:$0xff]
    %v658 = vld [vmem:[#allocation8 + $0x6f0] sm:$0xff]
    %v659 = vld [vmem:[#allocation8 + $0x6f8] sm:$0xff]
    %v660 = vld [vmem:[#allocation8 + $0x700] sm:$0xff]
    %v661 = vld [vmem:[#allocation8 + $0x708] sm:$0xff]
    %v662 = vld [vmem:[#allocation8 + $0x710] sm:$0xff]
    %v663 = vld [vmem:[#allocation8 + $0x718] sm:$0xff]
    %v664 = vld [vmem:[#allocation8 + $0x720] sm:$0xff]
    %v665 = vld [vmem:[#allocation8 + $0x728] sm:$0xff]
    %v666 = vld [vmem:[#allocation8 + $0x730] sm:$0xff]
    %v667 = vld [vmem:[#allocation8 + $0x738] sm:$0xff]
    %v668 = vld [vmem:[#allocation8 + $0x740] sm:$0xff]
    %v669 = vld [vmem:[#allocation8 + $0x748] sm:$0xff]
    %v670 = vld [vmem:[#allocation8 + $0x750] sm:$0xff]
    %v671 = vld [vmem:[#allocation8 + $0x758] sm:$0xff]
    %v672 = vld [vmem:[#allocation8 + $0x760] sm:$0xff]
    %v673 = vld [vmem:[#allocation8 + $0x768] sm:$0xff]
    %v674 = vld [vmem:[#allocation8 + $0x770] sm:$0xff]
    %v675 = vld [vmem:[#allocation8 + $0x778] sm:$0xff]
    %v676 = vld [vmem:[#allocation8 + $0x780] sm:$0xff]
    %v677 = vld [vmem:[#allocation8 + $0x788] sm:$0xff]
    %v678 = vld [vmem:[#allocation8 + $0x790] sm:$0xff]
    %v679 = vld [vmem:[#allocation8 + $0x798] sm:$0xff]
    %v680 = vld [vmem:[#allocation8 + $0x7a0] sm:$0xff]
    %v681 = vld [vmem:[#allocation8 + $0x7a8] sm:$0xff]
    %v682 = vld [vmem:[#allocation8 + $0x7b0] sm:$0xff]
    %v683 = vld [vmem:[#allocation8 + $0x7b8] sm:$0xff]
    %v684 = vld [vmem:[#allocation8 + $0x7c0] sm:$0xff]
    %v685 = vld [vmem:[#allocation8 + $0x7c8] sm:$0xff]
    %v686 = vld [vmem:[#allocation8 + $0x7d0] sm:$0xff]
    %v687 = vld [vmem:[#allocation8 + $0x7d8] sm:$0xff]
    %v688 = vld [vmem:[#allocation8 + $0x7e0] sm:$0xff]
    %v689 = vld [vmem:[#allocation8 + $0x7e8] sm:$0xff]
    %v690 = vld [vmem:[#allocation8 + $0x7f0] sm:$0xff]
    %v691 = vld [vmem:[#allocation8 + $0x7f8] sm:$0xff]
    %v692 = vld [vmem:[%s4] sm:$0xf]
    %v694 = vlaneseq
    %v695 = vshrl.u32 %v694, 7
    %v696 = vsub.s32 0, %v695
    %v697 = vrot.slane %v692, %v696
    %v698 = vlaneseq
    %v699 = vshrl.u32 %v698, 7
    %v700 = vsub.s32 1, %v699
    %v701 = vrot.slane %v692, %v700
    %v702 = vlaneseq
    %v703 = vshrl.u32 %v702, 7
    %v704 = vsub.s32 2, %v703
    %v705 = vrot.slane %v692, %v704
    %v706 = vlaneseq
    %v707 = vshrl.u32 %v706, 7
    %v708 = vsub.s32 3, %v707
    %v709 = vrot.slane %v692, %v708
    %v970 = vunpack.c.l.b16 %v436
    %v971 = vunpack.c.h.b16 %v436
    %v972 = vunpack.c.l.b16 %v437
    %v973 = vunpack.c.h.b16 %v437
    %v974 = vunpack.c.l.b16 %v438
    %v975 = vunpack.c.h.b16 %v438
    %v976 = vunpack.c.l.b16 %v439
    %v977 = vunpack.c.h.b16 %v439
    %v978 = vunpack.c.l.b16 %v440
    %v979 = vunpack.c.h.b16 %v440
    %v980 = vunpack.c.l.b16 %v441
    %v981 = vunpack.c.h.b16 %v441
    %v982 = vunpack.c.l.b16 %v442
    %v983 = vunpack.c.h.b16 %v442
    %v984 = vunpack.c.l.b16 %v443
    %v985 = vunpack.c.h.b16 %v443
    %v986 = vunpack.c.l.b16 %v444
    %v987 = vunpack.c.h.b16 %v444
    %v988 = vunpack.c.l.b16 %v445
    %v989 = vunpack.c.h.b16 %v445
    %v990 = vunpack.c.l.b16 %v446
    %v991 = vunpack.c.h.b16 %v446
    %v992 = vunpack.c.l.b16 %v447
    %v993 = vunpack.c.h.b16 %v447
    %v994 = vunpack.c.l.b16 %v448
    %v995 = vunpack.c.h.b16 %v448
    %v996 = vunpack.c.l.b16 %v449
    %v997 = vunpack.c.h.b16 %v449
    %v998 = vunpack.c.l.b16 %v450
    %v999 = vunpack.c.h.b16 %v450
    %v1000 = vunpack.c.l.b16 %v451
    %v1001 = vunpack.c.h.b16 %v451
    %v1002 = vunpack.c.l.b16 %v452
    %v1003 = vunpack.c.h.b16 %v452
    %v1004 = vunpack.c.l.b16 %v453
    %v1005 = vunpack.c.h.b16 %v453
    %v1006 = vunpack.c.l.b16 %v454
    %v1007 = vunpack.c.h.b16 %v454
    %v1008 = vunpack.c.l.b16 %v455
    %v1009 = vunpack.c.h.b16 %v455
    %v1010 = vunpack.c.l.b16 %v456
    %v1011 = vunpack.c.h.b16 %v456
    %v1012 = vunpack.c.l.b16 %v457
    %v1013 = vunpack.c.h.b16 %v457
    %v1014 = vunpack.c.l.b16 %v458
    %v1015 = vunpack.c.h.b16 %v458
    %v1016 = vunpack.c.l.b16 %v459
    %v1017 = vunpack.c.h.b16 %v459
    %v1018 = vunpack.c.l.b16 %v460
    %v1019 = vunpack.c.h.b16 %v460
    %v1020 = vunpack.c.l.b16 %v461
    %v1021 = vunpack.c.h.b16 %v461
    %v1022 = vunpack.c.l.b16 %v462
    %v1023 = vunpack.c.h.b16 %v462
    %v1024 = vunpack.c.l.b16 %v463
    %v1025 = vunpack.c.h.b16 %v463
    %v1026 = vunpack.c.l.b16 %v464
    %v1027 = vunpack.c.h.b16 %v464
    %v1028 = vunpack.c.l.b16 %v465
    %v1029 = vunpack.c.h.b16 %v465
    %v1030 = vunpack.c.l.b16 %v466
    %v1031 = vunpack.c.h.b16 %v466
    %v1032 = vunpack.c.l.b16 %v467
    %v1033 = vunpack.c.h.b16 %v467
    %v1034 = vunpack.c.l.b16 %v468
    %v1035 = vunpack.c.h.b16 %v468
    %v1036 = vunpack.c.l.b16 %v469
    %v1037 = vunpack.c.h.b16 %v469
    %v1038 = vunpack.c.l.b16 %v470
    %v1039 = vunpack.c.h.b16 %v470
    %v1040 = vunpack.c.l.b16 %v471
    %v1041 = vunpack.c.h.b16 %v471
    %v1042 = vunpack.c.l.b16 %v472
    %v1043 = vunpack.c.h.b16 %v472
    %v1044 = vunpack.c.l.b16 %v473
    %v1045 = vunpack.c.h.b16 %v473
    %v1046 = vunpack.c.l.b16 %v474
    %v1047 = vunpack.c.h.b16 %v474
    %v1048 = vunpack.c.l.b16 %v475
    %v1049 = vunpack.c.h.b16 %v475
    %v1050 = vunpack.c.l.b16 %v476
    %v1051 = vunpack.c.h.b16 %v476
    %v1052 = vunpack.c.l.b16 %v477
    %v1053 = vunpack.c.h.b16 %v477
    %v1054 = vunpack.c.l.b16 %v478
    %v1055 = vunpack.c.h.b16 %v478
    %v1056 = vunpack.c.l.b16 %v479
    %v1057 = vunpack.c.h.b16 %v479
    %v1058 = vunpack.c.l.b16 %v480
    %v1059 = vunpack.c.h.b16 %v480
    %v1060 = vunpack.c.l.b16 %v481
    %v1061 = vunpack.c.h.b16 %v481
    %v1062 = vunpack.c.l.b16 %v482
    %v1063 = vunpack.c.h.b16 %v482
    %v1064 = vunpack.c.l.b16 %v483
    %v1065 = vunpack.c.h.b16 %v483
    %v1066 = vunpack.c.l.b16 %v484
    %v1067 = vunpack.c.h.b16 %v484
    %v1068 = vunpack.c.l.b16 %v485
    %v1069 = vunpack.c.h.b16 %v485
    %v1070 = vunpack.c.l.b16 %v486
    %v1071 = vunpack.c.h.b16 %v486
    %v1072 = vunpack.c.l.b16 %v487
    %v1073 = vunpack.c.h.b16 %v487
    %v1074 = vunpack.c.l.b16 %v488
    %v1075 = vunpack.c.h.b16 %v488
    %v1076 = vunpack.c.l.b16 %v489
    %v1077 = vunpack.c.h.b16 %v489
    %v1078 = vunpack.c.l.b16 %v490
    %v1079 = vunpack.c.h.b16 %v490
    %v1080 = vunpack.c.l.b16 %v491
    %v1081 = vunpack.c.h.b16 %v491
    %v1082 = vunpack.c.l.b16 %v492
    %v1083 = vunpack.c.h.b16 %v492
    %v1084 = vunpack.c.l.b16 %v493
    %v1085 = vunpack.c.h.b16 %v493
    %v1086 = vunpack.c.l.b16 %v494
    %v1087 = vunpack.c.h.b16 %v494
    %v1088 = vunpack.c.l.b16 %v495
    %v1089 = vunpack.c.h.b16 %v495
    %v1090 = vunpack.c.l.b16 %v496
    %v1091 = vunpack.c.h.b16 %v496
    %v1092 = vunpack.c.l.b16 %v497
    %v1093 = vunpack.c.h.b16 %v497
    %v1094 = vunpack.c.l.b16 %v498
    %v1095 = vunpack.c.h.b16 %v498
    %v1096 = vunpack.c.l.b16 %v499
    %v1097 = vunpack.c.h.b16 %v499
    %v1098 = vunpack.c.l.b16 %v500
    %v1099 = vunpack.c.h.b16 %v500
    %v1100 = vunpack.c.l.b16 %v501
    %v1101 = vunpack.c.h.b16 %v501
    %v1102 = vunpack.c.l.b16 %v502
    %v1103 = vunpack.c.h.b16 %v502
    %v1104 = vunpack.c.l.b16 %v503
    %v1105 = vunpack.c.h.b16 %v503
    %v1106 = vunpack.c.l.b16 %v504
    %v1107 = vunpack.c.h.b16 %v504
    %v1108 = vunpack.c.l.b16 %v505
    %v1109 = vunpack.c.h.b16 %v505
    %v1110 = vunpack.c.l.b16 %v506
    %v1111 = vunpack.c.h.b16 %v506
    %v1112 = vunpack.c.l.b16 %v507
    %v1113 = vunpack.c.h.b16 %v507
    %v1114 = vunpack.c.l.b16 %v508
    %v1115 = vunpack.c.h.b16 %v508
    %v1116 = vunpack.c.l.b16 %v509
    %v1117 = vunpack.c.h.b16 %v509
    %v1118 = vunpack.c.l.b16 %v510
    %v1119 = vunpack.c.h.b16 %v510
    %v1120 = vunpack.c.l.b16 %v511
    %v1121 = vunpack.c.h.b16 %v511
    %v1122 = vunpack.c.l.b16 %v512
    %v1123 = vunpack.c.h.b16 %v512
    %v1124 = vunpack.c.l.b16 %v513
    %v1125 = vunpack.c.h.b16 %v513
    %v1126 = vunpack.c.l.b16 %v514
    %v1127 = vunpack.c.h.b16 %v514
    %v1128 = vunpack.c.l.b16 %v515
    %v1129 = vunpack.c.h.b16 %v515
    %v1130 = vunpack.c.l.b16 %v516
    %v1131 = vunpack.c.h.b16 %v516
    %v1132 = vunpack.c.l.b16 %v517
    %v1133 = vunpack.c.h.b16 %v517
    %v1134 = vunpack.c.l.b16 %v518
    %v1135 = vunpack.c.h.b16 %v518
    %v1136 = vunpack.c.l.b16 %v519
    %v1137 = vunpack.c.h.b16 %v519
    %v1138 = vunpack.c.l.b16 %v520
    %v1139 = vunpack.c.h.b16 %v520
    %v1140 = vunpack.c.l.b16 %v521
    %v1141 = vunpack.c.h.b16 %v521
    %v1142 = vunpack.c.l.b16 %v522
    %v1143 = vunpack.c.h.b16 %v522
    %v1144 = vunpack.c.l.b16 %v523
    %v1145 = vunpack.c.h.b16 %v523
    %v1146 = vunpack.c.l.b16 %v524
    %v1147 = vunpack.c.h.b16 %v524
    %v1148 = vunpack.c.l.b16 %v525
    %v1149 = vunpack.c.h.b16 %v525
    %v1150 = vunpack.c.l.b16 %v526
    %v1151 = vunpack.c.h.b16 %v526
    %v1152 = vunpack.c.l.b16 %v527
    %v1153 = vunpack.c.h.b16 %v527
    %v1154 = vunpack.c.l.b16 %v528
    %v1155 = vunpack.c.h.b16 %v528
    %v1156 = vunpack.c.l.b16 %v529
    %v1157 = vunpack.c.h.b16 %v529
    %v1158 = vunpack.c.l.b16 %v530
    %v1159 = vunpack.c.h.b16 %v530
    %v1160 = vunpack.c.l.b16 %v531
    %v1161 = vunpack.c.h.b16 %v531
    %v1162 = vunpack.c.l.b16 %v532
    %v1163 = vunpack.c.h.b16 %v532
    %v1164 = vunpack.c.l.b16 %v533
    %v1165 = vunpack.c.h.b16 %v533
    %v1166 = vunpack.c.l.b16 %v534
    %v1167 = vunpack.c.h.b16 %v534
    %v1168 = vunpack.c.l.b16 %v535
    %v1169 = vunpack.c.h.b16 %v535
    %v1170 = vunpack.c.l.b16 %v536
    %v1171 = vunpack.c.h.b16 %v536
    %v1172 = vunpack.c.l.b16 %v537
    %v1173 = vunpack.c.h.b16 %v537
    %v1174 = vunpack.c.l.b16 %v538
    %v1175 = vunpack.c.h.b16 %v538
    %v1176 = vunpack.c.l.b16 %v539
    %v1177 = vunpack.c.h.b16 %v539
    %v1178 = vunpack.c.l.b16 %v540
    %v1179 = vunpack.c.h.b16 %v540
    %v1180 = vunpack.c.l.b16 %v541
    %v1181 = vunpack.c.h.b16 %v541
    %v1182 = vunpack.c.l.b16 %v542
    %v1183 = vunpack.c.h.b16 %v542
    %v1184 = vunpack.c.l.b16 %v543
    %v1185 = vunpack.c.h.b16 %v543
    %v1186 = vunpack.c.l.b16 %v544
    %v1187 = vunpack.c.h.b16 %v544
    %v1188 = vunpack.c.l.b16 %v545
    %v1189 = vunpack.c.h.b16 %v545
    %v1190 = vunpack.c.l.b16 %v546
    %v1191 = vunpack.c.h.b16 %v546
    %v1192 = vunpack.c.l.b16 %v547
    %v1193 = vunpack.c.h.b16 %v547
    %v1194 = vunpack.c.l.b16 %v548
    %v1195 = vunpack.c.h.b16 %v548
    %v1196 = vunpack.c.l.b16 %v549
    %v1197 = vunpack.c.h.b16 %v549
    %v1198 = vunpack.c.l.b16 %v550
    %v1199 = vunpack.c.h.b16 %v550
    %v1200 = vunpack.c.l.b16 %v551
    %v1201 = vunpack.c.h.b16 %v551
    %v1202 = vunpack.c.l.b16 %v552
    %v1203 = vunpack.c.h.b16 %v552
    %v1204 = vunpack.c.l.b16 %v553
    %v1205 = vunpack.c.h.b16 %v553
    %v1206 = vunpack.c.l.b16 %v554
    %v1207 = vunpack.c.h.b16 %v554
    %v1208 = vunpack.c.l.b16 %v555
    %v1209 = vunpack.c.h.b16 %v555
    %v1210 = vunpack.c.l.b16 %v556
    %v1211 = vunpack.c.h.b16 %v556
    %v1212 = vunpack.c.l.b16 %v557
    %v1213 = vunpack.c.h.b16 %v557
    %v1214 = vunpack.c.l.b16 %v558
    %v1215 = vunpack.c.h.b16 %v558
    %v1216 = vunpack.c.l.b16 %v559
    %v1217 = vunpack.c.h.b16 %v559
    %v1218 = vunpack.c.l.b16 %v560
    %v1219 = vunpack.c.h.b16 %v560
    %v1220 = vunpack.c.l.b16 %v561
    %v1221 = vunpack.c.h.b16 %v561
    %v1222 = vunpack.c.l.b16 %v562
    %v1223 = vunpack.c.h.b16 %v562
    %v1224 = vunpack.c.l.b16 %v563
    %v1225 = vunpack.c.h.b16 %v563
    %v1226 = vunpack.c.l.b16 %v564
    %v1227 = vunpack.c.h.b16 %v564
    %v1228 = vunpack.c.l.b16 %v565
    %v1229 = vunpack.c.h.b16 %v565
    %v1230 = vunpack.c.l.b16 %v566
    %v1231 = vunpack.c.h.b16 %v566
    %v1232 = vunpack.c.l.b16 %v567
    %v1233 = vunpack.c.h.b16 %v567
    %v1234 = vunpack.c.l.b16 %v568
    %v1235 = vunpack.c.h.b16 %v568
    %v1236 = vunpack.c.l.b16 %v569
    %v1237 = vunpack.c.h.b16 %v569
    %v1238 = vunpack.c.l.b16 %v570
    %v1239 = vunpack.c.h.b16 %v570
    %v1240 = vunpack.c.l.b16 %v571
    %v1241 = vunpack.c.h.b16 %v571
    %v1242 = vunpack.c.l.b16 %v572
    %v1243 = vunpack.c.h.b16 %v572
    %v1244 = vunpack.c.l.b16 %v573
    %v1245 = vunpack.c.h.b16 %v573
    %v1246 = vunpack.c.l.b16 %v574
    %v1247 = vunpack.c.h.b16 %v574
    %v1248 = vunpack.c.l.b16 %v575
    %v1249 = vunpack.c.h.b16 %v575
    %v1250 = vunpack.c.l.b16 %v576
    %v1251 = vunpack.c.h.b16 %v576
    %v1252 = vunpack.c.l.b16 %v577
    %v1253 = vunpack.c.h.b16 %v577
    %v1254 = vunpack.c.l.b16 %v578
    %v1255 = vunpack.c.h.b16 %v578
    %v1256 = vunpack.c.l.b16 %v579
    %v1257 = vunpack.c.h.b16 %v579
    %v1258 = vunpack.c.l.b16 %v580
    %v1259 = vunpack.c.h.b16 %v580
    %v1260 = vunpack.c.l.b16 %v581
    %v1261 = vunpack.c.h.b16 %v581
    %v1262 = vunpack.c.l.b16 %v582
    %v1263 = vunpack.c.h.b16 %v582
    %v1264 = vunpack.c.l.b16 %v583
    %v1265 = vunpack.c.h.b16 %v583
    %v1266 = vunpack.c.l.b16 %v584
    %v1267 = vunpack.c.h.b16 %v584
    %v1268 = vunpack.c.l.b16 %v585
    %v1269 = vunpack.c.h.b16 %v585
    %v1270 = vunpack.c.l.b16 %v586
    %v1271 = vunpack.c.h.b16 %v586
    %v1272 = vunpack.c.l.b16 %v587
    %v1273 = vunpack.c.h.b16 %v587
    %v1274 = vunpack.c.l.b16 %v588
    %v1275 = vunpack.c.h.b16 %v588
    %v1276 = vunpack.c.l.b16 %v589
    %v1277 = vunpack.c.h.b16 %v589
    %v1278 = vunpack.c.l.b16 %v590
    %v1279 = vunpack.c.h.b16 %v590
    %v1280 = vunpack.c.l.b16 %v591
    %v1281 = vunpack.c.h.b16 %v591
    %v1282 = vunpack.c.l.b16 %v592
    %v1283 = vunpack.c.h.b16 %v592
    %v1284 = vunpack.c.l.b16 %v593
    %v1285 = vunpack.c.h.b16 %v593
    %v1286 = vunpack.c.l.b16 %v594
    %v1287 = vunpack.c.h.b16 %v594
    %v1288 = vunpack.c.l.b16 %v595
    %v1289 = vunpack.c.h.b16 %v595
    %v1290 = vunpack.c.l.b16 %v596
    %v1291 = vunpack.c.h.b16 %v596
    %v1292 = vunpack.c.l.b16 %v597
    %v1293 = vunpack.c.h.b16 %v597
    %v1294 = vunpack.c.l.b16 %v598
    %v1295 = vunpack.c.h.b16 %v598
    %v1296 = vunpack.c.l.b16 %v599
    %v1297 = vunpack.c.h.b16 %v599
    %v1298 = vunpack.c.l.b16 %v600
    %v1299 = vunpack.c.h.b16 %v600
    %v1300 = vunpack.c.l.b16 %v601
    %v1301 = vunpack.c.h.b16 %v601
    %v1302 = vunpack.c.l.b16 %v602
    %v1303 = vunpack.c.h.b16 %v602
    %v1304 = vunpack.c.l.b16 %v603
    %v1305 = vunpack.c.h.b16 %v603
    %v1306 = vunpack.c.l.b16 %v604
    %v1307 = vunpack.c.h.b16 %v604
    %v1308 = vunpack.c.l.b16 %v605
    %v1309 = vunpack.c.h.b16 %v605
    %v1310 = vunpack.c.l.b16 %v606
    %v1311 = vunpack.c.h.b16 %v606
    %v1312 = vunpack.c.l.b16 %v607
    %v1313 = vunpack.c.h.b16 %v607
    %v1314 = vunpack.c.l.b16 %v608
    %v1315 = vunpack.c.h.b16 %v608
    %v1316 = vunpack.c.l.b16 %v609
    %v1317 = vunpack.c.h.b16 %v609
    %v1318 = vunpack.c.l.b16 %v610
    %v1319 = vunpack.c.h.b16 %v610
    %v1320 = vunpack.c.l.b16 %v611
    %v1321 = vunpack.c.h.b16 %v611
    %v1322 = vunpack.c.l.b16 %v612
    %v1323 = vunpack.c.h.b16 %v612
    %v1324 = vunpack.c.l.b16 %v613
    %v1325 = vunpack.c.h.b16 %v613
    %v1326 = vunpack.c.l.b16 %v614
    %v1327 = vunpack.c.h.b16 %v614
    %v1328 = vunpack.c.l.b16 %v615
    %v1329 = vunpack.c.h.b16 %v615
    %v1330 = vunpack.c.l.b16 %v616
    %v1331 = vunpack.c.h.b16 %v616
    %v1332 = vunpack.c.l.b16 %v617
    %v1333 = vunpack.c.h.b16 %v617
    %v1334 = vunpack.c.l.b16 %v618
    %v1335 = vunpack.c.h.b16 %v618
    %v1336 = vunpack.c.l.b16 %v619
    %v1337 = vunpack.c.h.b16 %v619
    %v1338 = vunpack.c.l.b16 %v620
    %v1339 = vunpack.c.h.b16 %v620
    %v1340 = vunpack.c.l.b16 %v621
    %v1341 = vunpack.c.h.b16 %v621
    %v1342 = vunpack.c.l.b16 %v622
    %v1343 = vunpack.c.h.b16 %v622
    %v1344 = vunpack.c.l.b16 %v623
    %v1345 = vunpack.c.h.b16 %v623
    %v1346 = vunpack.c.l.b16 %v624
    %v1347 = vunpack.c.h.b16 %v624
    %v1348 = vunpack.c.l.b16 %v625
    %v1349 = vunpack.c.h.b16 %v625
    %v1350 = vunpack.c.l.b16 %v626
    %v1351 = vunpack.c.h.b16 %v626
    %v1352 = vunpack.c.l.b16 %v627
    %v1353 = vunpack.c.h.b16 %v627
    %v1354 = vunpack.c.l.b16 %v628
    %v1355 = vunpack.c.h.b16 %v628
    %v1356 = vunpack.c.l.b16 %v629
    %v1357 = vunpack.c.h.b16 %v629
    %v1358 = vunpack.c.l.b16 %v630
    %v1359 = vunpack.c.h.b16 %v630
    %v1360 = vunpack.c.l.b16 %v631
    %v1361 = vunpack.c.h.b16 %v631
    %v1362 = vunpack.c.l.b16 %v632
    %v1363 = vunpack.c.h.b16 %v632
    %v1364 = vunpack.c.l.b16 %v633
    %v1365 = vunpack.c.h.b16 %v633
    %v1366 = vunpack.c.l.b16 %v634
    %v1367 = vunpack.c.h.b16 %v634
    %v1368 = vunpack.c.l.b16 %v635
    %v1369 = vunpack.c.h.b16 %v635
    %v1370 = vunpack.c.l.b16 %v636
    %v1371 = vunpack.c.h.b16 %v636
    %v1372 = vunpack.c.l.b16 %v637
    %v1373 = vunpack.c.h.b16 %v637
    %v1374 = vunpack.c.l.b16 %v638
    %v1375 = vunpack.c.h.b16 %v638
    %v1376 = vunpack.c.l.b16 %v639
    %v1377 = vunpack.c.h.b16 %v639
    %v1378 = vunpack.c.l.b16 %v640
    %v1379 = vunpack.c.h.b16 %v640
    %v1380 = vunpack.c.l.b16 %v641
    %v1381 = vunpack.c.h.b16 %v641
    %v1382 = vunpack.c.l.b16 %v642
    %v1383 = vunpack.c.h.b16 %v642
    %v1384 = vunpack.c.l.b16 %v643
    %v1385 = vunpack.c.h.b16 %v643
    %v1386 = vunpack.c.l.b16 %v644
    %v1387 = vunpack.c.h.b16 %v644
    %v1388 = vunpack.c.l.b16 %v645
    %v1389 = vunpack.c.h.b16 %v645
    %v1390 = vunpack.c.l.b16 %v646
    %v1391 = vunpack.c.h.b16 %v646
    %v1392 = vunpack.c.l.b16 %v647
    %v1393 = vunpack.c.h.b16 %v647
    %v1394 = vunpack.c.l.b16 %v648
    %v1395 = vunpack.c.h.b16 %v648
    %v1396 = vunpack.c.l.b16 %v649
    %v1397 = vunpack.c.h.b16 %v649
    %v1398 = vunpack.c.l.b16 %v650
    %v1399 = vunpack.c.h.b16 %v650
    %v1400 = vunpack.c.l.b16 %v651
    %v1401 = vunpack.c.h.b16 %v651
    %v1402 = vunpack.c.l.b16 %v652
    %v1403 = vunpack.c.h.b16 %v652
    %v1404 = vunpack.c.l.b16 %v653
    %v1405 = vunpack.c.h.b16 %v653
    %v1406 = vunpack.c.l.b16 %v654
    %v1407 = vunpack.c.h.b16 %v654
    %v1408 = vunpack.c.l.b16 %v655
    %v1409 = vunpack.c.h.b16 %v655
    %v1410 = vunpack.c.l.b16 %v656
    %v1411 = vunpack.c.h.b16 %v656
    %v1412 = vunpack.c.l.b16 %v657
    %v1413 = vunpack.c.h.b16 %v657
    %v1414 = vunpack.c.l.b16 %v658
    %v1415 = vunpack.c.h.b16 %v658
    %v1416 = vunpack.c.l.b16 %v659
    %v1417 = vunpack.c.h.b16 %v659
    %v1418 = vunpack.c.l.b16 %v660
    %v1419 = vunpack.c.h.b16 %v660
    %v1420 = vunpack.c.l.b16 %v661
    %v1421 = vunpack.c.h.b16 %v661
    %v1422 = vunpack.c.l.b16 %v662
    %v1423 = vunpack.c.h.b16 %v662
    %v1424 = vunpack.c.l.b16 %v663
    %v1425 = vunpack.c.h.b16 %v663
    %v1426 = vunpack.c.l.b16 %v664
    %v1427 = vunpack.c.h.b16 %v664
    %v1428 = vunpack.c.l.b16 %v665
    %v1429 = vunpack.c.h.b16 %v665
    %v1430 = vunpack.c.l.b16 %v666
    %v1431 = vunpack.c.h.b16 %v666
    %v1432 = vunpack.c.l.b16 %v667
    %v1433 = vunpack.c.h.b16 %v667
    %v1434 = vunpack.c.l.b16 %v668
    %v1435 = vunpack.c.h.b16 %v668
    %v1436 = vunpack.c.l.b16 %v669
    %v1437 = vunpack.c.h.b16 %v669
    %v1438 = vunpack.c.l.b16 %v670
    %v1439 = vunpack.c.h.b16 %v670
    %v1440 = vunpack.c.l.b16 %v671
    %v1441 = vunpack.c.h.b16 %v671
    %v1442 = vunpack.c.l.b16 %v672
    %v1443 = vunpack.c.h.b16 %v672
    %v1444 = vunpack.c.l.b16 %v673
    %v1445 = vunpack.c.h.b16 %v673
    %v1446 = vunpack.c.l.b16 %v674
    %v1447 = vunpack.c.h.b16 %v674
    %v1448 = vunpack.c.l.b16 %v675
    %v1449 = vunpack.c.h.b16 %v675
    %v1450 = vunpack.c.l.b16 %v676
    %v1451 = vunpack.c.h.b16 %v676
    %v1452 = vunpack.c.l.b16 %v677
    %v1453 = vunpack.c.h.b16 %v677
    %v1454 = vunpack.c.l.b16 %v678
    %v1455 = vunpack.c.h.b16 %v678
    %v1456 = vunpack.c.l.b16 %v679
    %v1457 = vunpack.c.h.b16 %v679
    %v1458 = vunpack.c.l.b16 %v680
    %v1459 = vunpack.c.h.b16 %v680
    %v1460 = vunpack.c.l.b16 %v681
    %v1461 = vunpack.c.h.b16 %v681
    %v1462 = vunpack.c.l.b16 %v682
    %v1463 = vunpack.c.h.b16 %v682
    %v1464 = vunpack.c.l.b16 %v683
    %v1465 = vunpack.c.h.b16 %v683
    %v1466 = vunpack.c.l.b16 %v684
    %v1467 = vunpack.c.h.b16 %v684
    %v1468 = vunpack.c.l.b16 %v685
    %v1469 = vunpack.c.h.b16 %v685
    %v1470 = vunpack.c.l.b16 %v686
    %v1471 = vunpack.c.h.b16 %v686
    %v1472 = vunpack.c.l.b16 %v687
    %v1473 = vunpack.c.h.b16 %v687
    %v1474 = vunpack.c.l.b16 %v688
    %v1475 = vunpack.c.h.b16 %v688
    %v1476 = vunpack.c.l.b16 %v689
    %v1477 = vunpack.c.h.b16 %v689
    %v1478 = vunpack.c.l.b16 %v690
    %v1479 = vunpack.c.h.b16 %v690
    %v1480 = vunpack.c.l.b16 %v691
    %v1481 = vunpack.c.h.b16 %v691
    %v1482 = vpack.c.b16 %v974, %v970
    %v1483 = vpack.c.b16 %v975, %v971
    %v1484 = vpack.c.b16 %v976, %v972
    %v1485 = vpack.c.b16 %v977, %v973
    %v1486 = vpack.c.b16 %v982, %v978
    %v1487 = vpack.c.b16 %v983, %v979
    %v1488 = vpack.c.b16 %v984, %v980
    %v1489 = vpack.c.b16 %v985, %v981
    %v1490 = vpack.c.b16 %v990, %v986
    %v1491 = vpack.c.b16 %v991, %v987
    %v1492 = vpack.c.b16 %v992, %v988
    %v1493 = vpack.c.b16 %v993, %v989
    %v1494 = vpack.c.b16 %v998, %v994
    %v1495 = vpack.c.b16 %v999, %v995
    %v1496 = vpack.c.b16 %v1000, %v996
    %v1497 = vpack.c.b16 %v1001, %v997
    %v1498 = vpack.c.b16 %v1006, %v1002
    %v1499 = vpack.c.b16 %v1007, %v1003
    %v1500 = vpack.c.b16 %v1008, %v1004
    %v1501 = vpack.c.b16 %v1009, %v1005
    %v1502 = vpack.c.b16 %v1014, %v1010
    %v1503 = vpack.c.b16 %v1015, %v1011
    %v1504 = vpack.c.b16 %v1016, %v1012
    %v1505 = vpack.c.b16 %v1017, %v1013
    %v1506 = vpack.c.b16 %v1022, %v1018
    %v1507 = vpack.c.b16 %v1023, %v1019
    %v1508 = vpack.c.b16 %v1024, %v1020
    %v1509 = vpack.c.b16 %v1025, %v1021
    %v1510 = vpack.c.b16 %v1030, %v1026
    %v1511 = vpack.c.b16 %v1031, %v1027
    %v1512 = vpack.c.b16 %v1032, %v1028
    %v1513 = vpack.c.b16 %v1033, %v1029
    %v1514 = vpack.c.b16 %v1038, %v1034
    %v1515 = vpack.c.b16 %v1039, %v1035
    %v1516 = vpack.c.b16 %v1040, %v1036
    %v1517 = vpack.c.b16 %v1041, %v1037
    %v1518 = vpack.c.b16 %v1046, %v1042
    %v1519 = vpack.c.b16 %v1047, %v1043
    %v1520 = vpack.c.b16 %v1048, %v1044
    %v1521 = vpack.c.b16 %v1049, %v1045
    %v1522 = vpack.c.b16 %v1054, %v1050
    %v1523 = vpack.c.b16 %v1055, %v1051
    %v1524 = vpack.c.b16 %v1056, %v1052
    %v1525 = vpack.c.b16 %v1057, %v1053
    %v1526 = vpack.c.b16 %v1062, %v1058
    %v1527 = vpack.c.b16 %v1063, %v1059
    %v1528 = vpack.c.b16 %v1064, %v1060
    %v1529 = vpack.c.b16 %v1065, %v1061
    %v1530 = vpack.c.b16 %v1070, %v1066
    %v1531 = vpack.c.b16 %v1071, %v1067
    %v1532 = vpack.c.b16 %v1072, %v1068
    %v1533 = vpack.c.b16 %v1073, %v1069
    %v1534 = vpack.c.b16 %v1078, %v1074
    %v1535 = vpack.c.b16 %v1079, %v1075
    %v1536 = vpack.c.b16 %v1080, %v1076
    %v1537 = vpack.c.b16 %v1081, %v1077
    %v1538 = vpack.c.b16 %v1086, %v1082
    %v1539 = vpack.c.b16 %v1087, %v1083
    %v1540 = vpack.c.b16 %v1088, %v1084
    %v1541 = vpack.c.b16 %v1089, %v1085
    %v1542 = vpack.c.b16 %v1094, %v1090
    %v1543 = vpack.c.b16 %v1095, %v1091
    %v1544 = vpack.c.b16 %v1096, %v1092
    %v1545 = vpack.c.b16 %v1097, %v1093
    %v1546 = vpack.c.b16 %v1102, %v1098
    %v1547 = vpack.c.b16 %v1103, %v1099
    %v1548 = vpack.c.b16 %v1104, %v1100
    %v1549 = vpack.c.b16 %v1105, %v1101
    %v1550 = vpack.c.b16 %v1110, %v1106
    %v1551 = vpack.c.b16 %v1111, %v1107
    %v1552 = vpack.c.b16 %v1112, %v1108
    %v1553 = vpack.c.b16 %v1113, %v1109
    %v1554 = vpack.c.b16 %v1118, %v1114
    %v1555 = vpack.c.b16 %v1119, %v1115
    %v1556 = vpack.c.b16 %v1120, %v1116
    %v1557 = vpack.c.b16 %v1121, %v1117
    %v1558 = vpack.c.b16 %v1126, %v1122
    %v1559 = vpack.c.b16 %v1127, %v1123
    %v1560 = vpack.c.b16 %v1128, %v1124
    %v1561 = vpack.c.b16 %v1129, %v1125
    %v1562 = vpack.c.b16 %v1134, %v1130
    %v1563 = vpack.c.b16 %v1135, %v1131
    %v1564 = vpack.c.b16 %v1136, %v1132
    %v1565 = vpack.c.b16 %v1137, %v1133
    %v1566 = vpack.c.b16 %v1142, %v1138
    %v1567 = vpack.c.b16 %v1143, %v1139
    %v1568 = vpack.c.b16 %v1144, %v1140
    %v1569 = vpack.c.b16 %v1145, %v1141
    %v1570 = vpack.c.b16 %v1150, %v1146
    %v1571 = vpack.c.b16 %v1151, %v1147
    %v1572 = vpack.c.b16 %v1152, %v1148
    %v1573 = vpack.c.b16 %v1153, %v1149
    %v1574 = vpack.c.b16 %v1158, %v1154
    %v1575 = vpack.c.b16 %v1159, %v1155
    %v1576 = vpack.c.b16 %v1160, %v1156
    %v1577 = vpack.c.b16 %v1161, %v1157
    %v1578 = vpack.c.b16 %v1166, %v1162
    %v1579 = vpack.c.b16 %v1167, %v1163
    %v1580 = vpack.c.b16 %v1168, %v1164
    %v1581 = vpack.c.b16 %v1169, %v1165
    %v1582 = vpack.c.b16 %v1174, %v1170
    %v1583 = vpack.c.b16 %v1175, %v1171
    %v1584 = vpack.c.b16 %v1176, %v1172
    %v1585 = vpack.c.b16 %v1177, %v1173
    %v1586 = vpack.c.b16 %v1182, %v1178
    %v1587 = vpack.c.b16 %v1183, %v1179
    %v1588 = vpack.c.b16 %v1184, %v1180
    %v1589 = vpack.c.b16 %v1185, %v1181
    %v1590 = vpack.c.b16 %v1190, %v1186
    %v1591 = vpack.c.b16 %v1191, %v1187
    %v1592 = vpack.c.b16 %v1192, %v1188
    %v1593 = vpack.c.b16 %v1193, %v1189
    %v1594 = vpack.c.b16 %v1198, %v1194
    %v1595 = vpack.c.b16 %v1199, %v1195
    %v1596 = vpack.c.b16 %v1200, %v1196
    %v1597 = vpack.c.b16 %v1201, %v1197
    %v1598 = vpack.c.b16 %v1206, %v1202
    %v1599 = vpack.c.b16 %v1207, %v1203
    %v1600 = vpack.c.b16 %v1208, %v1204
    %v1601 = vpack.c.b16 %v1209, %v1205
    %v1602 = vpack.c.b16 %v1214, %v1210
    %v1603 = vpack.c.b16 %v1215, %v1211
    %v1604 = vpack.c.b16 %v1216, %v1212
    %v1605 = vpack.c.b16 %v1217, %v1213
    %v1606 = vpack.c.b16 %v1222, %v1218
    %v1607 = vpack.c.b16 %v1223, %v1219
    %v1608 = vpack.c.b16 %v1224, %v1220
    %v1609 = vpack.c.b16 %v1225, %v1221
    %v1610 = vpack.c.b16 %v1230, %v1226
    %v1611 = vpack.c.b16 %v1231, %v1227
    %v1612 = vpack.c.b16 %v1232, %v1228
    %v1613 = vpack.c.b16 %v1233, %v1229
    %v1614 = vpack.c.b16 %v1238, %v1234
    %v1615 = vpack.c.b16 %v1239, %v1235
    %v1616 = vpack.c.b16 %v1240, %v1236
    %v1617 = vpack.c.b16 %v1241, %v1237
    %v1618 = vpack.c.b16 %v1246, %v1242
    %v1619 = vpack.c.b16 %v1247, %v1243
    %v1620 = vpack.c.b16 %v1248, %v1244
    %v1621 = vpack.c.b16 %v1249, %v1245
    %v1622 = vpack.c.b16 %v1254, %v1250
    %v1623 = vpack.c.b16 %v1255, %v1251
    %v1624 = vpack.c.b16 %v1256, %v1252
    %v1625 = vpack.c.b16 %v1257, %v1253
    %v1626 = vpack.c.b16 %v1262, %v1258
    %v1627 = vpack.c.b16 %v1263, %v1259
    %v1628 = vpack.c.b16 %v1264, %v1260
    %v1629 = vpack.c.b16 %v1265, %v1261
    %v1630 = vpack.c.b16 %v1270, %v1266
    %v1631 = vpack.c.b16 %v1271, %v1267
    %v1632 = vpack.c.b16 %v1272, %v1268
    %v1633 = vpack.c.b16 %v1273, %v1269
    %v1634 = vpack.c.b16 %v1278, %v1274
    %v1635 = vpack.c.b16 %v1279, %v1275
    %v1636 = vpack.c.b16 %v1280, %v1276
    %v1637 = vpack.c.b16 %v1281, %v1277
    %v1638 = vpack.c.b16 %v1286, %v1282
    %v1639 = vpack.c.b16 %v1287, %v1283
    %v1640 = vpack.c.b16 %v1288, %v1284
    %v1641 = vpack.c.b16 %v1289, %v1285
    %v1642 = vpack.c.b16 %v1294, %v1290
    %v1643 = vpack.c.b16 %v1295, %v1291
    %v1644 = vpack.c.b16 %v1296, %v1292
    %v1645 = vpack.c.b16 %v1297, %v1293
    %v1646 = vpack.c.b16 %v1302, %v1298
    %v1647 = vpack.c.b16 %v1303, %v1299
    %v1648 = vpack.c.b16 %v1304, %v1300
    %v1649 = vpack.c.b16 %v1305, %v1301
    %v1650 = vpack.c.b16 %v1310, %v1306
    %v1651 = vpack.c.b16 %v1311, %v1307
    %v1652 = vpack.c.b16 %v1312, %v1308
    %v1653 = vpack.c.b16 %v1313, %v1309
    %v1654 = vpack.c.b16 %v1318, %v1314
    %v1655 = vpack.c.b16 %v1319, %v1315
    %v1656 = vpack.c.b16 %v1320, %v1316
    %v1657 = vpack.c.b16 %v1321, %v1317
    %v1658 = vpack.c.b16 %v1326, %v1322
    %v1659 = vpack.c.b16 %v1327, %v1323
    %v1660 = vpack.c.b16 %v1328, %v1324
    %v1661 = vpack.c.b16 %v1329, %v1325
    %v1662 = vpack.c.b16 %v1334, %v1330
    %v1663 = vpack.c.b16 %v1335, %v1331
    %v1664 = vpack.c.b16 %v1336, %v1332
    %v1665 = vpack.c.b16 %v1337, %v1333
    %v1666 = vpack.c.b16 %v1342, %v1338
    %v1667 = vpack.c.b16 %v1343, %v1339
    %v1668 = vpack.c.b16 %v1344, %v1340
    %v1669 = vpack.c.b16 %v1345, %v1341
    %v1670 = vpack.c.b16 %v1350, %v1346
    %v1671 = vpack.c.b16 %v1351, %v1347
    %v1672 = vpack.c.b16 %v1352, %v1348
    %v1673 = vpack.c.b16 %v1353, %v1349
    %v1674 = vpack.c.b16 %v1358, %v1354
    %v1675 = vpack.c.b16 %v1359, %v1355
    %v1676 = vpack.c.b16 %v1360, %v1356
    %v1677 = vpack.c.b16 %v1361, %v1357
    %v1678 = vpack.c.b16 %v1366, %v1362
    %v1679 = vpack.c.b16 %v1367, %v1363
    %v1680 = vpack.c.b16 %v1368, %v1364
    %v1681 = vpack.c.b16 %v1369, %v1365
    %v1682 = vpack.c.b16 %v1374, %v1370
    %v1683 = vpack.c.b16 %v1375, %v1371
    %v1684 = vpack.c.b16 %v1376, %v1372
    %v1685 = vpack.c.b16 %v1377, %v1373
    %v1686 = vpack.c.b16 %v1382, %v1378
    %v1687 = vpack.c.b16 %v1383, %v1379
    %v1688 = vpack.c.b16 %v1384, %v1380
    %v1689 = vpack.c.b16 %v1385, %v1381
    %v1690 = vpack.c.b16 %v1390, %v1386
    %v1691 = vpack.c.b16 %v1391, %v1387
    %v1692 = vpack.c.b16 %v1392, %v1388
    %v1693 = vpack.c.b16 %v1393, %v1389
    %v1694 = vpack.c.b16 %v1398, %v1394
    %v1695 = vpack.c.b16 %v1399, %v1395
    %v1696 = vpack.c.b16 %v1400, %v1396
    %v1697 = vpack.c.b16 %v1401, %v1397
    %v1698 = vpack.c.b16 %v1406, %v1402
    %v1699 = vpack.c.b16 %v1407, %v1403
    %v1700 = vpack.c.b16 %v1408, %v1404
    %v1701 = vpack.c.b16 %v1409, %v1405
    %v1702 = vpack.c.b16 %v1414, %v1410
    %v1703 = vpack.c.b16 %v1415, %v1411
    %v1704 = vpack.c.b16 %v1416, %v1412
    %v1705 = vpack.c.b16 %v1417, %v1413
    %v1706 = vpack.c.b16 %v1422, %v1418
    %v1707 = vpack.c.b16 %v1423, %v1419
    %v1708 = vpack.c.b16 %v1424, %v1420
    %v1709 = vpack.c.b16 %v1425, %v1421
    %v1710 = vpack.c.b16 %v1430, %v1426
    %v1711 = vpack.c.b16 %v1431, %v1427
    %v1712 = vpack.c.b16 %v1432, %v1428
    %v1713 = vpack.c.b16 %v1433, %v1429
    %v1714 = vpack.c.b16 %v1438, %v1434
    %v1715 = vpack.c.b16 %v1439, %v1435
    %v1716 = vpack.c.b16 %v1440, %v1436
    %v1717 = vpack.c.b16 %v1441, %v1437
    %v1718 = vpack.c.b16 %v1446, %v1442
    %v1719 = vpack.c.b16 %v1447, %v1443
    %v1720 = vpack.c.b16 %v1448, %v1444
    %v1721 = vpack.c.b16 %v1449, %v1445
    %v1722 = vpack.c.b16 %v1454, %v1450
    %v1723 = vpack.c.b16 %v1455, %v1451
    %v1724 = vpack.c.b16 %v1456, %v1452
    %v1725 = vpack.c.b16 %v1457, %v1453
    %v1726 = vpack.c.b16 %v1462, %v1458
    %v1727 = vpack.c.b16 %v1463, %v1459
    %v1728 = vpack.c.b16 %v1464, %v1460
    %v1729 = vpack.c.b16 %v1465, %v1461
    %v1730 = vpack.c.b16 %v1470, %v1466
    %v1731 = vpack.c.b16 %v1471, %v1467
    %v1732 = vpack.c.b16 %v1472, %v1468
    %v1733 = vpack.c.b16 %v1473, %v1469
    %v1734 = vpack.c.b16 %v1478, %v1474
    %v1735 = vpack.c.b16 %v1479, %v1475
    %v1736 = vpack.c.b16 %v1480, %v1476
    %v1737 = vpack.c.b16 %v1481, %v1477
    %1994 = vmatprep.subr.bf16.mxu0 %v1483
    %1995 = vmatpush1.bf16.msra.mxu0 %v1482
    %1996 = vmatprep.subr.bf16.mxu0 %v1487
    %1997 = vmatpush1.bf16.msra.mxu0 %v1486
    %1998 = vmatprep.subr.bf16.mxu0 %v1491
    %1999 = vmatpush1.bf16.msra.mxu0 %v1490
    %2000 = vmatprep.subr.bf16.mxu0 %v1495
    %2001 = vmatpush1.bf16.msra.mxu0 %v1494
    %2002 = vmatprep.subr.bf16.mxu0 %v1499
    %2003 = vmatpush1.bf16.msra.mxu0 %v1498
    %2004 = vmatprep.subr.bf16.mxu0 %v1503
    %2005 = vmatpush1.bf16.msra.mxu0 %v1502
    %2006 = vmatprep.subr.bf16.mxu0 %v1507
    %2007 = vmatpush1.bf16.msra.mxu0 %v1506
    %2008 = vmatprep.subr.bf16.mxu0 %v1511
    %2009 = vmatpush1.bf16.msra.mxu0 %v1510
    %2010 = vmatprep.subr.bf16.mxu0 %v1515
    %2011 = vmatpush1.bf16.msra.mxu0 %v1514
    %2012 = vmatprep.subr.bf16.mxu0 %v1519
    %2013 = vmatpush1.bf16.msra.mxu0 %v1518
    %2014 = vmatprep.subr.bf16.mxu0 %v1523
    %2015 = vmatpush1.bf16.msra.mxu0 %v1522
    %2016 = vmatprep.subr.bf16.mxu0 %v1527
    %2017 = vmatpush1.bf16.msra.mxu0 %v1526
    %2018 = vmatprep.subr.bf16.mxu0 %v1531
    %2019 = vmatpush1.bf16.msra.mxu0 %v1530
    %2020 = vmatprep.subr.bf16.mxu0 %v1535
    %2021 = vmatpush1.bf16.msra.mxu0 %v1534
    %2022 = vmatprep.subr.bf16.mxu0 %v1539
    %2023 = vmatpush1.bf16.msra.mxu0 %v1538
    %2024 = vmatprep.subr.bf16.mxu0 %v1543
    %2025 = vmatpush1.bf16.msra.mxu0 %v1542
    %2026 = vmatprep.mubr.bf16.mxu0 %v429
    %2027 = vmatmul.mubr.bf16.gmra.mrb[0].mxu0 %v428
    %v2028 = vpop.f32.mrb[0].mxu0
    %v2029 = vadd.f32 %v697, %v2028
    %v2030 = vpop.f32.mrb[0].mxu0
    %v2031 = vadd.f32 %v701, %v2030
    %v2032 = vpop.f32.mrb[0].mxu0
    %v2033 = vpop.f32.mrb[0].mxu0
    %2034 = vdwg.mxu0
    %2035 = vmatprep.subr.bf16.mxu0 %v1547
    %2036 = vmatpush1.bf16.msra.mxu0 %v1546
    %2037 = vmatprep.subr.bf16.mxu0 %v1551
    %2038 = vmatpush1.bf16.msra.mxu0 %v1550
    %2039 = vmatprep.subr.bf16.mxu0 %v1555
    %2040 = vmatpush1.bf16.msra.mxu0 %v1554
    %2041 = vmatprep.subr.bf16.mxu0 %v1559
    %2042 = vmatpush1.bf16.msra.mxu0 %v1558
    %2043 = vmatprep.subr.bf16.mxu0 %v1563
    %2044 = vmatpush1.bf16.msra.mxu0 %v1562
    %2045 = vmatprep.subr.bf16.mxu0 %v1567
    %2046 = vmatpush1.bf16.msra.mxu0 %v1566
    %2047 = vmatprep.subr.bf16.mxu0 %v1571
    %2048 = vmatpush1.bf16.msra.mxu0 %v1570
    %2049 = vmatprep.subr.bf16.mxu0 %v1575
    %2050 = vmatpush1.bf16.msra.mxu0 %v1574
    %2051 = vmatprep.subr.bf16.mxu0 %v1579
    %2052 = vmatpush1.bf16.msra.mxu0 %v1578
    %2053 = vmatprep.subr.bf16.mxu0 %v1583
    %2054 = vmatpush1.bf16.msra.mxu0 %v1582
    %2055 = vmatprep.subr.bf16.mxu0 %v1587
    %2056 = vmatpush1.bf16.msra.mxu0 %v1586
    %2057 = vmatprep.subr.bf16.mxu0 %v1591
    %2058 = vmatpush1.bf16.msra.mxu0 %v1590
    %2059 = vmatprep.subr.bf16.mxu0 %v1595
    %2060 = vmatpush1.bf16.msra.mxu0 %v1594
    %2061 = vmatprep.subr.bf16.mxu0 %v1599
    %2062 = vmatpush1.bf16.msra.mxu0 %v1598
    %2063 = vmatprep.subr.bf16.mxu0 %v1603
    %2064 = vmatpush1.bf16.msra.mxu0 %v1602
    %2065 = vmatprep.subr.bf16.mxu0 %v1607
    %2066 = vmatpush1.bf16.msra.mxu0 %v1606
    %2067 = vmatprep.mubr.bf16.mxu0 %v431
    %2068 = vmatmul.mubr.bf16.gmra.mrb[0].mxu0 %v430
    %v2069 = vpop.f32.mrb[0].mxu0
    %v2070 = vadd.f32 %v2029, %v2069
    %v2071 = vpop.f32.mrb[0].mxu0
    %v2072 = vadd.f32 %v2031, %v2071
    %v2073 = vpop.f32.mrb[0].mxu0
    %v2074 = vpop.f32.mrb[0].mxu0
    %2075 = vdwg.mxu0
    %2076 = vmatprep.subr.bf16.mxu0 %v1611
    %2077 = vmatpush1.bf16.msra.mxu0 %v1610
    %2078 = vmatprep.subr.bf16.mxu0 %v1615
    %2079 = vmatpush1.bf16.msra.mxu0 %v1614
    %2080 = vmatprep.subr.bf16.mxu0 %v1619
    %2081 = vmatpush1.bf16.msra.mxu0 %v1618
    %2082 = vmatprep.subr.bf16.mxu0 %v1623
    %2083 = vmatpush1.bf16.msra.mxu0 %v1622
    %2084 = vmatprep.subr.bf16.mxu0 %v1627
    %2085 = vmatpush1.bf16.msra.mxu0 %v1626
    %2086 = vmatprep.subr.bf16.mxu0 %v1631
    %2087 = vmatpush1.bf16.msra.mxu0 %v1630
    %2088 = vmatprep.subr.bf16.mxu0 %v1635
    %2089 = vmatpush1.bf16.msra.mxu0 %v1634
    %2090 = vmatprep.subr.bf16.mxu0 %v1639
    %2091 = vmatpush1.bf16.msra.mxu0 %v1638
    %2092 = vmatprep.subr.bf16.mxu0 %v1643
    %2093 = vmatpush1.bf16.msra.mxu0 %v1642
    %2094 = vmatprep.subr.bf16.mxu0 %v1647
    %2095 = vmatpush1.bf16.msra.mxu0 %v1646
    %2096 = vmatprep.subr.bf16.mxu0 %v1651
    %2097 = vmatpush1.bf16.msra.mxu0 %v1650
    %2098 = vmatprep.subr.bf16.mxu0 %v1655
    %2099 = vmatpush1.bf16.msra.mxu0 %v1654
    %2100 = vmatprep.subr.bf16.mxu0 %v1659
    %2101 = vmatpush1.bf16.msra.mxu0 %v1658
    %2102 = vmatprep.subr.bf16.mxu0 %v1663
    %2103 = vmatpush1.bf16.msra.mxu0 %v1662
    %2104 = vmatprep.subr.bf16.mxu0 %v1667
    %2105 = vmatpush1.bf16.msra.mxu0 %v1666
    %2106 = vmatprep.subr.bf16.mxu0 %v1671
    %2107 = vmatpush1.bf16.msra.mxu0 %v1670
    %2108 = vmatprep.mubr.bf16.mxu0 %v433
    %2109 = vmatmul.mubr.bf16.gmra.mrb[0].mxu0 %v432
    %v2110 = vpop.f32.mrb[0].mxu0
    %v2111 = vadd.f32 %v2070, %v2110
    %v2112 = vpop.f32.mrb[0].mxu0
    %v2113 = vadd.f32 %v2072, %v2112
    %v2114 = vpop.f32.mrb[0].mxu0
    %v2115 = vpop.f32.mrb[0].mxu0
    %2116 = vdwg.mxu0
    %2117 = vmatprep.subr.bf16.mxu0 %v1675
    %2118 = vmatpush1.bf16.msra.mxu0 %v1674
    %2119 = vmatprep.subr.bf16.mxu0 %v1679
    %2120 = vmatpush1.bf16.msra.mxu0 %v1678
    %2121 = vmatprep.subr.bf16.mxu0 %v1683
    %2122 = vmatpush1.bf16.msra.mxu0 %v1682
    %2123 = vmatprep.subr.bf16.mxu0 %v1687
    %2124 = vmatpush1.bf16.msra.mxu0 %v1686
    %2125 = vmatprep.subr.bf16.mxu0 %v1691
    %2126 = vmatpush1.bf16.msra.mxu0 %v1690
    %2127 = vmatprep.subr.bf16.mxu0 %v1695
    %2128 = vmatpush1.bf16.msra.mxu0 %v1694
    %2129 = vmatprep.subr.bf16.mxu0 %v1699
    %2130 = vmatpush1.bf16.msra.mxu0 %v1698
    %2131 = vmatprep.subr.bf16.mxu0 %v1703
    %2132 = vmatpush1.bf16.msra.mxu0 %v1702
    %2133 = vmatprep.subr.bf16.mxu0 %v1707
    %2134 = vmatpush1.bf16.msra.mxu0 %v1706
    %2135 = vmatprep.subr.bf16.mxu0 %v1711
    %2136 = vmatpush1.bf16.msra.mxu0 %v1710
    %2137 = vmatprep.subr.bf16.mxu0 %v1715
    %2138 = vmatpush1.bf16.msra.mxu0 %v1714
    %2139 = vmatprep.subr.bf16.mxu0 %v1719
    %2140 = vmatpush1.bf16.msra.mxu0 %v1718
    %2141 = vmatprep.subr.bf16.mxu0 %v1723
    %2142 = vmatpush1.bf16.msra.mxu0 %v1722
    %2143 = vmatprep.subr.bf16.mxu0 %v1727
    %2144 = vmatpush1.bf16.msra.mxu0 %v1726
    %2145 = vmatprep.subr.bf16.mxu0 %v1731
    %2146 = vmatpush1.bf16.msra.mxu0 %v1730
    %2147 = vmatprep.subr.bf16.mxu0 %v1735
    %2148 = vmatpush1.bf16.msra.mxu0 %v1734
    %2149 = vmatprep.mubr.bf16.mxu0 %v435
    %2150 = vmatmul.mubr.bf16.gmra.mrb[0].mxu0 %v434
    %v2151 = vpop.f32.mrb[0].mxu0
    %v2152 = vadd.f32 %v2111, %v2151
    %v2153 = vpop.f32.mrb[0].mxu0
    %v2154 = vadd.f32 %v2113, %v2153
    %v2155 = vpop.f32.mrb[0].mxu0
    %v2156 = vpop.f32.mrb[0].mxu0
    %2157 = vdwg.mxu0
    %2158 = vmatprep.subr.bf16.mxu0 %v1485
    %2159 = vmatpush1.bf16.msra.mxu0 %v1484
    %2160 = vmatprep.subr.bf16.mxu0 %v1489
    %2161 = vmatpush1.bf16.msra.mxu0 %v1488
    %2162 = vmatprep.subr.bf16.mxu0 %v1493
    %2163 = vmatpush1.bf16.msra.mxu0 %v1492
    %2164 = vmatprep.subr.bf16.mxu0 %v1497
    %2165 = vmatpush1.bf16.msra.mxu0 %v1496
    %2166 = vmatprep.subr.bf16.mxu0 %v1501
    %2167 = vmatpush1.bf16.msra.mxu0 %v1500
    %2168 = vmatprep.subr.bf16.mxu0 %v1505
    %2169 = vmatpush1.bf16.msra.mxu0 %v1504
    %2170 = vmatprep.subr.bf16.mxu0 %v1509
    %2171 = vmatpush1.bf16.msra.mxu0 %v1508
    %2172 = vmatprep.subr.bf16.mxu0 %v1513
    %2173 = vmatpush1.bf16.msra.mxu0 %v1512
    %2174 = vmatprep.subr.bf16.mxu0 %v1517
    %2175 = vmatpush1.bf16.msra.mxu0 %v1516
    %2176 = vmatprep.subr.bf16.mxu0 %v1521
    %2177 = vmatpush1.bf16.msra.mxu0 %v1520
    %2178 = vmatprep.subr.bf16.mxu0 %v1525
    %2179 = vmatpush1.bf16.msra.mxu0 %v1524
    %2180 = vmatprep.subr.bf16.mxu0 %v1529
    %2181 = vmatpush1.bf16.msra.mxu0 %v1528
    %2182 = vmatprep.subr.bf16.mxu0 %v1533
    %2183 = vmatpush1.bf16.msra.mxu0 %v1532
    %2184 = vmatprep.subr.bf16.mxu0 %v1537
    %2185 = vmatpush1.bf16.msra.mxu0 %v1536
    %2186 = vmatprep.subr.bf16.mxu0 %v1541
    %2187 = vmatpush1.bf16.msra.mxu0 %v1540
    %2188 = vmatprep.subr.bf16.mxu0 %v1545
    %2189 = vmatpush1.bf16.msra.mxu0 %v1544
    %2190 = vmatprep.mubr.bf16.mxu0 %v429
    %2191 = vmatmul.mubr.bf16.gmra.mrb[0].mxu0 %v428
    %v2192 = vpop.f32.mrb[0].mxu0
    %v2193 = vadd.f32 %v705, %v2192
    %v2194 = vpop.f32.mrb[0].mxu0
    %v2195 = vadd.f32 %v709, %v2194
    %v2196 = vpop.f32.mrb[0].mxu0
    %v2197 = vpop.f32.mrb[0].mxu0
    %2198 = vdwg.mxu0
    %2199 = vmatprep.subr.bf16.mxu0 %v1549
    %2200 = vmatpush1.bf16.msra.mxu0 %v1548
    %2201 = vmatprep.subr.bf16.mxu0 %v1553
    %2202 = vmatpush1.bf16.msra.mxu0 %v1552
    %2203 = vmatprep.subr.bf16.mxu0 %v1557
    %2204 = vmatpush1.bf16.msra.mxu0 %v1556
    %2205 = vmatprep.subr.bf16.mxu0 %v1561
    %2206 = vmatpush1.bf16.msra.mxu0 %v1560
    %2207 = vmatprep.subr.bf16.mxu0 %v1565
    %2208 = vmatpush1.bf16.msra.mxu0 %v1564
    %2209 = vmatprep.subr.bf16.mxu0 %v1569
    %2210 = vmatpush1.bf16.msra.mxu0 %v1568
    %2211 = vmatprep.subr.bf16.mxu0 %v1573
    %2212 = vmatpush1.bf16.msra.mxu0 %v1572
    %2213 = vmatprep.subr.bf16.mxu0 %v1577
    %2214 = vmatpush1.bf16.msra.mxu0 %v1576
    %2215 = vmatprep.subr.bf16.mxu0 %v1581
    %2216 = vmatpush1.bf16.msra.mxu0 %v1580
    %2217 = vmatprep.subr.bf16.mxu0 %v1585
    %2218 = vmatpush1.bf16.msra.mxu0 %v1584
    %2219 = vmatprep.subr.bf16.mxu0 %v1589
    %2220 = vmatpush1.bf16.msra.mxu0 %v1588
    %2221 = vmatprep.subr.bf16.mxu0 %v1593
    %2222 = vmatpush1.bf16.msra.mxu0 %v1592
    %2223 = vmatprep.subr.bf16.mxu0 %v1597
    %2224 = vmatpush1.bf16.msra.mxu0 %v1596
    %2225 = vmatprep.subr.bf16.mxu0 %v1601
    %2226 = vmatpush1.bf16.msra.mxu0 %v1600
    %2227 = vmatprep.subr.bf16.mxu0 %v1605
    %2228 = vmatpush1.bf16.msra.mxu0 %v1604
    %2229 = vmatprep.subr.bf16.mxu0 %v1609
    %2230 = vmatpush1.bf16.msra.mxu0 %v1608
    %2231 = vmatprep.mubr.bf16.mxu0 %v431
    %2232 = vmatmul.mubr.bf16.gmra.mrb[0].mxu0 %v430
    %v2233 = vpop.f32.mrb[0].mxu0
    %v2234 = vadd.f32 %v2193, %v2233
    %v2235 = vpop.f32.mrb[0].mxu0
    %v2236 = vadd.f32 %v2195, %v2235
    %v2237 = vpop.f32.mrb[0].mxu0
    %v2238 = vpop.f32.mrb[0].mxu0
    %2239 = vdwg.mxu0
    %2240 = vmatprep.subr.bf16.mxu0 %v1613
    %2241 = vmatpush1.bf16.msra.mxu0 %v1612
    %2242 = vmatprep.subr.bf16.mxu0 %v1617
    %2243 = vmatpush1.bf16.msra.mxu0 %v1616
    %2244 = vmatprep.subr.bf16.mxu0 %v1621
    %2245 = vmatpush1.bf16.msra.mxu0 %v1620
    %2246 = vmatprep.subr.bf16.mxu0 %v1625
    %2247 = vmatpush1.bf16.msra.mxu0 %v1624
    %2248 = vmatprep.subr.bf16.mxu0 %v1629
    %2249 = vmatpush1.bf16.msra.mxu0 %v1628
    %2250 = vmatprep.subr.bf16.mxu0 %v1633
    %2251 = vmatpush1.bf16.msra.mxu0 %v1632
    %2252 = vmatprep.subr.bf16.mxu0 %v1637
    %2253 = vmatpush1.bf16.msra.mxu0 %v1636
    %2254 = vmatprep.subr.bf16.mxu0 %v1641
    %2255 = vmatpush1.bf16.msra.mxu0 %v1640
    %2256 = vmatprep.subr.bf16.mxu0 %v1645
    %2257 = vmatpush1.bf16.msra.mxu0 %v1644
    %2258 = vmatprep.subr.bf16.mxu0 %v1649
    %2259 = vmatpush1.bf16.msra.mxu0 %v1648
    %2260 = vmatprep.subr.bf16.mxu0 %v1653
    %2261 = vmatpush1.bf16.msra.mxu0 %v1652
    %2262 = vmatprep.subr.bf16.mxu0 %v1657
    %2263 = vmatpush1.bf16.msra.mxu0 %v1656
    %2264 = vmatprep.subr.bf16.mxu0 %v1661
    %2265 = vmatpush1.bf16.msra.mxu0 %v1660
    %2266 = vmatprep.subr.bf16.mxu0 %v1665
    %2267 = vmatpush1.bf16.msra.mxu0 %v1664
    %2268 = vmatprep.subr.bf16.mxu0 %v1669
    %2269 = vmatpush1.bf16.msra.mxu0 %v1668
    %2270 = vmatprep.subr.bf16.mxu0 %v1673
    %2271 = vmatpush1.bf16.msra.mxu0 %v1672
    %2272 = vmatprep.mubr.bf16.mxu0 %v433
    %2273 = vmatmul.mubr.bf16.gmra.mrb[0].mxu0 %v432
    %v2274 = vpop.f32.mrb[0].mxu0
    %v2275 = vadd.f32 %v2234, %v2274
    %v2276 = vpop.f32.mrb[0].mxu0
    %v2277 = vadd.f32 %v2236, %v2276
    %v2278 = vpop.f32.mrb[0].mxu0
    %v2279 = vpop.f32.mrb[0].mxu0
    %2280 = vdwg.mxu0
    %2281 = vmatprep.subr.bf16.mxu0 %v1677
    %2282 = vmatpush1.bf16.msra.mxu0 %v1676
    %2283 = vmatprep.subr.bf16.mxu0 %v1681
    %2284 = vmatpush1.bf16.msra.mxu0 %v1680
    %2285 = vmatprep.subr.bf16.mxu0 %v1685
    %2286 = vmatpush1.bf16.msra.mxu0 %v1684
    %2287 = vmatprep.subr.bf16.mxu0 %v1689
    %2288 = vmatpush1.bf16.msra.mxu0 %v1688
    %2289 = vmatprep.subr.bf16.mxu0 %v1693
    %2290 = vmatpush1.bf16.msra.mxu0 %v1692
    %2291 = vmatprep.subr.bf16.mxu0 %v1697
    %2292 = vmatpush1.bf16.msra.mxu0 %v1696
    %2293 = vmatprep.subr.bf16.mxu0 %v1701
    %2294 = vmatpush1.bf16.msra.mxu0 %v1700
    %2295 = vmatprep.subr.bf16.mxu0 %v1705
    %2296 = vmatpush1.bf16.msra.mxu0 %v1704
    %2297 = vmatprep.subr.bf16.mxu0 %v1709
    %2298 = vmatpush1.bf16.msra.mxu0 %v1708
    %2299 = vmatprep.subr.bf16.mxu0 %v1713
    %2300 = vmatpush1.bf16.msra.mxu0 %v1712
    %2301 = vmatprep.subr.bf16.mxu0 %v1717
    %2302 = vmatpush1.bf16.msra.mxu0 %v1716
    %2303 = vmatprep.subr.bf16.mxu0 %v1721
    %2304 = vmatpush1.bf16.msra.mxu0 %v1720
    %2305 = vmatprep.subr.bf16.mxu0 %v1725
    %2306 = vmatpush1.bf16.msra.mxu0 %v1724
    %2307 = vmatprep.subr.bf16.mxu0 %v1729
    %2308 = vmatpush1.bf16.msra.mxu0 %v1728
    %2309 = vmatprep.subr.bf16.mxu0 %v1733
    %2310 = vmatpush1.bf16.msra.mxu0 %v1732
    %2311 = vmatprep.subr.bf16.mxu0 %v1737
    %2312 = vmatpush1.bf16.msra.mxu0 %v1736
    %2313 = vmatprep.mubr.bf16.mxu0 %v435
    %2314 = vmatmul.mubr.bf16.gmra.mrb[0].mxu0 %v434
    %v2315 = vpop.f32.mrb[0].mxu0
    %v2316 = vadd.f32 %v2275, %v2315
    %v2317 = vpop.f32.mrb[0].mxu0
    %v2318 = vadd.f32 %v2277, %v2317
    %v2319 = vpop.f32.mrb[0].mxu0
    %v2320 = vpop.f32.mrb[0].mxu0
    %2321 = vdwg.mxu0
    %v2322 = vmax.f32 %v2152, 0.0
    %v2323 = vmax.f32 %v2154, 0.0
    %v2324 = vmax.f32 %v2316, 0.0
    %v2325 = vmax.f32 %v2318, 0.0
    %v2326 = vpack.c.bf16 %v2322, %v2322
    %v2327 = vpack.c.bf16 %v2323, %v2323
    %v2328 = vpack.c.bf16 %v2324, %v2324
    %v2329 = vpack.c.bf16 %v2325, %v2325
    %v2330 = vld [vmem:[#allocation10] sm:$0xff]
    %v2331 = vld [vmem:[#allocation10 + $0x8] sm:$0xff]
    %v2332 = vld [vmem:[#allocation10 + $0x10] sm:$0xff]
    %v2333 = vld [vmem:[#allocation10 + $0x18] sm:$0xff]
    %v2334 = vld [vmem:[#allocation10 + $0x20] sm:$0xff]
    %v2335 = vld [vmem:[#allocation10 + $0x28] sm:$0xff]
    %v2336 = vld [vmem:[#allocation10 + $0x30] sm:$0xff]
    %v2337 = vld [vmem:[#allocation10 + $0x38] sm:$0xff]
    %v2338 = vld [vmem:[#allocation10 + $0x40] sm:$0xff]
    %v2339 = vld [vmem:[#allocation10 + $0x48] sm:$0xff]
    %v2340 = vld [vmem:[#allocation10 + $0x50] sm:$0xff]
    %v2341 = vld [vmem:[#allocation10 + $0x58] sm:$0xff]
    %v2342 = vld [vmem:[#allocation10 + $0x60] sm:$0xff]
    %v2343 = vld [vmem:[#allocation10 + $0x68] sm:$0xff]
    %v2344 = vld [vmem:[#allocation10 + $0x70] sm:$0xff]
    %v2345 = vld [vmem:[#allocation10 + $0x78] sm:$0xff]
    %v2346 = vld [vmem:[#allocation10 + $0x80] sm:$0xff]
    %v2347 = vld [vmem:[#allocation10 + $0x88] sm:$0xff]
    %v2348 = vld [vmem:[#allocation10 + $0x90] sm:$0xff]
    %v2349 = vld [vmem:[#allocation10 + $0x98] sm:$0xff]
    %v2350 = vld [vmem:[#allocation10 + $0xa0] sm:$0xff]
    %v2351 = vld [vmem:[#allocation10 + $0xa8] sm:$0xff]
    %v2352 = vld [vmem:[#allocation10 + $0xb0] sm:$0xff]
    %v2353 = vld [vmem:[#allocation10 + $0xb8] sm:$0xff]
    %v2354 = vld [vmem:[#allocation10 + $0xc0] sm:$0xff]
    %v2355 = vld [vmem:[#allocation10 + $0xc8] sm:$0xff]
    %v2356 = vld [vmem:[#allocation10 + $0xd0] sm:$0xff]
    %v2357 = vld [vmem:[#allocation10 + $0xd8] sm:$0xff]
    %v2358 = vld [vmem:[#allocation10 + $0xe0] sm:$0xff]
    %v2359 = vld [vmem:[#allocation10 + $0xe8] sm:$0xff]
    %v2360 = vld [vmem:[#allocation10 + $0xf0] sm:$0xff]
    %v2361 = vld [vmem:[#allocation10 + $0xf8] sm:$0xff]
    %v2362 = vld [vmem:[#allocation10 + $0x100] sm:$0xff]
    %v2363 = vld [vmem:[#allocation10 + $0x108] sm:$0xff]
    %v2364 = vld [vmem:[#allocation10 + $0x110] sm:$0xff]
    %v2365 = vld [vmem:[#allocation10 + $0x118] sm:$0xff]
    %v2366 = vld [vmem:[#allocation10 + $0x120] sm:$0xff]
    %v2367 = vld [vmem:[#allocation10 + $0x128] sm:$0xff]
    %v2368 = vld [vmem:[#allocation10 + $0x130] sm:$0xff]
    %v2369 = vld [vmem:[#allocation10 + $0x138] sm:$0xff]
    %v2370 = vld [vmem:[#allocation10 + $0x140] sm:$0xff]
    %v2371 = vld [vmem:[#allocation10 + $0x148] sm:$0xff]
    %v2372 = vld [vmem:[#allocation10 + $0x150] sm:$0xff]
    %v2373 = vld [vmem:[#allocation10 + $0x158] sm:$0xff]
    %v2374 = vld [vmem:[#allocation10 + $0x160] sm:$0xff]
    %v2375 = vld [vmem:[#allocation10 + $0x168] sm:$0xff]
    %v2376 = vld [vmem:[#allocation10 + $0x170] sm:$0xff]
    %v2377 = vld [vmem:[#allocation10 + $0x178] sm:$0xff]
    %v2378 = vld [vmem:[#allocation10 + $0x180] sm:$0xff]
    %v2379 = vld [vmem:[#allocation10 + $0x188] sm:$0xff]
    %v2380 = vld [vmem:[#allocation10 + $0x190] sm:$0xff]
    %v2381 = vld [vmem:[#allocation10 + $0x198] sm:$0xff]
    %v2382 = vld [vmem:[#allocation10 + $0x1a0] sm:$0xff]
    %v2383 = vld [vmem:[#allocation10 + $0x1a8] sm:$0xff]
    %v2384 = vld [vmem:[#allocation10 + $0x1b0] sm:$0xff]
    %v2385 = vld [vmem:[#allocation10 + $0x1b8] sm:$0xff]
    %v2386 = vld [vmem:[#allocation10 + $0x1c0] sm:$0xff]
    %v2387 = vld [vmem:[#allocation10 + $0x1c8] sm:$0xff]
    %v2388 = vld [vmem:[#allocation10 + $0x1d0] sm:$0xff]
    %v2389 = vld [vmem:[#allocation10 + $0x1d8] sm:$0xff]
    %v2390 = vld [vmem:[#allocation10 + $0x1e0] sm:$0xff]
    %v2391 = vld [vmem:[#allocation10 + $0x1e8] sm:$0xff]
    %v2392 = vld [vmem:[#allocation10 + $0x1f0] sm:$0xff]
    %v2393 = vld [vmem:[#allocation10 + $0x1f8] sm:$0xff]
    %v2394 = vld [vmem:[%s6] sm:$0x3]
    %v2396 = vlaneseq
    %v2397 = vshrl.u32 %v2396, 7
    %v2398 = vsub.s32 0, %v2397
    %v2399 = vrot.slane %v2394, %v2398
    %v2400 = vlaneseq
    %v2401 = vshrl.u32 %v2400, 7
    %v2402 = vsub.s32 1, %v2401
    %v2403 = vrot.slane %v2394, %v2402
    %v2470 = vunpack.c.l.b16 %v2330
    %v2471 = vunpack.c.h.b16 %v2330
    %v2472 = vunpack.c.l.b16 %v2331
    %v2473 = vunpack.c.h.b16 %v2331
    %v2474 = vunpack.c.l.b16 %v2332
    %v2475 = vunpack.c.h.b16 %v2332
    %v2476 = vunpack.c.l.b16 %v2333
    %v2477 = vunpack.c.h.b16 %v2333
    %v2478 = vunpack.c.l.b16 %v2334
    %v2479 = vunpack.c.h.b16 %v2334
    %v2480 = vunpack.c.l.b16 %v2335
    %v2481 = vunpack.c.h.b16 %v2335
    %v2482 = vunpack.c.l.b16 %v2336
    %v2483 = vunpack.c.h.b16 %v2336
    %v2484 = vunpack.c.l.b16 %v2337
    %v2485 = vunpack.c.h.b16 %v2337
    %v2486 = vunpack.c.l.b16 %v2338
    %v2487 = vunpack.c.h.b16 %v2338
    %v2488 = vunpack.c.l.b16 %v2339
    %v2489 = vunpack.c.h.b16 %v2339
    %v2490 = vunpack.c.l.b16 %v2340
    %v2491 = vunpack.c.h.b16 %v2340
    %v2492 = vunpack.c.l.b16 %v2341
    %v2493 = vunpack.c.h.b16 %v2341
    %v2494 = vunpack.c.l.b16 %v2342
    %v2495 = vunpack.c.h.b16 %v2342
    %v2496 = vunpack.c.l.b16 %v2343
    %v2497 = vunpack.c.h.b16 %v2343
    %v2498 = vunpack.c.l.b16 %v2344
    %v2499 = vunpack.c.h.b16 %v2344
    %v2500 = vunpack.c.l.b16 %v2345
    %v2501 = vunpack.c.h.b16 %v2345
    %v2502 = vunpack.c.l.b16 %v2346
    %v2503 = vunpack.c.h.b16 %v2346
    %v2504 = vunpack.c.l.b16 %v2347
    %v2505 = vunpack.c.h.b16 %v2347
    %v2506 = vunpack.c.l.b16 %v2348
    %v2507 = vunpack.c.h.b16 %v2348
    %v2508 = vunpack.c.l.b16 %v2349
    %v2509 = vunpack.c.h.b16 %v2349
    %v2510 = vunpack.c.l.b16 %v2350
    %v2511 = vunpack.c.h.b16 %v2350
    %v2512 = vunpack.c.l.b16 %v2351
    %v2513 = vunpack.c.h.b16 %v2351
    %v2514 = vunpack.c.l.b16 %v2352
    %v2515 = vunpack.c.h.b16 %v2352
    %v2516 = vunpack.c.l.b16 %v2353
    %v2517 = vunpack.c.h.b16 %v2353
    %v2518 = vunpack.c.l.b16 %v2354
    %v2519 = vunpack.c.h.b16 %v2354
    %v2520 = vunpack.c.l.b16 %v2355
    %v2521 = vunpack.c.h.b16 %v2355
    %v2522 = vunpack.c.l.b16 %v2356
    %v2523 = vunpack.c.h.b16 %v2356
    %v2524 = vunpack.c.l.b16 %v2357
    %v2525 = vunpack.c.h.b16 %v2357
    %v2526 = vunpack.c.l.b16 %v2358
    %v2527 = vunpack.c.h.b16 %v2358
    %v2528 = vunpack.c.l.b16 %v2359
    %v2529 = vunpack.c.h.b16 %v2359
    %v2530 = vunpack.c.l.b16 %v2360
    %v2531 = vunpack.c.h.b16 %v2360
    %v2532 = vunpack.c.l.b16 %v2361
    %v2533 = vunpack.c.h.b16 %v2361
    %v2534 = vunpack.c.l.b16 %v2362
    %v2535 = vunpack.c.h.b16 %v2362
    %v2536 = vunpack.c.l.b16 %v2363
    %v2537 = vunpack.c.h.b16 %v2363
    %v2538 = vunpack.c.l.b16 %v2364
    %v2539 = vunpack.c.h.b16 %v2364
    %v2540 = vunpack.c.l.b16 %v2365
    %v2541 = vunpack.c.h.b16 %v2365
    %v2542 = vunpack.c.l.b16 %v2366
    %v2543 = vunpack.c.h.b16 %v2366
    %v2544 = vunpack.c.l.b16 %v2367
    %v2545 = vunpack.c.h.b16 %v2367
    %v2546 = vunpack.c.l.b16 %v2368
    %v2547 = vunpack.c.h.b16 %v2368
    %v2548 = vunpack.c.l.b16 %v2369
    %v2549 = vunpack.c.h.b16 %v2369
    %v2550 = vunpack.c.l.b16 %v2370
    %v2551 = vunpack.c.h.b16 %v2370
    %v2552 = vunpack.c.l.b16 %v2371
    %v2553 = vunpack.c.h.b16 %v2371
    %v2554 = vunpack.c.l.b16 %v2372
    %v2555 = vunpack.c.h.b16 %v2372
    %v2556 = vunpack.c.l.b16 %v2373
    %v2557 = vunpack.c.h.b16 %v2373
    %v2558 = vunpack.c.l.b16 %v2374
    %v2559 = vunpack.c.h.b16 %v2374
    %v2560 = vunpack.c.l.b16 %v2375
    %v2561 = vunpack.c.h.b16 %v2375
    %v2562 = vunpack.c.l.b16 %v2376
    %v2563 = vunpack.c.h.b16 %v2376
    %v2564 = vunpack.c.l.b16 %v2377
    %v2565 = vunpack.c.h.b16 %v2377
    %v2566 = vunpack.c.l.b16 %v2378
    %v2567 = vunpack.c.h.b16 %v2378
    %v2568 = vunpack.c.l.b16 %v2379
    %v2569 = vunpack.c.h.b16 %v2379
    %v2570 = vunpack.c.l.b16 %v2380
    %v2571 = vunpack.c.h.b16 %v2380
    %v2572 = vunpack.c.l.b16 %v2381
    %v2573 = vunpack.c.h.b16 %v2381
    %v2574 = vunpack.c.l.b16 %v2382
    %v2575 = vunpack.c.h.b16 %v2382
    %v2576 = vunpack.c.l.b16 %v2383
    %v2577 = vunpack.c.h.b16 %v2383
    %v2578 = vunpack.c.l.b16 %v2384
    %v2579 = vunpack.c.h.b16 %v2384
    %v2580 = vunpack.c.l.b16 %v2385
    %v2581 = vunpack.c.h.b16 %v2385
    %v2582 = vunpack.c.l.b16 %v2386
    %v2583 = vunpack.c.h.b16 %v2386
    %v2584 = vunpack.c.l.b16 %v2387
    %v2585 = vunpack.c.h.b16 %v2387
    %v2586 = vunpack.c.l.b16 %v2388
    %v2587 = vunpack.c.h.b16 %v2388
    %v2588 = vunpack.c.l.b16 %v2389
    %v2589 = vunpack.c.h.b16 %v2389
    %v2590 = vunpack.c.l.b16 %v2390
    %v2591 = vunpack.c.h.b16 %v2390
    %v2592 = vunpack.c.l.b16 %v2391
    %v2593 = vunpack.c.h.b16 %v2391
    %v2594 = vunpack.c.l.b16 %v2392
    %v2595 = vunpack.c.h.b16 %v2392
    %v2596 = vunpack.c.l.b16 %v2393
    %v2597 = vunpack.c.h.b16 %v2393
    %v2598 = vpack.c.b16 %v2472, %v2470
    %v2599 = vpack.c.b16 %v2473, %v2471
    %v2600 = vpack.c.b16 %v2476, %v2474
    %v2601 = vpack.c.b16 %v2477, %v2475
    %v2602 = vpack.c.b16 %v2480, %v2478
    %v2603 = vpack.c.b16 %v2481, %v2479
    %v2604 = vpack.c.b16 %v2484, %v2482
    %v2605 = vpack.c.b16 %v2485, %v2483
    %v2606 = vpack.c.b16 %v2488, %v2486
    %v2607 = vpack.c.b16 %v2489, %v2487
    %v2608 = vpack.c.b16 %v2492, %v2490
    %v2609 = vpack.c.b16 %v2493, %v2491
    %v2610 = vpack.c.b16 %v2496, %v2494
    %v2611 = vpack.c.b16 %v2497, %v2495
    %v2612 = vpack.c.b16 %v2500, %v2498
    %v2613 = vpack.c.b16 %v2501, %v2499
    %v2614 = vpack.c.b16 %v2504, %v2502
    %v2615 = vpack.c.b16 %v2505, %v2503
    %v2616 = vpack.c.b16 %v2508, %v2506
    %v2617 = vpack.c.b16 %v2509, %v2507
    %v2618 = vpack.c.b16 %v2512, %v2510
    %v2619 = vpack.c.b16 %v2513, %v2511
    %v2620 = vpack.c.b16 %v2516, %v2514
    %v2621 = vpack.c.b16 %v2517, %v2515
    %v2622 = vpack.c.b16 %v2520, %v2518
    %v2623 = vpack.c.b16 %v2521, %v2519
    %v2624 = vpack.c.b16 %v2524, %v2522
    %v2625 = vpack.c.b16 %v2525, %v2523
    %v2626 = vpack.c.b16 %v2528, %v2526
    %v2627 = vpack.c.b16 %v2529, %v2527
    %v2628 = vpack.c.b16 %v2532, %v2530
    %v2629 = vpack.c.b16 %v2533, %v2531
    %v2630 = vpack.c.b16 %v2536, %v2534
    %v2631 = vpack.c.b16 %v2537, %v2535
    %v2632 = vpack.c.b16 %v2540, %v2538
    %v2633 = vpack.c.b16 %v2541, %v2539
    %v2634 = vpack.c.b16 %v2544, %v2542
    %v2635 = vpack.c.b16 %v2545, %v2543
    %v2636 = vpack.c.b16 %v2548, %v2546
    %v2637 = vpack.c.b16 %v2549, %v2547
    %v2638 = vpack.c.b16 %v2552, %v2550
    %v2639 = vpack.c.b16 %v2553, %v2551
    %v2640 = vpack.c.b16 %v2556, %v2554
    %v2641 = vpack.c.b16 %v2557, %v2555
    %v2642 = vpack.c.b16 %v2560, %v2558
    %v2643 = vpack.c.b16 %v2561, %v2559
    %v2644 = vpack.c.b16 %v2564, %v2562
    %v2645 = vpack.c.b16 %v2565, %v2563
    %v2646 = vpack.c.b16 %v2568, %v2566
    %v2647 = vpack.c.b16 %v2569, %v2567
    %v2648 = vpack.c.b16 %v2572, %v2570
    %v2649 = vpack.c.b16 %v2573, %v2571
    %v2650 = vpack.c.b16 %v2576, %v2574
    %v2651 = vpack.c.b16 %v2577, %v2575
    %v2652 = vpack.c.b16 %v2580, %v2578
    %v2653 = vpack.c.b16 %v2581, %v2579
    %v2654 = vpack.c.b16 %v2584, %v2582
    %v2655 = vpack.c.b16 %v2585, %v2583
    %v2656 = vpack.c.b16 %v2588, %v2586
    %v2657 = vpack.c.b16 %v2589, %v2587
    %v2658 = vpack.c.b16 %v2592, %v2590
    %v2659 = vpack.c.b16 %v2593, %v2591
    %v2660 = vpack.c.b16 %v2596, %v2594
    %v2661 = vpack.c.b16 %v2597, %v2595
    %2726 = vmatprep.subr.bf16.mxu0 %v2599
    %2727 = vmatpush1.bf16.msra.mxu0 %v2598
    %2728 = vmatprep.subr.bf16.mxu0 %v2601
    %2729 = vmatpush1.bf16.msra.mxu0 %v2600
    %2730 = vmatprep.subr.bf16.mxu0 %v2603
    %2731 = vmatpush1.bf16.msra.mxu0 %v2602
    %2732 = vmatprep.subr.bf16.mxu0 %v2605
    %2733 = vmatpush1.bf16.msra.mxu0 %v2604
    %2734 = vmatprep.subr.bf16.mxu0 %v2607
    %2735 = vmatpush1.bf16.msra.mxu0 %v2606
    %2736 = vmatprep.subr.bf16.mxu0 %v2609
    %2737 = vmatpush1.bf16.msra.mxu0 %v2608
    %2738 = vmatprep.subr.bf16.mxu0 %v2611
    %2739 = vmatpush1.bf16.msra.mxu0 %v2610
    %2740 = vmatprep.subr.bf16.mxu0 %v2613
    %2741 = vmatpush1.bf16.msra.mxu0 %v2612
    %2742 = vmatprep.subr.bf16.mxu0 %v2615
    %2743 = vmatpush1.bf16.msra.mxu0 %v2614
    %2744 = vmatprep.subr.bf16.mxu0 %v2617
    %2745 = vmatpush1.bf16.msra.mxu0 %v2616
    %2746 = vmatprep.subr.bf16.mxu0 %v2619
    %2747 = vmatpush1.bf16.msra.mxu0 %v2618
    %2748 = vmatprep.subr.bf16.mxu0 %v2621
    %2749 = vmatpush1.bf16.msra.mxu0 %v2620
    %2750 = vmatprep.subr.bf16.mxu0 %v2623
    %2751 = vmatpush1.bf16.msra.mxu0 %v2622
    %2752 = vmatprep.subr.bf16.mxu0 %v2625
    %2753 = vmatpush1.bf16.msra.mxu0 %v2624
    %2754 = vmatprep.subr.bf16.mxu0 %v2627
    %2755 = vmatpush1.bf16.msra.mxu0 %v2626
    %2756 = vmatprep.subr.bf16.mxu0 %v2629
    %2757 = vmatpush1.bf16.msra.mxu0 %v2628
    %2758 = vmatprep.mubr.bf16.mxu0 %v2327
    %2759 = vmatmul.mubr.bf16.gmra.mrb[0].mxu0 %v2326
    %v2760 = vpop.f32.mrb[0].mxu0
    %v2761 = vadd.f32 %v2399, %v2760
    %v2762 = vpop.f32.mrb[0].mxu0
    %v2763 = vadd.f32 %v2403, %v2762
    %v2764 = vpop.f32.mrb[0].mxu0
    %v2765 = vpop.f32.mrb[0].mxu0
    %2766 = vdwg.mxu0
    %2767 = vmatprep.subr.bf16.mxu0 %v2631
    %2768 = vmatpush1.bf16.msra.mxu0 %v2630
    %2769 = vmatprep.subr.bf16.mxu0 %v2633
    %2770 = vmatpush1.bf16.msra.mxu0 %v2632
    %2771 = vmatprep.subr.bf16.mxu0 %v2635
    %2772 = vmatpush1.bf16.msra.mxu0 %v2634
    %2773 = vmatprep.subr.bf16.mxu0 %v2637
    %2774 = vmatpush1.bf16.msra.mxu0 %v2636
    %2775 = vmatprep.subr.bf16.mxu0 %v2639
    %2776 = vmatpush1.bf16.msra.mxu0 %v2638
    %2777 = vmatprep.subr.bf16.mxu0 %v2641
    %2778 = vmatpush1.bf16.msra.mxu0 %v2640
    %2779 = vmatprep.subr.bf16.mxu0 %v2643
    %2780 = vmatpush1.bf16.msra.mxu0 %v2642
    %2781 = vmatprep.subr.bf16.mxu0 %v2645
    %2782 = vmatpush1.bf16.msra.mxu0 %v2644
    %2783 = vmatprep.subr.bf16.mxu0 %v2647
    %2784 = vmatpush1.bf16.msra.mxu0 %v2646
    %2785 = vmatprep.subr.bf16.mxu0 %v2649
    %2786 = vmatpush1.bf16.msra.mxu0 %v2648
    %2787 = vmatprep.subr.bf16.mxu0 %v2651
    %2788 = vmatpush1.bf16.msra.mxu0 %v2650
    %2789 = vmatprep.subr.bf16.mxu0 %v2653
    %2790 = vmatpush1.bf16.msra.mxu0 %v2652
    %2791 = vmatprep.subr.bf16.mxu0 %v2655
    %2792 = vmatpush1.bf16.msra.mxu0 %v2654
    %2793 = vmatprep.subr.bf16.mxu0 %v2657
    %2794 = vmatpush1.bf16.msra.mxu0 %v2656
    %2795 = vmatprep.subr.bf16.mxu0 %v2659
    %2796 = vmatpush1.bf16.msra.mxu0 %v2658
    %2797 = vmatprep.subr.bf16.mxu0 %v2661
    %2798 = vmatpush1.bf16.msra.mxu0 %v2660
    %2799 = vmatprep.mubr.bf16.mxu0 %v2329
    %2800 = vmatmul.mubr.bf16.gmra.mrb[0].mxu0 %v2328
    %v2801 = vpop.f32.mrb[0].mxu0
    %v2802 = vadd.f32 %v2761, %v2801
    %v2803 = vpop.f32.mrb[0].mxu0
    %v2804 = vadd.f32 %v2763, %v2803
    %v2805 = vpop.f32.mrb[0].mxu0
    %v2806 = vpop.f32.mrb[0].mxu0
    %2807 = vdwg.mxu0
    %v2808 = vmax.f32 %v2802, 0.0
    %v2809 = vmax.f32 %v2804, 0.0
    %v2810 = vpack.c.bf16 %v2808, %v2808
    %v2811 = vpack.c.bf16 %v2809, %v2809
    %v2812 = vld [vmem:[#allocation11] sm:$0xf]
    %v2813 = vld [vmem:[#allocation11 + $0x4] sm:$0xf]
    %v2814 = vld [vmem:[#allocation11 + $0x8] sm:$0xf]
    %v2815 = vld [vmem:[#allocation11 + $0xc] sm:$0xf]
    %v2816 = vld [vmem:[#allocation11 + $0x10] sm:$0xf]
    %v2817 = vld [vmem:[#allocation11 + $0x14] sm:$0xf]
    %v2818 = vld [vmem:[#allocation11 + $0x18] sm:$0xf]
    %v2819 = vld [vmem:[#allocation11 + $0x1c] sm:$0xf]
    %v2820 = vld [vmem:[#allocation11 + $0x20] sm:$0xf]
    %v2821 = vld [vmem:[#allocation11 + $0x24] sm:$0xf]
    %v2822 = vld [vmem:[#allocation11 + $0x28] sm:$0xf]
    %v2823 = vld [vmem:[#allocation11 + $0x2c] sm:$0xf]
    %v2824 = vld [vmem:[#allocation11 + $0x30] sm:$0xf]
    %v2825 = vld [vmem:[#allocation11 + $0x34] sm:$0xf]
    %v2826 = vld [vmem:[#allocation11 + $0x38] sm:$0xf]
    %v2827 = vld [vmem:[#allocation11 + $0x3c] sm:$0xf]
    %v2828 = vld [vmem:[#allocation11 + $0x40] sm:$0xf]
    %v2829 = vld [vmem:[#allocation11 + $0x44] sm:$0xf]
    %v2830 = vld [vmem:[#allocation11 + $0x48] sm:$0xf]
    %v2831 = vld [vmem:[#allocation11 + $0x4c] sm:$0xf]
    %v2832 = vld [vmem:[#allocation11 + $0x50] sm:$0xf]
    %v2833 = vld [vmem:[#allocation11 + $0x54] sm:$0xf]
    %v2834 = vld [vmem:[#allocation11 + $0x58] sm:$0xf]
    %v2835 = vld [vmem:[#allocation11 + $0x5c] sm:$0xf]
    %v2836 = vld [vmem:[#allocation11 + $0x60] sm:$0xf]
    %v2837 = vld [vmem:[#allocation11 + $0x64] sm:$0xf]
    %v2838 = vld [vmem:[#allocation11 + $0x68] sm:$0xf]
    %v2839 = vld [vmem:[#allocation11 + $0x6c] sm:$0xf]
    %v2840 = vld [vmem:[#allocation11 + $0x70] sm:$0xf]
    %v2841 = vld [vmem:[#allocation11 + $0x74] sm:$0xf]
    %v2842 = vld [vmem:[#allocation11 + $0x78] sm:$0xf]
    %v2843 = vld [vmem:[#allocation11 + $0x7c] sm:$0xf]
    %v2844 = vld [vmem:[%s8] sm:$0x1]
    %v2846 = vlaneseq
    %v2847 = vshrl.u32 %v2846, 7
    %v2848 = vsub.s32 0, %v2847
    %v2849 = vrot.slane %v2844, %v2848
    %v2883 = vunpack.c.l.b16 %v2812
    %v2884 = vunpack.c.l.b16 %v2813
    %v2885 = vunpack.c.l.b16 %v2814
    %v2886 = vunpack.c.l.b16 %v2815
    %v2887 = vunpack.c.l.b16 %v2816
    %v2888 = vunpack.c.l.b16 %v2817
    %v2889 = vunpack.c.l.b16 %v2818
    %v2890 = vunpack.c.l.b16 %v2819
    %v2891 = vunpack.c.l.b16 %v2820
    %v2892 = vunpack.c.l.b16 %v2821
    %v2893 = vunpack.c.l.b16 %v2822
    %v2894 = vunpack.c.l.b16 %v2823
    %v2895 = vunpack.c.l.b16 %v2824
    %v2896 = vunpack.c.l.b16 %v2825
    %v2897 = vunpack.c.l.b16 %v2826
    %v2898 = vunpack.c.l.b16 %v2827
    %v2899 = vunpack.c.l.b16 %v2828
    %v2900 = vunpack.c.l.b16 %v2829
    %v2901 = vunpack.c.l.b16 %v2830
    %v2902 = vunpack.c.l.b16 %v2831
    %v2903 = vunpack.c.l.b16 %v2832
    %v2904 = vunpack.c.l.b16 %v2833
    %v2905 = vunpack.c.l.b16 %v2834
    %v2906 = vunpack.c.l.b16 %v2835
    %v2907 = vunpack.c.l.b16 %v2836
    %v2908 = vunpack.c.l.b16 %v2837
    %v2909 = vunpack.c.l.b16 %v2838
    %v2910 = vunpack.c.l.b16 %v2839
    %v2911 = vunpack.c.l.b16 %v2840
    %v2912 = vunpack.c.l.b16 %v2841
    %v2913 = vunpack.c.l.b16 %v2842
    %v2914 = vunpack.c.l.b16 %v2843
    %v2915 = vpack.c.b16 %v2884, %v2883
    %v2916 = vpack.c.b16 %v2886, %v2885
    %v2917 = vpack.c.b16 %v2888, %v2887
    %v2918 = vpack.c.b16 %v2890, %v2889
    %v2919 = vpack.c.b16 %v2892, %v2891
    %v2920 = vpack.c.b16 %v2894, %v2893
    %v2921 = vpack.c.b16 %v2896, %v2895
    %v2922 = vpack.c.b16 %v2898, %v2897
    %v2923 = vpack.c.b16 %v2900, %v2899
    %v2924 = vpack.c.b16 %v2902, %v2901
    %v2925 = vpack.c.b16 %v2904, %v2903
    %v2926 = vpack.c.b16 %v2906, %v2905
    %v2927 = vpack.c.b16 %v2908, %v2907
    %v2928 = vpack.c.b16 %v2910, %v2909
    %v2929 = vpack.c.b16 %v2912, %v2911
    %v2930 = vpack.c.b16 %v2914, %v2913
    %2947 = vmatprep.subr.bf16.mxu0 0
    %2948 = vmatpush1.bf16.msra.mxu0 %v2915
    %2949 = vmatprep.subr.bf16.mxu0 0
    %2950 = vmatpush1.bf16.msra.mxu0 %v2916
    %2951 = vmatprep.subr.bf16.mxu0 0
    %2952 = vmatpush1.bf16.msra.mxu0 %v2917
    %2953 = vmatprep.subr.bf16.mxu0 0
    %2954 = vmatpush1.bf16.msra.mxu0 %v2918
    %2955 = vmatprep.subr.bf16.mxu0 0
    %2956 = vmatpush1.bf16.msra.mxu0 %v2919
    %2957 = vmatprep.subr.bf16.mxu0 0
    %2958 = vmatpush1.bf16.msra.mxu0 %v2920
    %2959 = vmatprep.subr.bf16.mxu0 0
    %2960 = vmatpush1.bf16.msra.mxu0 %v2921
    %2961 = vmatprep.subr.bf16.mxu0 0
    %2962 = vmatpush1.bf16.msra.mxu0 %v2922
    %2963 = vmatprep.subr.bf16.mxu0 0
    %2964 = vmatpush1.bf16.msra.mxu0 %v2923
    %2965 = vmatprep.subr.bf16.mxu0 0
    %2966 = vmatpush1.bf16.msra.mxu0 %v2924
    %2967 = vmatprep.subr.bf16.mxu0 0
    %2968 = vmatpush1.bf16.msra.mxu0 %v2925
    %2969 = vmatprep.subr.bf16.mxu0 0
    %2970 = vmatpush1.bf16.msra.mxu0 %v2926
    %2971 = vmatprep.subr.bf16.mxu0 0
    %2972 = vmatpush1.bf16.msra.mxu0 %v2927
    %2973 = vmatprep.subr.bf16.mxu0 0
    %2974 = vmatpush1.bf16.msra.mxu0 %v2928
    %2975 = vmatprep.subr.bf16.mxu0 0
    %2976 = vmatpush1.bf16.msra.mxu0 %v2929
    %2977 = vmatprep.subr.bf16.mxu0 0
    %2978 = vmatpush1.bf16.msra.mxu0 %v2930
    %2979 = vmatprep.mubr.bf16.mxu0 %v2811
    %2980 = vmatmul.mubr.bf16.gmra.mrb[0].mxu0 %v2810
    %v2981 = vpop.f32.mrb[0].mxu0
    %v2982 = vadd.f32 %v2849, %v2981
    %v2983 = vpop.f32.mrb[0].mxu0
    %v2984 = vpop.f32.mrb[0].mxu0
    %v2985 = vpop.f32.mrb[0].mxu0
    %2986 = vdwg.mxu0
    %v2987 = vxor.u32 %v2982, 2147483648
    %v2988 = vmul.f32 %v2987, 1.442695
    %v2989 = vpow.pop %v2988
    %v2990 = vadd.f32 %v2989, 1.0
    %v2991 = vrcp.pop %v2990
    %v2992 = vmul.f32 1.0, %v2991
    %v2993 = vpack.c.bf16 %v2992, %v2992
    %2994 = vst [vmem:[#allocation13] sm:$0x1] %v2993
    // Predicated region
    $region62: #{tpu_custom_call.1} parent=1 // pred_check
      _
    $region63: #{tpu_custom_call.1} parent=1 // pred_check_branch
      %2996 = sbr.rel (0) target = $region65
    $region64: #{tpu_custom_call.1} parent=1 // pred_region
      %s2998 = ssub.s32 16, 16
      %2999 = vsyncadd [#allocation4], %s2998
      %s3001 = sshll.u32 [#allocation13], 4
      %s3002 = int_to_ptr.vmem [resolvable:$true] %s3001
      %3004 = dma.vmem_to_hbm [thread:$0]  %s3002, 16, %s9, [#allocation4]
    $region65: #{tpu_custom_call.1} parent=1 // pred_fallthru
      _
    // Predicated region
    $region66: #{tpu_custom_call.1} parent=1 // pred_check
      _
    $region67: #{tpu_custom_call.1} parent=1 // pred_check_branch
      %3006 = sbr.rel (0) target = $region69
    $region68: #{tpu_custom_call.1} parent=1 // pred_region
      %3007 = dma.done [#allocation4], 16
    $region69: #{tpu_custom_call.1} parent=1 // pred_fallthru
      _
    %3008 = vsyncpa [#allocation3], 1
    %3009 = vsyncpa [#allocation6], 1
    %3010 = vsyncpa [#allocation9], 1
    %3011 = vsyncpa [#allocation12], 1
    %3012 = vsyncpa [#allocation4], 1

</llo_original>
